<compile_context>
chip_gen: v7x
topology: tpu7x:2x2x1
jax: 0.10.0
libtpu: 0.0.40
codegen_flags: <defaults>
</compile_context>

<pallas_src>
import functools

import jax
import jax.numpy as jnp
from jax.experimental import pallas as pl
from jax.experimental.pallas import tpu as pltpu

# ----- env_params (small, synthetic but shape-consistent with the module) -----
ENTITY_TYPE_NUM = 4
ENTITY_ATTRIBUTE_NUM = 4
RELATIONSHIP_TYPE_NUM = 4
RELATIONSHIP_ATTRIBUTE_NUM = 4
MAX_ENTITIES = 8
MAX_RELATIONSHIPS = 8          # must equal MAX_ENTITIES (torch.stack([ef, rf]))
THEOREM_NUM = 16
TARGET_ENCODING_SIZE = 16

assert MAX_RELATIONSHIPS == MAX_ENTITIES

ENT_IN = ENTITY_TYPE_NUM + ENTITY_ATTRIBUTE_NUM                                    # 8
REL_IN = RELATIONSHIP_TYPE_NUM + RELATIONSHIP_ATTRIBUTE_NUM + MAX_ENTITIES         # 16
TGT_IN = MAX_ENTITIES + ENTITY_ATTRIBUTE_NUM + MAX_RELATIONSHIPS + RELATIONSHIP_ATTRIBUTE_NUM  # 24
ENV_ENC = ENTITY_TYPE_NUM + RELATIONSHIP_TYPE_NUM + TARGET_ENCODING_SIZE            # 24
ATT_IN = MAX_ENTITIES + MAX_RELATIONSHIPS                                           # 16
ENC_IN = ENT_IN + REL_IN                                                            # 24
ENC_ROWS = MAX_ENTITIES + MAX_RELATIONSHIPS                                         # 16


# ------------------------------ kernel ---------------------------------------
def net_kernel(layout, enc_ref, tgt_ref, amask_ref, w_ref, out_ref):
    """One grid step processes TB states.

    enc_ref   : [TB, 16, 24]  block-stacked [entity | 0] / [0 | relationship] rows
    tgt_ref   : [TB, 24]
    amask_ref : [TB, THEOREM_NUM]
    w_ref     : [640, 160]    packed weight slab (static layout)
    out_ref   : [TB, THEOREM_NUM]
    """
    f32 = jnp.float32

    def W(name):
        r0, nr, nc = layout[name]
        return w_ref[r0:r0 + nr, 0:nc]

    enc = enc_ref[...]                                    # [TB, 16, 24]
    tb = enc.shape[0]
    x = enc.reshape(tb * ENC_ROWS, ENC_IN)                # [TB*16, 24]

    # --- fused entity+relationship encoder, layers 1-2 (block-diagonal W) ----
    h = jnp.maximum(jnp.dot(x, W("w1f"), preferred_element_type=f32) + W("b1f"), 0.0)
    h = jnp.maximum(jnp.dot(h, W("w2f"), preferred_element_type=f32) + W("b2f"), 0.0)
    # columns 0:8  -> entity hidden (valid on entity rows)
    # columns 8:72 -> relationship hidden (valid on relationship rows)

    # entity head: Linear(8,1) as elementwise mul + lane reduce
    ef_all = jnp.sum(h[:, :8] * W("we3"), axis=1, keepdims=True) + W("be3")   # [TB*16,1]

    # relationship tail: Linear(64,32)-ReLU-Linear(32,8)-ReLU-Linear(8,1)
    g = jnp.maximum(jnp.dot(h[:, 8:72], W("wr3"), preferred_element_type=f32) + W("br3"), 0.0)
    g = jnp.maximum(jnp.dot(g, W("wr4"), preferred_element_type=f32) + W("br4"), 0.0)
    rf_all = jnp.sum(g * W("wr5"), axis=1, keepdims=True) + W("br5")          # [TB*16,1]

    ef3 = ef_all.reshape(tb, ENC_ROWS, 1)[:, :MAX_ENTITIES, :]                # [TB,8,1]
    rf3 = rf_all.reshape(tb, ENC_ROWS, 1)[:, MAX_ENTITIES:, :]                # [TB,8,1]

    # --- attention: concat(ef, rf) @ Watt + batt, per state ------------------
    w_ent = jnp.sum(ef3 * W("watt_e")[None, :, :], axis=1)                    # [TB,16]
    w_rel = jnp.sum(rf3 * W("watt_r")[None, :, :], axis=1)                    # [TB,16]
    att_w = w_ent + w_rel + W("batt")                                         # [TB,16]

    # --- per-type masked max pooling over entity / relationship features -----
    neg_inf = jnp.float32(-jnp.inf)

    e_types = enc[:, :MAX_ENTITIES, 0:ENTITY_TYPE_NUM]                        # [TB,8,4]
    e_mask = e_types == 1.0
    e_max = jnp.max(jnp.where(e_mask, ef3, neg_inf), axis=1)                  # [TB,4]
    e_has = jnp.max(e_mask.astype(f32), axis=1) > 0.0
    ent_group = jnp.where(e_has, e_max, 0.0)                                  # [TB,4]

    r_types = enc[:, MAX_ENTITIES:, ENT_IN:ENT_IN + RELATIONSHIP_TYPE_NUM]    # [TB,8,4]
    r_mask = r_types == 1.0
    r_max = jnp.max(jnp.where(r_mask, rf3, neg_inf), axis=1)
    r_has = jnp.max(r_mask.astype(f32), axis=1) > 0.0
    rel_group = jnp.where(r_has, r_max, 0.0)                                  # [TB,4]

    # --- target encoder: Linear(24,64)-ReLU-Linear(64,16) --------------------
    tgt = tgt_ref[...]                                                        # [TB,24]
    t = jnp.maximum(jnp.dot(tgt, W("wt1"), preferred_element_type=f32) + W("bt1"), 0.0)
    tf = jnp.dot(t, W("wt2"), preferred_element_type=f32) + W("bt2")          # [TB,16]

    # --- actor on env_feature = concat(ent_group, rel_group, tf) -------------
    env = jnp.concatenate([ent_group, rel_group, tf], axis=1)                 # [TB,24]
    ha = jnp.maximum(jnp.dot(env, W("wa1"), preferred_element_type=f32) + W("ba1"), 0.0)
    logits = jnp.dot(ha, W("wa2"), preferred_element_type=f32) + W("ba2")     # [TB,16]

    # --- attention weighting + softmax + action mask --------------------------
    logits = logits * att_w
    logits = logits - jnp.max(logits, axis=1, keepdims=True)
    e = jnp.exp(logits)
    probs = e * pl.reciprocal(jnp.sum(e, axis=1, keepdims=True), approx=True)
    out_ref[...] = probs * amask_ref[...]


# ------------------------- weight packing (host side) ------------------------
def _block_diag(a, b):
    ra, ca = a.shape
    rb, cb = b.shape
    top = jnp.concatenate([a, jnp.zeros((ra, cb), a.dtype)], axis=1)
    bot = jnp.concatenate([jnp.zeros((rb, ca), b.dtype), b], axis=1)
    return jnp.concatenate([top, bot], axis=0)


def pack_weight_slab(p):
    """Pack all parameters into one lane-dense f32 slab + static layout dict."""
    tensors = {
        "w1f": _block_diag(p["we1"], p["wr1"]),                       # [24,160]
        "b1f": jnp.concatenate([p["be1"], p["br1"]], axis=1),         # [1,160]
        "w2f": _block_diag(p["we2"], p["wr2"]),                       # [160,72]
        "b2f": jnp.concatenate([p["be2"], p["br2"]], axis=1),         # [1,72]
        "wr3": p["wr3"], "br3": p["br3"],
        "wr4": p["wr4"], "br4": p["br4"],
        "we3": p["we3"].reshape(1, 8), "be3": p["be3"].reshape(1, 1),
        "wr5": p["wr5"].reshape(1, 8), "br5": p["br5"].reshape(1, 1),
        "watt_e": p["watt"][:MAX_ENTITIES], "watt_r": p["watt"][MAX_ENTITIES:],
        "batt": p["batt"],
        "wt1": p["wt1"], "bt1": p["bt1"], "wt2": p["wt2"], "bt2": p["bt2"],
        "wa1": p["wa1"], "ba1": p["ba1"], "wa2": p["wa2"], "ba2": p["ba2"],
    }
    lanes = max(t.shape[1] for t in tensors.values())                 # 160
    layout, chunks, off = {}, [], 0
    for name, t in tensors.items():
        r, c = t.shape
        layout[name] = (off, r, c)
        rp = (-r) % 8                                                 # 8-align each region
        chunks.append(jnp.pad(t, ((0, rp), (0, lanes - c))))
        off += r + rp
    slab = jnp.concatenate(chunks, axis=0).astype(jnp.float32)        # [640,160]
    return slab, layout


# ------------------------------ wrapper --------------------------------------
def build_net_forward(layout, slab_shape, batch, block_b):
    assert batch % block_b == 0 and block_b % 8 == 0
    kernel = functools.partial(net_kernel, layout)
    grid = (batch // block_b,)

    call = pl.pallas_call(
        kernel,
        out_shape=jax.ShapeDtypeStruct((batch, THEOREM_NUM), jnp.float32),
        grid_spec=pltpu.PrefetchScalarGridSpec(
            num_scalar_prefetch=0,
            grid=grid,
            in_specs=[
                pl.BlockSpec((block_b, ENC_ROWS, ENC_IN), lambda i: (i, 0, 0)),
                pl.BlockSpec((block_b, TGT_IN), lambda i: (i, 0)),
                pl.BlockSpec((block_b, THEOREM_NUM), lambda i: (i, 0)),
                pl.BlockSpec(slab_shape, lambda i: (0, 0)),           # resident weights
            ],
            out_specs=pl.BlockSpec((block_b, THEOREM_NUM), lambda i: (i, 0)),
        ),
        compiler_params=pltpu.CompilerParams(
            dimension_semantics=("parallel",)),                       # v7x: 2 TCs
    )

    @jax.jit
    def forward(entity, relationship, target, action_mask, w_slab):
        """entity [B,8,8], relationship [B,8,16], target [B,24], mask [B,16] -> [B,16]."""
        entity = entity.astype(jnp.float32)
        relationship = relationship.astype(jnp.float32)
        ent_p = jnp.pad(entity, ((0, 0), (0, 0), (0, REL_IN)))        # [B,8,24]
        rel_p = jnp.pad(relationship, ((0, 0), (0, 0), (ENT_IN, 0)))  # [B,8,24]
        enc = jnp.concatenate([ent_p, rel_p], axis=1)                 # [B,16,24]
        return call(enc, target.astype(jnp.float32),
                    action_mask.astype(jnp.float32), w_slab)

    return forward


# ------------------------- deterministic parameter init ----------------------
def _init_linear(key, fan_in, fan_out):
    k1, k2 = jax.random.split(key)
    bound = 1.0 / jnp.sqrt(jnp.float32(fan_in))
    w = jax.random.uniform(k1, (fan_in, fan_out), jnp.float32, -bound, bound)  # (in, out)
    b = jax.random.uniform(k2, (1, fan_out), jnp.float32, -bound, bound)       # (1, out)
    return w, b


def make_params(key):
    keys = jax.random.split(key, 13)
    p = {}
    p["we1"], p["be1"] = _init_linear(keys[0], ENT_IN, 32)
    p["we2"], p["be2"] = _init_linear(keys[1], 32, 8)
    p["we3"], p["be3"] = _init_linear(keys[2], 8, 1)
    p["wr1"], p["br1"] = _init_linear(keys[3], REL_IN, 128)
    p["wr2"], p["br2"] = _init_linear(keys[4], 128, 64)
    p["wr3"], p["br3"] = _init_linear(keys[5], 64, 32)
    p["wr4"], p["br4"] = _init_linear(keys[6], 32, 8)
    p["wr5"], p["br5"] = _init_linear(keys[7], 8, 1)
    p["wt1"], p["bt1"] = _init_linear(keys[8], TGT_IN, 64)
    p["wt2"], p["bt2"] = _init_linear(keys[9], 64, TARGET_ENCODING_SIZE)
    p["wa1"], p["ba1"] = _init_linear(keys[10], ENV_ENC, 128)
    p["wa2"], p["ba2"] = _init_linear(keys[11], 128, THEOREM_NUM)
    p["watt"], p["batt"] = _init_linear(keys[12], ATT_IN, THEOREM_NUM)
    return p


# ------------------------ pure-JAX reference (single state) ------------------
def ref_forward(p, ent, rel, tgt, amask):
    relu = jax.nn.relu
    h = relu(ent @ p["we1"] + p["be1"])
    h = relu(h @ p["we2"] + p["be2"])
    ef = h @ p["we3"] + p["be3"]                       # [E,1]
    g = relu(rel @ p["wr1"] + p["br1"])
    g = relu(g @ p["wr2"] + p["br2"])
    g = relu(g @ p["wr3"] + p["br3"])
    g = relu(g @ p["wr4"] + p["br4"])
    rf = g @ p["wr5"] + p["br5"]                       # [R,1]
    att_in = jnp.concatenate([ef.reshape(-1), rf.reshape(-1)])
    weights = att_in @ p["watt"] + p["batt"].reshape(-1)

    def group(types, feat, n_types):
        mask = types[:, :n_types] == 1.0
        m = jnp.where(mask, feat, -jnp.inf)
        mx = jnp.max(m, axis=0)
        has = jnp.any(mask, axis=0)
        return jnp.where(has, mx, 0.0)

    eg = group(ent, ef, ENTITY_TYPE_NUM)
    rg = group(rel, rf, RELATIONSHIP_TYPE_NUM)
    t = relu(tgt.reshape(1, -1) @ p["wt1"] + p["bt1"])
    tf = (t @ p["wt2"] + p["bt2"]).reshape(-1)
    env = jnp.concatenate([eg, rg, tf])
    ha = relu(env @ p["wa1"] + p["ba1"].reshape(-1))
    logits = ha @ p["wa2"] + p["ba2"].reshape(-1)
    logits = logits * weights
    probs = jax.nn.softmax(logits, axis=0)
    return probs * amask


# ------------------------------------ main ------------------------------------
if __name__ == "__main__":
    B, TB = 64, 16

    key = jax.random.PRNGKey(0)
    kdata, kparam = jax.random.split(key)
    ke1, ke2, kr1, kr2, kt, km = jax.random.split(kdata, 6)

    ent_types = jax.nn.one_hot(
        jax.random.randint(ke1, (B, MAX_ENTITIES), 0, ENTITY_TYPE_NUM),
        ENTITY_TYPE_NUM).astype(jnp.float32)
    ent_attr = jax.random.normal(ke2, (B, MAX_ENTITIES, ENTITY_ATTRIBUTE_NUM), jnp.float32)
    entity = jnp.concatenate([ent_types, ent_attr], axis=-1)                  # [B,8,8]

    rel_types = jax.nn.one_hot(
        jax.random.randint(kr1, (B, MAX_RELATIONSHIPS), 0, RELATIONSHIP_TYPE_NUM),
        RELATIONSHIP_TYPE_NUM).astype(jnp.float32)
    rel_rest = jax.random.normal(
        kr2, (B, MAX_RELATIONSHIPS, RELATIONSHIP_ATTRIBUTE_NUM + MAX_ENTITIES), jnp.float32)
    relationship = jnp.concatenate([rel_types, rel_rest], axis=-1)            # [B,8,16]

    target = jax.random.normal(kt, (B, TGT_IN), jnp.float32)                  # [B,24]
    action_mask = (jax.random.uniform(km, (B, THEOREM_NUM)) > 0.3).astype(jnp.float32)

    params = make_params(kparam)
    slab, layout = pack_weight_slab(params)
    forward = build_net_forward(layout, tuple(slab.shape), B, TB)

    out = jax.block_until_ready(forward(entity, relationship, target, action_mask, slab))

    ref = jax.vmap(functools.partial(ref_forward, params))(
        entity, relationship, target, action_mask)
    assert out.shape == (B, THEOREM_NUM)
    max_err = float(jnp.max(jnp.abs(out - ref)))
    # tolerance loosened for pl.reciprocal(approx=True) (~2^-14 relative)
    assert jnp.allclose(out, ref, atol=1e-4, rtol=1e-3), max_err

    print("KERNEL_OK")
</pallas_src>

<mosaic_0001>
module attributes {stable_mosaic.version = 11 : i64} {
  func.func @net_kernel(%arg0: i32, %arg1: memref<16x16x24xf32, #tpu.memory_space<vmem>>, %arg2: memref<16x24xf32, #tpu.memory_space<vmem>>, %arg3: memref<16x16xf32, #tpu.memory_space<vmem>>, %arg4: memref<640x160xf32, #tpu.memory_space<vmem>>, %arg5: memref<16x16xf32, #tpu.memory_space<vmem>>) attributes {dimension_semantics = [#tpu.dimension_semantics<parallel>], iteration_bounds = array<i64: 4>, scalar_prefetch = 0 : i64, scratch_operands = 0 : i64, tpu.core_type = #tpu.core_type<tc>, window_params = [{transform_indices = @transform_0, window_bounds = array<i64: 16, 16, 24>}, {transform_indices = @transform_1, window_bounds = array<i64: 16, 24>}, {transform_indices = @transform_2, window_bounds = array<i64: 16, 16>}, {pipeline_mode = #tpu.pipeline_mode<synchronous>, transform_indices = @transform_3, window_bounds = array<i64: 640, 160>}, {transform_indices = @transform_4, window_bounds = array<i64: 16, 16>}]} {
    %c0 = arith.constant 0 : index
    %c0_0 = arith.constant 0 : index
    %c0_1 = arith.constant 0 : index
    %0 = vector.load %arg1[%c0, %c0_0, %c0_1] : memref<16x16x24xf32, #tpu.memory_space<vmem>>, vector<16x16x24xf32>
    %1 = vector.shape_cast %0 : vector<16x16x24xf32> to vector<256x24xf32>
    %c0_2 = arith.constant 0 : index
    %c0_3 = arith.constant 0 : index
    %2 = vector.load %arg4[%c0_2, %c0_3] : memref<640x160xf32, #tpu.memory_space<vmem>>, vector<24x160xf32>
    %cst = arith.constant dense<0.000000e+00> : vector<256x160xf32>
    %3 = tpu.matmul %1, %2, %cst {dimension_numbers = #tpu.dot_dimension_numbers<[1], [0], [0], [1], [0, 0, 1, 1], [], []>} : vector<256x24xf32>, vector<24x160xf32>, vector<256x160xf32> -> vector<256x160xf32>
    %c24 = arith.constant 24 : index
    %c0_4 = arith.constant 0 : index
    %4 = vector.load %arg4[%c24, %c0_4] : memref<640x160xf32, #tpu.memory_space<vmem>>, vector<1x160xf32>
    %5 = vector.broadcast %4 : vector<1x160xf32> to vector<256x160xf32>
    %6 = arith.addf %3, %5 : vector<256x160xf32>
    %cst_5 = arith.constant 0.000000e+00 : f32
    %7 = vector.broadcast %cst_5 : f32 to vector<256x160xf32>
    %8 = arith.maximumf %6, %7 : vector<256x160xf32>
    %c32 = arith.constant 32 : index
    %c0_6 = arith.constant 0 : index
    %9 = vector.load %arg4[%c32, %c0_6] : memref<640x160xf32, #tpu.memory_space<vmem>>, vector<160x72xf32>
    %cst_7 = arith.constant dense<0.000000e+00> : vector<256x72xf32>
    %10 = tpu.matmul %8, %9, %cst_7 {dimension_numbers = #tpu.dot_dimension_numbers<[1], [0], [0], [1], [0, 0, 1, 1], [], []>} : vector<256x160xf32>, vector<160x72xf32>, vector<256x72xf32> -> vector<256x72xf32>
    %c192 = arith.constant 192 : index
    %c0_8 = arith.constant 0 : index
    %11 = vector.load %arg4[%c192, %c0_8] : memref<640x160xf32, #tpu.memory_space<vmem>>, vector<1x72xf32>
    %12 = vector.broadcast %11 : vector<1x72xf32> to vector<256x72xf32>
    %13 = arith.addf %10, %12 : vector<256x72xf32>
    %cst_9 = arith.constant 0.000000e+00 : f32
    %14 = vector.broadcast %cst_9 : f32 to vector<256x72xf32>
    %15 = arith.maximumf %13, %14 : vector<256x72xf32>
    %16 = vector.extract_strided_slice %15 {offsets = [0, 0], sizes = [256, 8], strides = [1, 1]} : vector<256x72xf32> to vector<256x8xf32>
    %c312 = arith.constant 312 : index
    %c0_10 = arith.constant 0 : index
    %17 = vector.load %arg4[%c312, %c0_10] : memref<640x160xf32, #tpu.memory_space<vmem>>, vector<1x8xf32>
    %18 = vector.broadcast %17 : vector<1x8xf32> to vector<256x8xf32>
    %19 = arith.mulf %16, %18 : vector<256x8xf32>
    %cst_11 = arith.constant dense<0.000000e+00> : vector<256xf32>
    %20 = vector.multi_reduction <add>, %19, %cst_11 [1] : vector<256x8xf32> to vector<256xf32>
    %21 = vector.shape_cast %20 : vector<256xf32> to vector<256x1xf32>
    %c320 = arith.constant 320 : index
    %c0_12 = arith.constant 0 : index
    %22 = vector.load %arg4[%c320, %c0_12] : memref<640x160xf32, #tpu.memory_space<vmem>>, vector<1x1xf32>
    %23 = vector.broadcast %22 : vector<1x1xf32> to vector<256x1xf32>
    %24 = arith.addf %21, %23 : vector<256x1xf32>
    %25 = vector.extract_strided_slice %15 {offsets = [0, 8], sizes = [256, 64], strides = [1, 1]} : vector<256x72xf32> to vector<256x64xf32>
    %c200 = arith.constant 200 : index
    %c0_13 = arith.constant 0 : index
    %26 = vector.load %arg4[%c200, %c0_13] : memref<640x160xf32, #tpu.memory_space<vmem>>, vector<64x32xf32>
    %cst_14 = arith.constant dense<0.000000e+00> : vector<256x32xf32>
    %27 = tpu.matmul %25, %26, %cst_14 {dimension_numbers = #tpu.dot_dimension_numbers<[1], [0], [0], [1], [0, 0, 1, 1], [], []>} : vector<256x64xf32>, vector<64x32xf32>, vector<256x32xf32> -> vector<256x32xf32>
    %c264 = arith.constant 264 : index
    %c0_15 = arith.constant 0 : index
    %28 = vector.load %arg4[%c264, %c0_15] : memref<640x160xf32, #tpu.memory_space<vmem>>, vector<1x32xf32>
    %29 = vector.broadcast %28 : vector<1x32xf32> to vector<256x32xf32>
    %30 = arith.addf %27, %29 : vector<256x32xf32>
    %cst_16 = arith.constant 0.000000e+00 : f32
    %31 = vector.broadcast %cst_16 : f32 to vector<256x32xf32>
    %32 = arith.maximumf %30, %31 : vector<256x32xf32>
    %c272 = arith.constant 272 : index
    %c0_17 = arith.constant 0 : index
    %33 = vector.load %arg4[%c272, %c0_17] : memref<640x160xf32, #tpu.memory_space<vmem>>, vector<32x8xf32>
    %cst_18 = arith.constant dense<0.000000e+00> : vector<256x8xf32>
    %34 = tpu.matmul %32, %33, %cst_18 {dimension_numbers = #tpu.dot_dimension_numbers<[1], [0], [0], [1], [0, 0, 1, 1], [], []>} : vector<256x32xf32>, vector<32x8xf32>, vector<256x8xf32> -> vector<256x8xf32>
    %c304 = arith.constant 304 : index
    %c0_19 = arith.constant 0 : index
    %35 = vector.load %arg4[%c304, %c0_19] : memref<640x160xf32, #tpu.memory_space<vmem>>, vector<1x8xf32>
    %36 = vector.broadcast %35 : vector<1x8xf32> to vector<256x8xf32>
    %37 = arith.addf %34, %36 : vector<256x8xf32>
    %cst_20 = arith.constant 0.000000e+00 : f32
    %38 = vector.broadcast %cst_20 : f32 to vector<256x8xf32>
    %39 = arith.maximumf %37, %38 : vector<256x8xf32>
    %c328 = arith.constant 328 : index
    %c0_21 = arith.constant 0 : index
    %40 = vector.load %arg4[%c328, %c0_21] : memref<640x160xf32, #tpu.memory_space<vmem>>, vector<1x8xf32>
    %41 = vector.broadcast %40 : vector<1x8xf32> to vector<256x8xf32>
    %42 = arith.mulf %39, %41 : vector<256x8xf32>
    %cst_22 = arith.constant dense<0.000000e+00> : vector<256xf32>
    %43 = vector.multi_reduction <add>, %42, %cst_22 [1] : vector<256x8xf32> to vector<256xf32>
    %44 = vector.shape_cast %43 : vector<256xf32> to vector<256x1xf32>
    %c336 = arith.constant 336 : index
    %c0_23 = arith.constant 0 : index
    %45 = vector.load %arg4[%c336, %c0_23] : memref<640x160xf32, #tpu.memory_space<vmem>>, vector<1x1xf32>
    %46 = vector.broadcast %45 : vector<1x1xf32> to vector<256x1xf32>
    %47 = arith.addf %44, %46 : vector<256x1xf32>
    %48 = vector.shape_cast %24 : vector<256x1xf32> to vector<16x16x1xf32>
    %49 = vector.extract_strided_slice %48 {offsets = [0, 0, 0], sizes = [16, 8, 1], strides = [1, 1, 1]} : vector<16x16x1xf32> to vector<16x8x1xf32>
    %50 = vector.shape_cast %47 : vector<256x1xf32> to vector<16x16x1xf32>
    %51 = vector.extract_strided_slice %50 {offsets = [0, 8, 0], sizes = [16, 8, 1], strides = [1, 1, 1]} : vector<16x16x1xf32> to vector<16x8x1xf32>
    %c344 = arith.constant 344 : index
    %c0_24 = arith.constant 0 : index
    %52 = vector.load %arg4[%c344, %c0_24] : memref<640x160xf32, #tpu.memory_space<vmem>>, vector<8x16xf32>
    %53 = vector.shape_cast %52 : vector<8x16xf32> to vector<1x8x16xf32>
    %54 = vector.broadcast %49 : vector<16x8x1xf32> to vector<16x8x16xf32>
    %55 = vector.broadcast %53 : vector<1x8x16xf32> to vector<16x8x16xf32>
    %56 = arith.mulf %54, %55 : vector<16x8x16xf32>
    %cst_25 = arith.constant dense<0.000000e+00> : vector<16x16xf32>
    %57 = vector.multi_reduction <add>, %56, %cst_25 [1] : vector<16x8x16xf32> to vector<16x16xf32>
    %c352 = arith.constant 352 : index
    %c0_26 = arith.constant 0 : index
    %58 = vector.load %arg4[%c352, %c0_26] : memref<640x160xf32, #tpu.memory_space<vmem>>, vector<8x16xf32>
    %59 = vector.shape_cast %58 : vector<8x16xf32> to vector<1x8x16xf32>
    %60 = vector.broadcast %51 : vector<16x8x1xf32> to vector<16x8x16xf32>
    %61 = vector.broadcast %59 : vector<1x8x16xf32> to vector<16x8x16xf32>
    %62 = arith.mulf %60, %61 : vector<16x8x16xf32>
    %cst_27 = arith.constant dense<0.000000e+00> : vector<16x16xf32>
    %63 = vector.multi_reduction <add>, %62, %cst_27 [1] : vector<16x8x16xf32> to vector<16x16xf32>
    %64 = arith.addf %57, %63 : vector<16x16xf32>
    %c360 = arith.constant 360 : index
    %c0_28 = arith.constant 0 : index
    %65 = vector.load %arg4[%c360, %c0_28] : memref<640x160xf32, #tpu.memory_space<vmem>>, vector<1x16xf32>
    %66 = vector.broadcast %65 : vector<1x16xf32> to vector<16x16xf32>
    %67 = arith.addf %64, %66 : vector<16x16xf32>
    %68 = vector.extract_strided_slice %0 {offsets = [0, 0, 0], sizes = [16, 8, 4], strides = [1, 1, 1]} : vector<16x16x24xf32> to vector<16x8x4xf32>
    %cst_29 = arith.constant 1.000000e+00 : f32
    %69 = vector.broadcast %cst_29 : f32 to vector<16x8x4xf32>
    %70 = arith.cmpf oeq, %68, %69 : vector<16x8x4xf32>
    %cst_30 = arith.constant 0xFF800000 : f32
    %71 = vector.shape_cast %49 : vector<16x8x1xf32> to vector<16x8x1xf32>
    %72 = vector.broadcast %71 : vector<16x8x1xf32> to vector<16x8x4xf32>
    %73 = vector.broadcast %cst_30 : f32 to vector<16x8x4xf32>
    %74 = arith.select %70, %72, %73 : vector<16x8x4xi1>, vector<16x8x4xf32>
    %cst_31 = arith.constant dense<0xFF800000> : vector<16x4xf32>
    %75 = vector.multi_reduction <maximumf>, %74, %cst_31 [1] : vector<16x8x4xf32> to vector<16x4xf32>
    %76 = arith.extui %70 : vector<16x8x4xi1> to vector<16x8x4xi32>
    %77 = arith.sitofp %76 : vector<16x8x4xi32> to vector<16x8x4xf32>
    %cst_32 = arith.constant dense<0xFF800000> : vector<16x4xf32>
    %78 = vector.multi_reduction <maximumf>, %77, %cst_32 [1] : vector<16x8x4xf32> to vector<16x4xf32>
    %cst_33 = arith.constant 0.000000e+00 : f32
    %79 = vector.broadcast %cst_33 : f32 to vector<16x4xf32>
    %80 = arith.cmpf ogt, %78, %79 : vector<16x4xf32>
    %cst_34 = arith.constant 0.000000e+00 : f32
    %81 = vector.broadcast %cst_34 : f32 to vector<16x4xf32>
    %82 = arith.select %80, %75, %81 : vector<16x4xi1>, vector<16x4xf32>
    %83 = vector.extract_strided_slice %0 {offsets = [0, 8, 8], sizes = [16, 8, 4], strides = [1, 1, 1]} : vector<16x16x24xf32> to vector<16x8x4xf32>
    %cst_35 = arith.constant 1.000000e+00 : f32
    %84 = vector.broadcast %cst_35 : f32 to vector<16x8x4xf32>
    %85 = arith.cmpf oeq, %83, %84 : vector<16x8x4xf32>
    %cst_36 = arith.constant 0xFF800000 : f32
    %86 = vector.shape_cast %51 : vector<16x8x1xf32> to vector<16x8x1xf32>
    %87 = vector.broadcast %86 : vector<16x8x1xf32> to vector<16x8x4xf32>
    %88 = vector.broadcast %cst_36 : f32 to vector<16x8x4xf32>
    %89 = arith.select %85, %87, %88 : vector<16x8x4xi1>, vector<16x8x4xf32>
    %cst_37 = arith.constant dense<0xFF800000> : vector<16x4xf32>
    %90 = vector.multi_reduction <maximumf>, %89, %cst_37 [1] : vector<16x8x4xf32> to vector<16x4xf32>
    %91 = arith.extui %85 : vector<16x8x4xi1> to vector<16x8x4xi32>
    %92 = arith.sitofp %91 : vector<16x8x4xi32> to vector<16x8x4xf32>
    %cst_38 = arith.constant dense<0xFF800000> : vector<16x4xf32>
    %93 = vector.multi_reduction <maximumf>, %92, %cst_38 [1] : vector<16x8x4xf32> to vector<16x4xf32>
    %cst_39 = arith.constant 0.000000e+00 : f32
    %94 = vector.broadcast %cst_39 : f32 to vector<16x4xf32>
    %95 = arith.cmpf ogt, %93, %94 : vector<16x4xf32>
    %cst_40 = arith.constant 0.000000e+00 : f32
    %96 = vector.broadcast %cst_40 : f32 to vector<16x4xf32>
    %97 = arith.select %95, %90, %96 : vector<16x4xi1>, vector<16x4xf32>
    %c0_41 = arith.constant 0 : index
    %c0_42 = arith.constant 0 : index
    %98 = vector.load %arg2[%c0_41, %c0_42] : memref<16x24xf32, #tpu.memory_space<vmem>>, vector<16x24xf32>
    %c368 = arith.constant 368 : index
    %c0_43 = arith.constant 0 : index
    %99 = vector.load %arg4[%c368, %c0_43] : memref<640x160xf32, #tpu.memory_space<vmem>>, vector<24x64xf32>
    %cst_44 = arith.constant dense<0.000000e+00> : vector<16x64xf32>
    %100 = tpu.matmul %98, %99, %cst_44 {dimension_numbers = #tpu.dot_dimension_numbers<[1], [0], [0], [1], [0, 0, 1, 1], [], []>} : vector<16x24xf32>, vector<24x64xf32>, vector<16x64xf32> -> vector<16x64xf32>
    %c392 = arith.constant 392 : index
    %c0_45 = arith.constant 0 : index
    %101 = vector.load %arg4[%c392, %c0_45] : memref<640x160xf32, #tpu.memory_space<vmem>>, vector<1x64xf32>
    %102 = vector.broadcast %101 : vector<1x64xf32> to vector<16x64xf32>
    %103 = arith.addf %100, %102 : vector<16x64xf32>
    %cst_46 = arith.constant 0.000000e+00 : f32
    %104 = vector.broadcast %cst_46 : f32 to vector<16x64xf32>
    %105 = arith.maximumf %103, %104 : vector<16x64xf32>
    %c400 = arith.constant 400 : index
    %c0_47 = arith.constant 0 : index
    %106 = vector.load %arg4[%c400, %c0_47] : memref<640x160xf32, #tpu.memory_space<vmem>>, vector<64x16xf32>
    %cst_48 = arith.constant dense<0.000000e+00> : vector<16x16xf32>
    %107 = tpu.matmul %105, %106, %cst_48 {dimension_numbers = #tpu.dot_dimension_numbers<[1], [0], [0], [1], [0, 0, 1, 1], [], []>} : vector<16x64xf32>, vector<64x16xf32>, vector<16x16xf32> -> vector<16x16xf32>
    %c464 = arith.constant 464 : index
    %c0_49 = arith.constant 0 : index
    %108 = vector.load %arg4[%c464, %c0_49] : memref<640x160xf32, #tpu.memory_space<vmem>>, vector<1x16xf32>
    %109 = vector.broadcast %108 : vector<1x16xf32> to vector<16x16xf32>
    %110 = arith.addf %107, %109 : vector<16x16xf32>
    %111 = tpu.concatenate %82, %97, %110 in 1 : vector<16x4xf32>, vector<16x4xf32>, vector<16x16xf32> -> vector<16x24xf32>
    %c472 = arith.constant 472 : index
    %c0_50 = arith.constant 0 : index
    %112 = vector.load %arg4[%c472, %c0_50] : memref<640x160xf32, #tpu.memory_space<vmem>>, vector<24x128xf32>
    %cst_51 = arith.constant dense<0.000000e+00> : vector<16x128xf32>
    %113 = tpu.matmul %111, %112, %cst_51 {dimension_numbers = #tpu.dot_dimension_numbers<[1], [0], [0], [1], [0, 0, 1, 1], [], []>} : vector<16x24xf32>, vector<24x128xf32>, vector<16x128xf32> -> vector<16x128xf32>
    %c496 = arith.constant 496 : index
    %c0_52 = arith.constant 0 : index
    %114 = vector.load %arg4[%c496, %c0_52] : memref<640x160xf32, #tpu.memory_space<vmem>>, vector<1x128xf32>
    %115 = vector.broadcast %114 : vector<1x128xf32> to vector<16x128xf32>
    %116 = arith.addf %113, %115 : vector<16x128xf32>
    %cst_53 = arith.constant 0.000000e+00 : f32
    %117 = vector.broadcast %cst_53 : f32 to vector<16x128xf32>
    %118 = arith.maximumf %116, %117 : vector<16x128xf32>
    %c504 = arith.constant 504 : index
    %c0_54 = arith.constant 0 : index
    %119 = vector.load %arg4[%c504, %c0_54] : memref<640x160xf32, #tpu.memory_space<vmem>>, vector<128x16xf32>
    %cst_55 = arith.constant dense<0.000000e+00> : vector<16x16xf32>
    %120 = tpu.matmul %118, %119, %cst_55 {dimension_numbers = #tpu.dot_dimension_numbers<[1], [0], [0], [1], [0, 0, 1, 1], [], []>} : vector<16x128xf32>, vector<128x16xf32>, vector<16x16xf32> -> vector<16x16xf32>
    %c632 = arith.constant 632 : index
    %c0_56 = arith.constant 0 : index
    %121 = vector.load %arg4[%c632, %c0_56] : memref<640x160xf32, #tpu.memory_space<vmem>>, vector<1x16xf32>
    %122 = vector.broadcast %121 : vector<1x16xf32> to vector<16x16xf32>
    %123 = arith.addf %120, %122 : vector<16x16xf32>
    %124 = arith.mulf %123, %67 : vector<16x16xf32>
    %cst_57 = arith.constant dense<0xFF800000> : vector<16xf32>
    %125 = vector.multi_reduction <maximumf>, %124, %cst_57 [1] : vector<16x16xf32> to vector<16xf32>
    %126 = vector.shape_cast %125 : vector<16xf32> to vector<16x1xf32>
    %127 = vector.broadcast %126 : vector<16x1xf32> to vector<16x16xf32>
    %128 = arith.subf %124, %127 : vector<16x16xf32>
    %129 = math.exp %128 : vector<16x16xf32>
    %cst_58 = arith.constant dense<0.000000e+00> : vector<16xf32>
    %130 = vector.multi_reduction <add>, %129, %cst_58 [1] : vector<16x16xf32> to vector<16xf32>
    %131 = vector.shape_cast %130 : vector<16xf32> to vector<16x1xf32>
    %132 = tpu.reciprocal %131 {approx = true} : vector<16x1xf32> -> vector<16x1xf32>
    %133 = vector.broadcast %132 : vector<16x1xf32> to vector<16x16xf32>
    %134 = arith.mulf %129, %133 : vector<16x16xf32>
    %c0_59 = arith.constant 0 : index
    %c0_60 = arith.constant 0 : index
    %135 = vector.load %arg3[%c0_59, %c0_60] : memref<16x16xf32, #tpu.memory_space<vmem>>, vector<16x16xf32>
    %136 = arith.mulf %134, %135 : vector<16x16xf32>
    %c0_61 = arith.constant 0 : index
    %c0_62 = arith.constant 0 : index
    %137 = vector.load %arg5[%c0_61, %c0_62] : memref<16x16xf32, #tpu.memory_space<vmem>>, vector<16x16xf32>
    tpu.vector_store %arg5[%c0_61, %c0_62], %136 {strides = array<i32>} : memref<16x16xf32, #tpu.memory_space<vmem>>, vector<16x16xf32>,
    return
  }
  func.func @transform_0(%arg0: i32) -> (i32, i32, i32) {
    %c0_i32 = arith.constant 0 : i32
    %c0_i32_0 = arith.constant 0 : i32
    %c0_i32_1 = arith.constant 0 : i32
    return %arg0, %c0_i32, %c0_i32_0 : i32, i32, i32
  }
  func.func @transform_1(%arg0: i32) -> (i32, i32) {
    %c0_i32 = arith.constant 0 : i32
    %c0_i32_0 = arith.constant 0 : i32
    return %arg0, %c0_i32 : i32, i32
  }
  func.func @transform_2(%arg0: i32) -> (i32, i32) {
    %c0_i32 = arith.constant 0 : i32
    %c0_i32_0 = arith.constant 0 : i32
    return %arg0, %c0_i32 : i32, i32
  }
  func.func @transform_3(%arg0: i32) -> (i32, i32) {
    %c0_i32 = arith.constant 0 : i32
    %c0_i32_0 = arith.constant 0 : i32
    %c0_i32_1 = arith.constant 0 : i32
    return %c0_i32, %c0_i32_0 : i32, i32
  }
  func.func @transform_4(%arg0: i32) -> (i32, i32) {
    %c0_i32 = arith.constant 0 : i32
    %c0_i32_0 = arith.constant 0 : i32
    return %arg0, %c0_i32 : i32, i32
  }
}

</mosaic_0001>

<llo_original>
// kernel: forward.1
$region0: #{forward.1}
  #allocation0 [shape = 'u32[]', space=smem, size = 0x4, offset = 0x4, fixed_abs, tag = 'smem constant byte address 0x4 - core index']
  #allocation1 [shape = 'u32[144,128]{1,0:T(1,128)}', space=vmem, size = 0x12000, scoped, tag = 'internal scratch']
  %s0 = inlined_call_operand.vmem [shape: f32[64,16,24], index: 0, kind: input, shape index: {}]
  %s1 = inlined_call_operand.vmem [shape: f32[64,24], index: 1, kind: input, shape index: {}]
  %s2 = inlined_call_operand.vmem [shape: f32[64,16], index: 2, kind: input, shape index: {}]
  %s3 = inlined_call_operand.vmem [shape: f32[640,160], index: 3, kind: input, shape index: {}]
  %s4 = inlined_call_operand.vmem [shape: f32[64,16], index: 4, kind: output, shape index: {}]
  %s5 = sld [smem:[#allocation0]]
  $region49: #{forward.1} parent=0
    _
  %s7 = ssub.s32 1, %s5
  %s8 = scalar_select 0, %s7, %s5
  loop: start=0, step=1, limit=6
  $region2: #{forward.1} parent=0 // loop_pre_header
    _
  $region3: #{forward.1} parent=0 // loop_header
    %s10 = sphi 0, %s14
    %p11 = scmp.ge.s32.totalorder %s10, 6
    %s20 = sphi 0, %s22
    %s23 = sphi 0, %s20
    %s24 = sphi 0, %s23
    %s40 = sphi 0, %s24
    %s46 = sphi 0, %s48
    %s49 = sphi 0, %s46
    %s50 = sphi 0, %s49
    %s66 = sphi 0, %s50
    %s72 = sphi 0, %s74
    %s75 = sphi 0, %s72
    %s76 = sphi 0, %s75
    %s92 = sphi 0, %s76
    %s96 = sphi 0, %s96
    %s98 = sphi 0, %s96
    %s99 = sphi 0, %s98
    %s113 = sphi 0, %s99
    %s119 = sphi 0, %s121
    %s122 = sphi 0, %s119
    %s123 = sphi 0, %s122
    %s139 = sphi 0, %s123
  $region4: #{forward.1} parent=0 // loop_header_branch
    %13 = sbr.rel (%p11) target = $region8
  $region5: #{forward.1} parent=0 // loop_body
    %s15 = ssub.s32 %s10, 1
    %s16 = ssub.s32 %s10, 2
    %s17 = sadd.s32 %s10, 1
    %s18 = ssub.s32 %s10, %s17
    %p19 = scmp.eq.s32.totalorder %s18, 0
    %s21 = sadd.s32 %s20, 1
    %s22 = scalar_select %p19, %s20, %s21
    %p25 = pneg %p19
    %p26 = scmp.eq.s32.totalorder %s10, 3
    %p27 = por %p25, %p26
    %p28 = scmp.ne.s32.totalorder %s20, %s23
    %p29 = scmp.eq.s32.totalorder %s10, 0
    %p30 = por %p28, %p29
    %p31 = scmp.ne.s32.totalorder %s20, %s23
    %p32 = scmp.eq.s32.totalorder %s15, 3
    %p33 = por %p31, %p32
    %p34 = scmp.ne.s32.totalorder %s23, %s24
    %p35 = scmp.eq.s32.totalorder %s15, 0
    %p36 = por %p34, %p35
    %p37 = scmp.ne.s32.totalorder %s23, %s24
    %p38 = scmp.eq.s32.totalorder %s16, 3
    %p39 = por %p37, %p38
    %p41 = scmp.ne.s32.totalorder %s24, %s40
    %p42 = scmp.eq.s32.totalorder %s16, 0
    %p43 = por %p41, %p42
    %s44 = ssub.s32 %s10, %s17
    %p45 = scmp.eq.s32.totalorder %s44, 0
    %s47 = sadd.s32 %s46, 1
    %s48 = scalar_select %p45, %s46, %s47
    %p51 = pneg %p45
    %p52 = scmp.eq.s32.totalorder %s10, 3
    %p53 = por %p51, %p52
    %p54 = scmp.ne.s32.totalorder %s46, %s49
    %p55 = scmp.eq.s32.totalorder %s10, 0
    %p56 = por %p54, %p55
    %p57 = scmp.ne.s32.totalorder %s46, %s49
    %p58 = scmp.eq.s32.totalorder %s15, 3
    %p59 = por %p57, %p58
    %p60 = scmp.ne.s32.totalorder %s49, %s50
    %p61 = scmp.eq.s32.totalorder %s15, 0
    %p62 = por %p60, %p61
    %p63 = scmp.ne.s32.totalorder %s49, %s50
    %p64 = scmp.eq.s32.totalorder %s16, 3
    %p65 = por %p63, %p64
    %p67 = scmp.ne.s32.totalorder %s50, %s66
    %p68 = scmp.eq.s32.totalorder %s16, 0
    %p69 = por %p67, %p68
    %s70 = ssub.s32 %s10, %s17
    %p71 = scmp.eq.s32.totalorder %s70, 0
    %s73 = sadd.s32 %s72, 1
    %s74 = scalar_select %p71, %s72, %s73
    %p77 = pneg %p71
    %p78 = scmp.eq.s32.totalorder %s10, 3
    %p79 = por %p77, %p78
    %p80 = scmp.ne.s32.totalorder %s72, %s75
    %p81 = scmp.eq.s32.totalorder %s10, 0
    %p82 = por %p80, %p81
    %p83 = scmp.ne.s32.totalorder %s72, %s75
    %p84 = scmp.eq.s32.totalorder %s15, 3
    %p85 = por %p83, %p84
    %p86 = scmp.ne.s32.totalorder %s75, %s76
    %p87 = scmp.eq.s32.totalorder %s15, 0
    %p88 = por %p86, %p87
    %p89 = scmp.ne.s32.totalorder %s75, %s76
    %p90 = scmp.eq.s32.totalorder %s16, 3
    %p91 = por %p89, %p90
    %p93 = scmp.ne.s32.totalorder %s76, %s92
    %p94 = scmp.eq.s32.totalorder %s16, 0
    %p95 = por %p93, %p94
    %s97 = sadd.s32 %s96, 1
    %p100 = scmp.eq.s32.totalorder %s10, 3
    %p101 = scmp.ne.s32.totalorder %s96, %s98
    %p102 = scmp.eq.s32.totalorder %s10, 0
    %p103 = por %p101, %p102
    %p104 = scmp.ne.s32.totalorder %s96, %s98
    %p105 = scmp.eq.s32.totalorder %s15, 3
    %p106 = por %p104, %p105
    %p107 = scmp.ne.s32.totalorder %s98, %s99
    %p108 = scmp.eq.s32.totalorder %s15, 0
    %p109 = por %p107, %p108
    %p110 = scmp.ne.s32.totalorder %s98, %s99
    %p111 = scmp.eq.s32.totalorder %s16, 3
    %p112 = por %p110, %p111
    %p114 = scmp.ne.s32.totalorder %s99, %s113
    %p115 = scmp.eq.s32.totalorder %s16, 0
    %p116 = por %p114, %p115
    %s117 = ssub.s32 %s10, %s17
    %p118 = scmp.eq.s32.totalorder %s117, 0
    %s120 = sadd.s32 %s119, 1
    %s121 = scalar_select %p118, %s119, %s120
    %p124 = pneg %p118
    %p125 = scmp.eq.s32.totalorder %s10, 3
    %p126 = por %p124, %p125
    %p127 = scmp.ne.s32.totalorder %s119, %s122
    %p128 = scmp.eq.s32.totalorder %s10, 0
    %p129 = por %p127, %p128
    %p130 = scmp.ne.s32.totalorder %s119, %s122
    %p131 = scmp.eq.s32.totalorder %s15, 3
    %p132 = por %p130, %p131
    %p133 = scmp.ne.s32.totalorder %s122, %s123
    %p134 = scmp.eq.s32.totalorder %s15, 0
    %p135 = por %p133, %p134
    %p136 = scmp.ne.s32.totalorder %s122, %s123
    %p137 = scmp.eq.s32.totalorder %s16, 3
    %p138 = por %p136, %p137
    %p140 = scmp.ne.s32.totalorder %s123, %s139
    %p141 = scmp.eq.s32.totalorder %s16, 0
    %p142 = por %p140, %p141
    %p143 = scmp.le.s32.totalorder 1, %s10
    %p144 = scmp.lt.s32.totalorder %s10, 5
    %p145 = pnand %p143, %p144
    %p146 = pneg %p145
    // Predicated region
    $region9: #{forward.1} parent=5 // pred_check
      _
    $region10: #{forward.1} parent=5 // pred_check_branch
      %148 = sbr.rel (%p145) target = $region12
    $region11: #{forward.1} parent=5 // pred_region
      %s149 = ssub.s32 %s10, 1
      // Predicated region
      $region13: #{forward.1} parent=11 // pred_check
        %p150 = pneg %p109
      $region14: #{forward.1} parent=11 // pred_check_branch
        %152 = sbr.rel (%p150) target = $region16
      $region15: #{forward.1} parent=11 // pred_region
        _
      $region16: #{forward.1} parent=11 // pred_fallthru
        _
    $region12: #{forward.1} parent=5 // pred_fallthru
      _
    %p153 = scmp.lt.s32.totalorder %s10, 4
    // Predicated region
    $region17: #{forward.1} parent=5 // pred_check
      %p154 = pneg %p153
    $region18: #{forward.1} parent=5 // pred_check_branch
      %156 = sbr.rel (%p154) target = $region20
    $region19: #{forward.1} parent=5 // pred_region
      // Predicated region
      $region21: #{forward.1} parent=19 // pred_check
        %p157 = pneg %p30
      $region22: #{forward.1} parent=19 // pred_check_branch
        %159 = sbr.rel (%p157) target = $region24
      $region23: #{forward.1} parent=19 // pred_region
        %s160 = smul.u32 16, %s10
        %p161 = scmp.lt.s32.totalorder %s160, 63
        %s162 = scalar_select %p161, %s160, 63
        %s163 = smul.addr %s162, 2
        %s164 = smul.addr %s163, 8
        %s165 = scalar_lea.vmem %s0, %s164
        %s166 = smul.u32 16, %s10
      $region24: #{forward.1} parent=19 // pred_fallthru
        _
      // Predicated region
      $region25: #{forward.1} parent=19 // pred_check
        %p167 = pneg %p56
      $region26: #{forward.1} parent=19 // pred_check_branch
        %169 = sbr.rel (%p167) target = $region28
      $region27: #{forward.1} parent=19 // pred_region
        %s170 = smul.u32 2, %s10
        %p171 = scmp.lt.s32.totalorder %s170, 7
        %s172 = scalar_select %p171, %s170, 7
        %s173 = smul.addr %s172, 8
        %s174 = scalar_lea.vmem %s1, %s173
        %s175 = smul.u32 2, %s10
      $region28: #{forward.1} parent=19 // pred_fallthru
        _
      // Predicated region
      $region29: #{forward.1} parent=19 // pred_check
        %p176 = pneg %p82
      $region30: #{forward.1} parent=19 // pred_check_branch
        %178 = sbr.rel (%p176) target = $region32
      $region31: #{forward.1} parent=19 // pred_region
        %s179 = smul.u32 2, %s10
        %p180 = scmp.lt.s32.totalorder %s179, 7
        %s181 = scalar_select %p180, %s179, 7
        %s182 = smul.addr %s181, 8
        %s183 = scalar_lea.vmem %s2, %s182
        %s184 = smul.u32 2, %s10
      $region32: #{forward.1} parent=19 // pred_fallthru
        _
    $region20: #{forward.1} parent=5 // pred_fallthru
      _
    %p185 = scmp.le.s32.totalorder 1, %s10
    %p186 = scmp.lt.s32.totalorder %s10, 5
    %p187 = pnand %p185, %p186
    %p188 = pneg %p187
    // Predicated region
    $region33: #{forward.1} parent=5 // pred_check
      _
    $region34: #{forward.1} parent=5 // pred_check_branch
      %190 = sbr.rel (%p187) target = $region36
    $region35: #{forward.1} parent=5 // pred_region
      %s191 = ssub.s32 %s10, 1
      %s192 = smul.u32 16, %s15
      %p193 = scmp.lt.s32.totalorder %s192, 63
      %s194 = scalar_select %p193, %s192, 63
      %s195 = smul.addr %s194, 2
      %s196 = smul.addr %s195, 8
      %s197 = scalar_lea.vmem %s0, %s196
      %p198 = pneg %p36
      %p199 = pneg %p33
      %s200 = smul.u32 2, %s15
      %p201 = scmp.lt.s32.totalorder %s200, 7
      %s202 = scalar_select %p201, %s200, 7
      %s203 = smul.addr %s202, 8
      %s204 = scalar_lea.vmem %s1, %s203
      %p205 = pneg %p62
      %p206 = pneg %p59
      %s207 = smul.u32 2, %s15
      %p208 = scmp.lt.s32.totalorder %s207, 7
      %s209 = scalar_select %p208, %s207, 7
      %s210 = smul.addr %s209, 8
      %s211 = scalar_lea.vmem %s2, %s210
      %p212 = pneg %p88
      %p213 = pneg %p85
      %p214 = pneg %p109
      %p215 = pneg %p106
      %p216 = pneg %p135
      %p217 = pneg %p132
      %s218 = smul.u32 2, %s15
      %p219 = scmp.lt.s32.totalorder %s218, 7
      %s220 = scalar_select %p219, %s218, 7
      %s221 = smul.addr %s220, 8
      %s222 = scalar_lea.vmem %s4, %s221
      %s223 = smul.u32 16, %s15
      %p224 = scmp.lt.s32.totalorder %s223, 63
      %s225 = scalar_select %p224, %s223, 63
      %s226 = smul.addr %s225, 2
      %s227 = smul.addr %s226, 8
      %s228 = scalar_lea.vmem %s0, %s227
      %s229 = smul.u32 16, %s15
      %s230 = smul.u32 2, %s15
      %p231 = scmp.lt.s32.totalorder %s230, 7
      %s232 = scalar_select %p231, %s230, 7
      %s233 = smul.addr %s232, 8
      %s234 = scalar_lea.vmem %s1, %s233
      %s235 = smul.u32 2, %s15
      %s236 = smul.u32 2, %s15
      %p237 = scmp.lt.s32.totalorder %s236, 7
      %s238 = scalar_select %p237, %s236, 7
      %s239 = smul.addr %s238, 8
      %s240 = scalar_lea.vmem %s2, %s239
      %s241 = smul.u32 2, %s15
      %s242 = smul.u32 2, %s15
      %p243 = scmp.lt.s32.totalorder %s242, 7
      %s244 = scalar_select %p243, %s242, 7
      %s245 = smul.addr %s244, 8
      %s246 = scalar_lea.vmem %s4, %s245
      %s247 = smul.u32 2, %s15
      %v248 = vld [vmem:[%s228] sm:$0xff]
      %v249 = vld [vmem:[%s228 + $0x8] sm:$0xff]
      %v250 = vld [vmem:[%s228 + $0x10] sm:$0xff]
      %v251 = vld [vmem:[%s228 + $0x18] sm:$0xff]
      %v252 = vld [vmem:[%s228 + $0x20] sm:$0xff]
      %v253 = vld [vmem:[%s228 + $0x28] sm:$0xff]
      %v254 = vld [vmem:[%s228 + $0x30] sm:$0xff]
      %v255 = vld [vmem:[%s228 + $0x38] sm:$0xff]
      %v256 = vld [vmem:[%s228 + $0x40] sm:$0xff]
      %v257 = vld [vmem:[%s228 + $0x48] sm:$0xff]
      %v258 = vld [vmem:[%s228 + $0x50] sm:$0xff]
      %v259 = vld [vmem:[%s228 + $0x58] sm:$0xff]
      %v260 = vld [vmem:[%s228 + $0x60] sm:$0xff]
      %v261 = vld [vmem:[%s228 + $0x68] sm:$0xff]
      %v262 = vld [vmem:[%s228 + $0x70] sm:$0xff]
      %v263 = vld [vmem:[%s228 + $0x78] sm:$0xff]
      %v264 = vld [vmem:[%s228 + $0x80] sm:$0xff]
      %v265 = vld [vmem:[%s228 + $0x88] sm:$0xff]
      %v266 = vld [vmem:[%s228 + $0x90] sm:$0xff]
      %v267 = vld [vmem:[%s228 + $0x98] sm:$0xff]
      %v268 = vld [vmem:[%s228 + $0xa0] sm:$0xff]
      %v269 = vld [vmem:[%s228 + $0xa8] sm:$0xff]
      %v270 = vld [vmem:[%s228 + $0xb0] sm:$0xff]
      %v271 = vld [vmem:[%s228 + $0xb8] sm:$0xff]
      %v272 = vld [vmem:[%s228 + $0xc0] sm:$0xff]
      %v273 = vld [vmem:[%s228 + $0xc8] sm:$0xff]
      %v274 = vld [vmem:[%s228 + $0xd0] sm:$0xff]
      %v275 = vld [vmem:[%s228 + $0xd8] sm:$0xff]
      %v276 = vld [vmem:[%s228 + $0xe0] sm:$0xff]
      %v277 = vld [vmem:[%s228 + $0xe8] sm:$0xff]
      %v278 = vld [vmem:[%s228 + $0xf0] sm:$0xff]
      %v279 = vld [vmem:[%s228 + $0xf8] sm:$0xff]
      %v280 = vld [vmem:[%s3] sm:$0xff]
      %v281 = vld [vmem:[%s3 + $0x8] sm:$0xff]
      %v282 = vld [vmem:[%s3 + $0x10] sm:$0xff]
      %v283 = vld [vmem:[%s3 + $0x18] sm:$0xff]
      %v284 = vld [vmem:[%s3 + $0x20] sm:$0xff]
      %v285 = vld [vmem:[%s3 + $0x28] sm:$0xff]
      %s286 = scalar_lea.vmem %s3, 48
      %v287 = vld [vmem:[%s286] ss:$8 sm:$0x3]
      %v289 = vlaneseq
      %v290 = vshrl.u32 %v289, 7
      %v291 = vsub.s32 0, %v290
      %v292 = vrot.slane %v287, %v291
      %v293 = vlaneseq
      %v294 = vshrl.u32 %v293, 7
      %v295 = vsub.s32 1, %v294
      %v296 = vrot.slane %v287, %v295
      %vm299 = vcmask 195584
      %v301 = vsel %vm299, %v248, 0
      %v304 = vsel %vm299, %v249, 0
      %v307 = vsel %vm299, %v250, 0
      %v310 = vsel %vm299, %v251, 0
      %v313 = vsel %vm299, %v252, 0
      %v316 = vsel %vm299, %v253, 0
      %v319 = vsel %vm299, %v254, 0
      %v322 = vsel %vm299, %v255, 0
      %v325 = vsel %vm299, %v256, 0
      %v328 = vsel %vm299, %v257, 0
      %v331 = vsel %vm299, %v258, 0
      %v334 = vsel %vm299, %v259, 0
      %v337 = vsel %vm299, %v260, 0
      %v340 = vsel %vm299, %v261, 0
      %v343 = vsel %vm299, %v262, 0
      %v346 = vsel %vm299, %v263, 0
      %v349 = vsel %vm299, %v264, 0
      %v352 = vsel %vm299, %v265, 0
      %v355 = vsel %vm299, %v266, 0
      %v358 = vsel %vm299, %v267, 0
      %v361 = vsel %vm299, %v268, 0
      %v364 = vsel %vm299, %v269, 0
      %v367 = vsel %vm299, %v270, 0
      %v370 = vsel %vm299, %v271, 0
      %v373 = vsel %vm299, %v272, 0
      %v376 = vsel %vm299, %v273, 0
      %v379 = vsel %vm299, %v274, 0
      %v382 = vsel %vm299, %v275, 0
      %v385 = vsel %vm299, %v276, 0
      %v388 = vsel %vm299, %v277, 0
      %v391 = vsel %vm299, %v278, 0
      %v394 = vsel %vm299, %v279, 0
      %396 = vmatprep.subr.mxu0 %v281
      %397 = vmatpush1.msra.mxu0 %v280
      %398 = vmatprep.subr.mxu0 %v283
      %399 = vmatpush1.msra.mxu0 %v282
      %400 = vmatprep.subr.mxu0 %v285
      %401 = vmatpush1.msra.mxu0 %v284
      %402 = vmatprep.subr.mxu0 0.0
      %403 = vmatpush1.msra.mxu0 0.0
      %404 = vmatprep.subr.mxu0 0.0
      %405 = vmatpush1.msra.mxu0 0.0
      %406 = vmatprep.subr.mxu0 0.0
      %407 = vmatpush1.msra.mxu0 0.0
      %408 = vmatprep.subr.mxu0 0.0
      %409 = vmatpush1.msra.mxu0 0.0
      %410 = vmatprep.subr.mxu0 0.0
      %411 = vmatpush1.msra.mxu0 0.0
      %412 = vmatprep.subr.mxu0 0.0
      %413 = vmatpush1.msra.mxu0 0.0
      %414 = vmatprep.subr.mxu0 0.0
      %415 = vmatpush1.msra.mxu0 0.0
      %416 = vmatprep.subr.mxu0 0.0
      %417 = vmatpush1.msra.mxu0 0.0
      %418 = vmatprep.subr.mxu0 0.0
      %419 = vmatpush1.msra.mxu0 0.0
      %420 = vmatprep.subr.mxu0 0.0
      %421 = vmatpush1.msra.mxu0 0.0
      %422 = vmatprep.subr.mxu0 0.0
      %423 = vmatpush1.msra.mxu0 0.0
      %424 = vmatprep.subr.mxu0 0.0
      %425 = vmatpush1.msra.mxu0 0.0
      %426 = vmatprep.subr.mxu0 0.0
      %427 = vmatpush1.msra.mxu0 0.0
      %428 = vmatprep.subr.mxu0 0.0
      %429 = vmatpush1.msra.mxu0 0.0
      %430 = vmatprep.subr.mxu0 0.0
      %431 = vmatpush1.msra.mxu0 0.0
      %432 = vmatprep.subr.mxu0 0.0
      %433 = vmatpush1.msra.mxu0 0.0
      %434 = vmatprep.subr.mxu0 0.0
      %435 = vmatpush1.msra.mxu0 0.0
      %436 = vmatprep.subr.mxu0 0.0
      %437 = vmatpush1.msra.mxu0 0.0
      %438 = vmatprep.subr.mxu0 0.0
      %439 = vmatpush1.msra.mxu0 0.0
      %440 = vmatprep.subr.mxu0 0.0
      %441 = vmatpush1.msra.mxu0 0.0
      %442 = vmatprep.subr.mxu0 0.0
      %443 = vmatpush1.msra.mxu0 0.0
      %444 = vmatprep.subr.mxu0 0.0
      %445 = vmatpush1.msra.mxu0 0.0
      %446 = vmatprep.subr.mxu0 0.0
      %447 = vmatpush1.msra.mxu0 0.0
      %448 = vmatprep.subr.mxu0 0.0
      %449 = vmatpush1.msra.mxu0 0.0
      %450 = vmatprep.subr.mxu0 0.0
      %451 = vmatpush1.msra.mxu0 0.0
      %452 = vmatprep.subr.mxu0 0.0
      %453 = vmatpush1.msra.mxu0 0.0
      %454 = vmatprep.subr.mxu0 0.0
      %455 = vmatpush1.msra.mxu0 0.0
      %456 = vmatprep.subr.mxu0 0.0
      %457 = vmatpush1.msra.mxu0 0.0
      %458 = vmatprep.subr.mxu0 0.0
      %459 = vmatpush1.msra.mxu0 0.0
      %460 = vmatprep.mubr.f32.mxu0 0.0
      %461 = vmatmul.mubr.f32.gmra.mrb[0].mxu0 %v301
      %v462 = vpop.f32.mrb[0].mxu0
      %v463 = vadd.f32 %v292, %v462
      %v464 = vpop.f32.mrb[0].mxu0
      %v465 = vadd.f32 %v296, %v464
      %466 = vmatprep.mubr.f32.mxu0 0.0
      %467 = vmatmul.mubr.f32.gmra.mrb[0].mxu0 %v304
      %v468 = vpop.f32.mrb[0].mxu0
      %v469 = vadd.f32 %v292, %v468
      %v470 = vpop.f32.mrb[0].mxu0
      %v471 = vadd.f32 %v296, %v470
      %472 = vmatprep.mubr.f32.mxu0 0.0
      %473 = vmatmul.mubr.f32.gmra.mrb[0].mxu0 %v307
      %v474 = vpop.f32.mrb[0].mxu0
      %v475 = vadd.f32 %v292, %v474
      %v476 = vpop.f32.mrb[0].mxu0
      %v477 = vadd.f32 %v296, %v476
      %478 = vmatprep.mubr.f32.mxu0 0.0
      %479 = vmatmul.mubr.f32.gmra.mrb[0].mxu0 %v310
      %v480 = vpop.f32.mrb[0].mxu0
      %v481 = vadd.f32 %v292, %v480
      %v482 = vpop.f32.mrb[0].mxu0
      %v483 = vadd.f32 %v296, %v482
      %484 = vmatprep.mubr.f32.mxu0 0.0
      %485 = vmatmul.mubr.f32.gmra.mrb[0].mxu0 %v313
      %v486 = vpop.f32.mrb[0].mxu0
      %v487 = vadd.f32 %v292, %v486
      %v488 = vpop.f32.mrb[0].mxu0
      %v489 = vadd.f32 %v296, %v488
      %490 = vmatprep.mubr.f32.mxu0 0.0
      %491 = vmatmul.mubr.f32.gmra.mrb[0].mxu0 %v316
      %v492 = vpop.f32.mrb[0].mxu0
      %v493 = vadd.f32 %v292, %v492
      %v494 = vpop.f32.mrb[0].mxu0
      %v495 = vadd.f32 %v296, %v494
      %496 = vmatprep.mubr.f32.mxu0 0.0
      %497 = vmatmul.mubr.f32.gmra.mrb[0].mxu0 %v319
      %v498 = vpop.f32.mrb[0].mxu0
      %v499 = vadd.f32 %v292, %v498
      %v500 = vpop.f32.mrb[0].mxu0
      %v501 = vadd.f32 %v296, %v500
      %502 = vmatprep.mubr.f32.mxu0 0.0
      %503 = vmatmul.mubr.f32.gmra.mrb[0].mxu0 %v322
      %v504 = vpop.f32.mrb[0].mxu0
      %v505 = vadd.f32 %v292, %v504
      %v506 = vpop.f32.mrb[0].mxu0
      %v507 = vadd.f32 %v296, %v506
      %508 = vmatprep.mubr.f32.mxu0 0.0
      %509 = vmatmul.mubr.f32.gmra.mrb[0].mxu0 %v325
      %v510 = vpop.f32.mrb[0].mxu0
      %v511 = vadd.f32 %v292, %v510
      %v512 = vpop.f32.mrb[0].mxu0
      %v513 = vadd.f32 %v296, %v512
      %514 = vmatprep.mubr.f32.mxu0 0.0
      %515 = vmatmul.mubr.f32.gmra.mrb[0].mxu0 %v328
      %v516 = vpop.f32.mrb[0].mxu0
      %v517 = vadd.f32 %v292, %v516
      %v518 = vpop.f32.mrb[0].mxu0
      %v519 = vadd.f32 %v296, %v518
      %520 = vmatprep.mubr.f32.mxu0 0.0
      %521 = vmatmul.mubr.f32.gmra.mrb[0].mxu0 %v331
      %v522 = vpop.f32.mrb[0].mxu0
      %v523 = vadd.f32 %v292, %v522
      %v524 = vpop.f32.mrb[0].mxu0
      %v525 = vadd.f32 %v296, %v524
      %526 = vmatprep.mubr.f32.mxu0 0.0
      %527 = vmatmul.mubr.f32.gmra.mrb[0].mxu0 %v334
      %v528 = vpop.f32.mrb[0].mxu0
      %v529 = vadd.f32 %v292, %v528
      %v530 = vpop.f32.mrb[0].mxu0
      %v531 = vadd.f32 %v296, %v530
      %532 = vmatprep.mubr.f32.mxu0 0.0
      %533 = vmatmul.mubr.f32.gmra.mrb[0].mxu0 %v337
      %v534 = vpop.f32.mrb[0].mxu0
      %v535 = vadd.f32 %v292, %v534
      %v536 = vpop.f32.mrb[0].mxu0
      %v537 = vadd.f32 %v296, %v536
      %538 = vmatprep.mubr.f32.mxu0 0.0
      %539 = vmatmul.mubr.f32.gmra.mrb[0].mxu0 %v340
      %v540 = vpop.f32.mrb[0].mxu0
      %v541 = vadd.f32 %v292, %v540
      %v542 = vpop.f32.mrb[0].mxu0
      %v543 = vadd.f32 %v296, %v542
      %544 = vmatprep.mubr.f32.mxu0 0.0
      %545 = vmatmul.mubr.f32.gmra.mrb[0].mxu0 %v343
      %v546 = vpop.f32.mrb[0].mxu0
      %v547 = vadd.f32 %v292, %v546
      %v548 = vpop.f32.mrb[0].mxu0
      %v549 = vadd.f32 %v296, %v548
      %550 = vmatprep.mubr.f32.mxu0 0.0
      %551 = vmatmul.mubr.f32.gmra.mrb[0].mxu0 %v346
      %v552 = vpop.f32.mrb[0].mxu0
      %v553 = vadd.f32 %v292, %v552
      %v554 = vpop.f32.mrb[0].mxu0
      %v555 = vadd.f32 %v296, %v554
      %556 = vmatprep.mubr.f32.mxu0 0.0
      %557 = vmatmul.mubr.f32.gmra.mrb[0].mxu0 %v349
      %v558 = vpop.f32.mrb[0].mxu0
      %v559 = vadd.f32 %v292, %v558
      %v560 = vpop.f32.mrb[0].mxu0
      %v561 = vadd.f32 %v296, %v560
      %562 = vmatprep.mubr.f32.mxu0 0.0
      %563 = vmatmul.mubr.f32.gmra.mrb[0].mxu0 %v352
      %v564 = vpop.f32.mrb[0].mxu0
      %v565 = vadd.f32 %v292, %v564
      %v566 = vpop.f32.mrb[0].mxu0
      %v567 = vadd.f32 %v296, %v566
      %568 = vmatprep.mubr.f32.mxu0 0.0
      %569 = vmatmul.mubr.f32.gmra.mrb[0].mxu0 %v355
      %v570 = vpop.f32.mrb[0].mxu0
      %v571 = vadd.f32 %v292, %v570
      %v572 = vpop.f32.mrb[0].mxu0
      %v573 = vadd.f32 %v296, %v572
      %574 = vmatprep.mubr.f32.mxu0 0.0
      %575 = vmatmul.mubr.f32.gmra.mrb[0].mxu0 %v358
      %v576 = vpop.f32.mrb[0].mxu0
      %v577 = vadd.f32 %v292, %v576
      %v578 = vpop.f32.mrb[0].mxu0
      %v579 = vadd.f32 %v296, %v578
      %580 = vmatprep.mubr.f32.mxu0 0.0
      %581 = vmatmul.mubr.f32.gmra.mrb[0].mxu0 %v361
      %v582 = vpop.f32.mrb[0].mxu0
      %v583 = vadd.f32 %v292, %v582
      %v584 = vpop.f32.mrb[0].mxu0
      %v585 = vadd.f32 %v296, %v584
      %586 = vmatprep.mubr.f32.mxu0 0.0
      %587 = vmatmul.mubr.f32.gmra.mrb[0].mxu0 %v364
      %v588 = vpop.f32.mrb[0].mxu0
      %v589 = vadd.f32 %v292, %v588
      %v590 = vpop.f32.mrb[0].mxu0
      %v591 = vadd.f32 %v296, %v590
      %592 = vmatprep.mubr.f32.mxu0 0.0
      %593 = vmatmul.mubr.f32.gmra.mrb[0].mxu0 %v367
      %v594 = vpop.f32.mrb[0].mxu0
      %v595 = vadd.f32 %v292, %v594
      %v596 = vpop.f32.mrb[0].mxu0
      %v597 = vadd.f32 %v296, %v596
      %598 = vmatprep.mubr.f32.mxu0 0.0
      %599 = vmatmul.mubr.f32.gmra.mrb[0].mxu0 %v370
      %v600 = vpop.f32.mrb[0].mxu0
      %v601 = vadd.f32 %v292, %v600
      %v602 = vpop.f32.mrb[0].mxu0
      %v603 = vadd.f32 %v296, %v602
      %604 = vmatprep.mubr.f32.mxu0 0.0
      %605 = vmatmul.mubr.f32.gmra.mrb[0].mxu0 %v373
      %v606 = vpop.f32.mrb[0].mxu0
      %v607 = vadd.f32 %v292, %v606
      %v608 = vpop.f32.mrb[0].mxu0
      %v609 = vadd.f32 %v296, %v608
      %610 = vmatprep.mubr.f32.mxu0 0.0
      %611 = vmatmul.mubr.f32.gmra.mrb[0].mxu0 %v376
      %v612 = vpop.f32.mrb[0].mxu0
      %v613 = vadd.f32 %v292, %v612
      %v614 = vpop.f32.mrb[0].mxu0
      %v615 = vadd.f32 %v296, %v614
      %616 = vmatprep.mubr.f32.mxu0 0.0
      %617 = vmatmul.mubr.f32.gmra.mrb[0].mxu0 %v379
      %v618 = vpop.f32.mrb[0].mxu0
      %v619 = vadd.f32 %v292, %v618
      %v620 = vpop.f32.mrb[0].mxu0
      %v621 = vadd.f32 %v296, %v620
      %622 = vmatprep.mubr.f32.mxu0 0.0
      %623 = vmatmul.mubr.f32.gmra.mrb[0].mxu0 %v382
      %v624 = vpop.f32.mrb[0].mxu0
      %v625 = vadd.f32 %v292, %v624
      %v626 = vpop.f32.mrb[0].mxu0
      %v627 = vadd.f32 %v296, %v626
      %628 = vmatprep.mubr.f32.mxu0 0.0
      %629 = vmatmul.mubr.f32.gmra.mrb[0].mxu0 %v385
      %v630 = vpop.f32.mrb[0].mxu0
      %v631 = vadd.f32 %v292, %v630
      %v632 = vpop.f32.mrb[0].mxu0
      %v633 = vadd.f32 %v296, %v632
      %634 = vmatprep.mubr.f32.mxu0 0.0
      %635 = vmatmul.mubr.f32.gmra.mrb[0].mxu0 %v388
      %v636 = vpop.f32.mrb[0].mxu0
      %v637 = vadd.f32 %v292, %v636
      %v638 = vpop.f32.mrb[0].mxu0
      %v639 = vadd.f32 %v296, %v638
      %640 = vmatprep.mubr.f32.mxu0 0.0
      %641 = vmatmul.mubr.f32.gmra.mrb[0].mxu0 %v391
      %v642 = vpop.f32.mrb[0].mxu0
      %v643 = vadd.f32 %v292, %v642
      %v644 = vpop.f32.mrb[0].mxu0
      %v645 = vadd.f32 %v296, %v644
      %646 = vmatprep.mubr.f32.mxu0 0.0
      %647 = vmatmul.mubr.f32.gmra.mrb[0].mxu0 %v394
      %v648 = vpop.f32.mrb[0].mxu0
      %v649 = vadd.f32 %v292, %v648
      %v650 = vpop.f32.mrb[0].mxu0
      %v651 = vadd.f32 %v296, %v650
      %652 = vdwg.mxu0
      %v653 = vmax.f32 %v463, 0.0
      %v654 = vmax.f32 %v465, 0.0
      %v655 = vmax.f32 %v469, 0.0
      %v656 = vmax.f32 %v471, 0.0
      %v657 = vmax.f32 %v475, 0.0
      %v658 = vmax.f32 %v477, 0.0
      %v659 = vmax.f32 %v481, 0.0
      %v660 = vmax.f32 %v483, 0.0
      %v661 = vmax.f32 %v487, 0.0
      %v662 = vmax.f32 %v489, 0.0
      %v663 = vmax.f32 %v493, 0.0
      %v664 = vmax.f32 %v495, 0.0
      %v665 = vmax.f32 %v499, 0.0
      %v666 = vmax.f32 %v501, 0.0
      %v667 = vmax.f32 %v505, 0.0
      %v668 = vmax.f32 %v507, 0.0
      %v669 = vmax.f32 %v511, 0.0
      %v670 = vmax.f32 %v513, 0.0
      %v671 = vmax.f32 %v517, 0.0
      %v672 = vmax.f32 %v519, 0.0
      %v673 = vmax.f32 %v523, 0.0
      %v674 = vmax.f32 %v525, 0.0
      %v675 = vmax.f32 %v529, 0.0
      %v676 = vmax.f32 %v531, 0.0
      %v677 = vmax.f32 %v535, 0.0
      %v678 = vmax.f32 %v537, 0.0
      %v679 = vmax.f32 %v541, 0.0
      %v680 = vmax.f32 %v543, 0.0
      %v681 = vmax.f32 %v547, 0.0
      %v682 = vmax.f32 %v549, 0.0
      %v683 = vmax.f32 %v553, 0.0
      %v684 = vmax.f32 %v555, 0.0
      %v685 = vmax.f32 %v559, 0.0
      %v686 = vmax.f32 %v561, 0.0
      %v687 = vmax.f32 %v565, 0.0
      %v688 = vmax.f32 %v567, 0.0
      %v689 = vmax.f32 %v571, 0.0
      %v690 = vmax.f32 %v573, 0.0
      %v691 = vmax.f32 %v577, 0.0
      %v692 = vmax.f32 %v579, 0.0
      %v693 = vmax.f32 %v583, 0.0
      %v694 = vmax.f32 %v585, 0.0
      %v695 = vmax.f32 %v589, 0.0
      %v696 = vmax.f32 %v591, 0.0
      %v697 = vmax.f32 %v595, 0.0
      %v698 = vmax.f32 %v597, 0.0
      %v699 = vmax.f32 %v601, 0.0
      %v700 = vmax.f32 %v603, 0.0
      %v701 = vmax.f32 %v607, 0.0
      %v702 = vmax.f32 %v609, 0.0
      %v703 = vmax.f32 %v613, 0.0
      %v704 = vmax.f32 %v615, 0.0
      %v705 = vmax.f32 %v619, 0.0
      %v706 = vmax.f32 %v621, 0.0
      %v707 = vmax.f32 %v625, 0.0
      %v708 = vmax.f32 %v627, 0.0
      %v709 = vmax.f32 %v631, 0.0
      %v710 = vmax.f32 %v633, 0.0
      %v711 = vmax.f32 %v637, 0.0
      %v712 = vmax.f32 %v639, 0.0
      %v713 = vmax.f32 %v643, 0.0
      %v714 = vmax.f32 %v645, 0.0
      %v715 = vmax.f32 %v649, 0.0
      %v716 = vmax.f32 %v651, 0.0
      %v717 = vld [vmem:[%s3 + $0x40] sm:$0xff]
      %v718 = vld [vmem:[%s3 + $0x50] sm:$0xff]
      %v719 = vld [vmem:[%s3 + $0x60] sm:$0xff]
      %v720 = vld [vmem:[%s3 + $0x70] sm:$0xff]
      %v721 = vld [vmem:[%s3 + $0x80] sm:$0xff]
      %v722 = vld [vmem:[%s3 + $0x90] sm:$0xff]
      %v723 = vld [vmem:[%s3 + $0xa0] sm:$0xff]
      %v724 = vld [vmem:[%s3 + $0xb0] sm:$0xff]
      %v725 = vld [vmem:[%s3 + $0xc0] sm:$0xff]
      %v726 = vld [vmem:[%s3 + $0xd0] sm:$0xff]
      %v727 = vld [vmem:[%s3 + $0xe0] sm:$0xff]
      %v728 = vld [vmem:[%s3 + $0xf0] sm:$0xff]
      %v729 = vld [vmem:[%s3 + $0x100] sm:$0xff]
      %v730 = vld [vmem:[%s3 + $0x110] sm:$0xff]
      %v731 = vld [vmem:[%s3 + $0x120] sm:$0xff]
      %v732 = vld [vmem:[%s3 + $0x130] sm:$0xff]
      %v733 = vld [vmem:[%s3 + $0x140] sm:$0xff]
      %v734 = vld [vmem:[%s3 + $0x150] sm:$0xff]
      %v735 = vld [vmem:[%s3 + $0x160] sm:$0xff]
      %v736 = vld [vmem:[%s3 + $0x170] sm:$0xff]
      %v737 = vld [vmem:[%s3 + $0x180] ss:$0 sm:$0xff]
      %vm738 = vcmask 261120
      %v740 = vsel %vm738, %v654, 0
      %v743 = vsel %vm738, %v656, 0
      %v746 = vsel %vm738, %v658, 0
      %v749 = vsel %vm738, %v660, 0
      %v752 = vsel %vm738, %v662, 0
      %v755 = vsel %vm738, %v664, 0
      %v758 = vsel %vm738, %v666, 0
      %v761 = vsel %vm738, %v668, 0
      %v764 = vsel %vm738, %v670, 0
      %v767 = vsel %vm738, %v672, 0
      %v770 = vsel %vm738, %v674, 0
      %v773 = vsel %vm738, %v676, 0
      %v776 = vsel %vm738, %v678, 0
      %v779 = vsel %vm738, %v680, 0
      %v782 = vsel %vm738, %v682, 0
      %v785 = vsel %vm738, %v684, 0
      %v788 = vsel %vm738, %v686, 0
      %v791 = vsel %vm738, %v688, 0
      %v794 = vsel %vm738, %v690, 0
      %v797 = vsel %vm738, %v692, 0
      %v800 = vsel %vm738, %v694, 0
      %v803 = vsel %vm738, %v696, 0
      %v806 = vsel %vm738, %v698, 0
      %v809 = vsel %vm738, %v700, 0
      %v812 = vsel %vm738, %v702, 0
      %v815 = vsel %vm738, %v704, 0
      %v818 = vsel %vm738, %v706, 0
      %v821 = vsel %vm738, %v708, 0
      %v824 = vsel %vm738, %v710, 0
      %v827 = vsel %vm738, %v712, 0
      %v830 = vsel %vm738, %v714, 0
      %v833 = vsel %vm738, %v716, 0
      %835 = vmatprep.subr.mxu0 0.0
      %836 = vmatpush1.msra.mxu0 %v717
      %837 = vmatprep.subr.mxu0 0.0
      %838 = vmatpush1.msra.mxu0 %v718
      %839 = vmatprep.subr.mxu0 0.0
      %840 = vmatpush1.msra.mxu0 %v719
      %841 = vmatprep.subr.mxu0 0.0
      %842 = vmatpush1.msra.mxu0 %v720
      %843 = vmatprep.subr.mxu0 0.0
      %844 = vmatpush1.msra.mxu0 %v721
      %845 = vmatprep.subr.mxu0 0.0
      %846 = vmatpush1.msra.mxu0 %v722
      %847 = vmatprep.subr.mxu0 0.0
      %848 = vmatpush1.msra.mxu0 %v723
      %849 = vmatprep.subr.mxu0 0.0
      %850 = vmatpush1.msra.mxu0 %v724
      %851 = vmatprep.subr.mxu0 0.0
      %852 = vmatpush1.msra.mxu0 %v725
      %853 = vmatprep.subr.mxu0 0.0
      %854 = vmatpush1.msra.mxu0 %v726
      %855 = vmatprep.subr.mxu0 0.0
      %856 = vmatpush1.msra.mxu0 %v727
      %857 = vmatprep.subr.mxu0 0.0
      %858 = vmatpush1.msra.mxu0 %v728
      %859 = vmatprep.subr.mxu0 0.0
      %860 = vmatpush1.msra.mxu0 %v729
      %861 = vmatprep.subr.mxu0 0.0
      %862 = vmatpush1.msra.mxu0 %v730
      %863 = vmatprep.subr.mxu0 0.0
      %864 = vmatpush1.msra.mxu0 %v731
      %865 = vmatprep.subr.mxu0 0.0
      %866 = vmatpush1.msra.mxu0 %v732
      %867 = vmatprep.subr.mxu0 0.0
      %868 = vmatpush1.msra.mxu0 %v733
      %869 = vmatprep.subr.mxu0 0.0
      %870 = vmatpush1.msra.mxu0 %v734
      %871 = vmatprep.subr.mxu0 0.0
      %872 = vmatpush1.msra.mxu0 %v735
      %873 = vmatprep.subr.mxu0 0.0
      %874 = vmatpush1.msra.mxu0 %v736
      %875 = vmatprep.subr.mxu0 0.0
      %876 = vmatpush1.msra.mxu0 0.0
      %877 = vmatprep.subr.mxu0 0.0
      %878 = vmatpush1.msra.mxu0 0.0
      %879 = vmatprep.subr.mxu0 0.0
      %880 = vmatpush1.msra.mxu0 0.0
      %881 = vmatprep.subr.mxu0 0.0
      %882 = vmatpush1.msra.mxu0 0.0
      %883 = vmatprep.subr.mxu0 0.0
      %884 = vmatpush1.msra.mxu0 0.0
      %885 = vmatprep.subr.mxu0 0.0
      %886 = vmatpush1.msra.mxu0 0.0
      %887 = vmatprep.subr.mxu0 0.0
      %888 = vmatpush1.msra.mxu0 0.0
      %889 = vmatprep.subr.mxu0 0.0
      %890 = vmatpush1.msra.mxu0 0.0
      %891 = vmatprep.subr.mxu0 0.0
      %892 = vmatpush1.msra.mxu0 0.0
      %893 = vmatprep.subr.mxu0 0.0
      %894 = vmatpush1.msra.mxu0 0.0
      %895 = vmatprep.subr.mxu0 0.0
      %896 = vmatpush1.msra.mxu0 0.0
      %897 = vmatprep.subr.mxu0 0.0
      %898 = vmatpush1.msra.mxu0 0.0
      %899 = vmatprep.mubr.f32.mxu0 %v740
      %900 = vmatmul.mubr.f32.gmra.mrb[0].mxu0 %v653
      %v901 = vpop.f32.mrb[0].mxu0
      %v902 = vadd.f32 %v737, %v901
      %v903 = vpop.f32.mrb[0].mxu0
      %904 = vmatprep.mubr.f32.mxu0 %v743
      %905 = vmatmul.mubr.f32.gmra.mrb[0].mxu0 %v655
      %v906 = vpop.f32.mrb[0].mxu0
      %v907 = vadd.f32 %v737, %v906
      %v908 = vpop.f32.mrb[0].mxu0
      %909 = vmatprep.mubr.f32.mxu0 %v746
      %910 = vmatmul.mubr.f32.gmra.mrb[0].mxu0 %v657
      %v911 = vpop.f32.mrb[0].mxu0
      %v912 = vadd.f32 %v737, %v911
      %v913 = vpop.f32.mrb[0].mxu0
      %914 = vmatprep.mubr.f32.mxu0 %v749
      %915 = vmatmul.mubr.f32.gmra.mrb[0].mxu0 %v659
      %v916 = vpop.f32.mrb[0].mxu0
      %v917 = vadd.f32 %v737, %v916
      %v918 = vpop.f32.mrb[0].mxu0
      %919 = vmatprep.mubr.f32.mxu0 %v752
      %920 = vmatmul.mubr.f32.gmra.mrb[0].mxu0 %v661
      %v921 = vpop.f32.mrb[0].mxu0
      %v922 = vadd.f32 %v737, %v921
      %v923 = vpop.f32.mrb[0].mxu0
      %924 = vmatprep.mubr.f32.mxu0 %v755
      %925 = vmatmul.mubr.f32.gmra.mrb[0].mxu0 %v663
      %v926 = vpop.f32.mrb[0].mxu0
      %v927 = vadd.f32 %v737, %v926
      %v928 = vpop.f32.mrb[0].mxu0
      %929 = vmatprep.mubr.f32.mxu0 %v758
      %930 = vmatmul.mubr.f32.gmra.mrb[0].mxu0 %v665
      %v931 = vpop.f32.mrb[0].mxu0
      %v932 = vadd.f32 %v737, %v931
      %v933 = vpop.f32.mrb[0].mxu0
      %934 = vmatprep.mubr.f32.mxu0 %v761
      %935 = vmatmul.mubr.f32.gmra.mrb[0].mxu0 %v667
      %v936 = vpop.f32.mrb[0].mxu0
      %v937 = vadd.f32 %v737, %v936
      %v938 = vpop.f32.mrb[0].mxu0
      %939 = vmatprep.mubr.f32.mxu0 %v764
      %940 = vmatmul.mubr.f32.gmra.mrb[0].mxu0 %v669
      %v941 = vpop.f32.mrb[0].mxu0
      %v942 = vadd.f32 %v737, %v941
      %v943 = vpop.f32.mrb[0].mxu0
      %944 = vmatprep.mubr.f32.mxu0 %v767
      %945 = vmatmul.mubr.f32.gmra.mrb[0].mxu0 %v671
      %v946 = vpop.f32.mrb[0].mxu0
      %v947 = vadd.f32 %v737, %v946
      %v948 = vpop.f32.mrb[0].mxu0
      %949 = vmatprep.mubr.f32.mxu0 %v770
      %950 = vmatmul.mubr.f32.gmra.mrb[0].mxu0 %v673
      %v951 = vpop.f32.mrb[0].mxu0
      %v952 = vadd.f32 %v737, %v951
      %v953 = vpop.f32.mrb[0].mxu0
      %954 = vmatprep.mubr.f32.mxu0 %v773
      %955 = vmatmul.mubr.f32.gmra.mrb[0].mxu0 %v675
      %v956 = vpop.f32.mrb[0].mxu0
      %v957 = vadd.f32 %v737, %v956
      %v958 = vpop.f32.mrb[0].mxu0
      %959 = vmatprep.mubr.f32.mxu0 %v776
      %960 = vmatmul.mubr.f32.gmra.mrb[0].mxu0 %v677
      %v961 = vpop.f32.mrb[0].mxu0
      %v962 = vadd.f32 %v737, %v961
      %v963 = vpop.f32.mrb[0].mxu0
      %964 = vmatprep.mubr.f32.mxu0 %v779
      %965 = vmatmul.mubr.f32.gmra.mrb[0].mxu0 %v679
      %v966 = vpop.f32.mrb[0].mxu0
      %v967 = vadd.f32 %v737, %v966
      %v968 = vpop.f32.mrb[0].mxu0
      %969 = vmatprep.mubr.f32.mxu0 %v782
      %970 = vmatmul.mubr.f32.gmra.mrb[0].mxu0 %v681
      %v971 = vpop.f32.mrb[0].mxu0
      %v972 = vadd.f32 %v737, %v971
      %v973 = vpop.f32.mrb[0].mxu0
      %974 = vmatprep.mubr.f32.mxu0 %v785
      %975 = vmatmul.mubr.f32.gmra.mrb[0].mxu0 %v683
      %v976 = vpop.f32.mrb[0].mxu0
      %v977 = vadd.f32 %v737, %v976
      %v978 = vpop.f32.mrb[0].mxu0
      %979 = vmatprep.mubr.f32.mxu0 %v788
      %980 = vmatmul.mubr.f32.gmra.mrb[0].mxu0 %v685
      %v981 = vpop.f32.mrb[0].mxu0
      %v982 = vadd.f32 %v737, %v981
      %v983 = vpop.f32.mrb[0].mxu0
      %984 = vmatprep.mubr.f32.mxu0 %v791
      %985 = vmatmul.mubr.f32.gmra.mrb[0].mxu0 %v687
      %v986 = vpop.f32.mrb[0].mxu0
      %v987 = vadd.f32 %v737, %v986
      %v988 = vpop.f32.mrb[0].mxu0
      %989 = vmatprep.mubr.f32.mxu0 %v794
      %990 = vmatmul.mubr.f32.gmra.mrb[0].mxu0 %v689
      %v991 = vpop.f32.mrb[0].mxu0
      %v992 = vadd.f32 %v737, %v991
      %v993 = vpop.f32.mrb[0].mxu0
      %994 = vmatprep.mubr.f32.mxu0 %v797
      %995 = vmatmul.mubr.f32.gmra.mrb[0].mxu0 %v691
      %v996 = vpop.f32.mrb[0].mxu0
      %v997 = vadd.f32 %v737, %v996
      %v998 = vpop.f32.mrb[0].mxu0
      %999 = vmatprep.mubr.f32.mxu0 %v800
      %1000 = vmatmul.mubr.f32.gmra.mrb[0].mxu0 %v693
      %v1001 = vpop.f32.mrb[0].mxu0
      %v1002 = vadd.f32 %v737, %v1001
      %v1003 = vpop.f32.mrb[0].mxu0
      %1004 = vmatprep.mubr.f32.mxu0 %v803
      %1005 = vmatmul.mubr.f32.gmra.mrb[0].mxu0 %v695
      %v1006 = vpop.f32.mrb[0].mxu0
      %v1007 = vadd.f32 %v737, %v1006
      %v1008 = vpop.f32.mrb[0].mxu0
      %1009 = vmatprep.mubr.f32.mxu0 %v806
      %1010 = vmatmul.mubr.f32.gmra.mrb[0].mxu0 %v697
      %v1011 = vpop.f32.mrb[0].mxu0
      %v1012 = vadd.f32 %v737, %v1011
      %v1013 = vpop.f32.mrb[0].mxu0
      %1014 = vmatprep.mubr.f32.mxu0 %v809
      %1015 = vmatmul.mubr.f32.gmra.mrb[0].mxu0 %v699
      %v1016 = vpop.f32.mrb[0].mxu0
      %v1017 = vadd.f32 %v737, %v1016
      %v1018 = vpop.f32.mrb[0].mxu0
      %1019 = vmatprep.mubr.f32.mxu0 %v812
      %1020 = vmatmul.mubr.f32.gmra.mrb[0].mxu0 %v701
      %v1021 = vpop.f32.mrb[0].mxu0
      %v1022 = vadd.f32 %v737, %v1021
      %v1023 = vpop.f32.mrb[0].mxu0
      %1024 = vmatprep.mubr.f32.mxu0 %v815
      %1025 = vmatmul.mubr.f32.gmra.mrb[0].mxu0 %v703
      %v1026 = vpop.f32.mrb[0].mxu0
      %v1027 = vadd.f32 %v737, %v1026
      %v1028 = vpop.f32.mrb[0].mxu0
      %1029 = vmatprep.mubr.f32.mxu0 %v818
      %1030 = vmatmul.mubr.f32.gmra.mrb[0].mxu0 %v705
      %v1031 = vpop.f32.mrb[0].mxu0
      %v1032 = vadd.f32 %v737, %v1031
      %v1033 = vpop.f32.mrb[0].mxu0
      %1034 = vmatprep.mubr.f32.mxu0 %v821
      %1035 = vmatmul.mubr.f32.gmra.mrb[0].mxu0 %v707
      %v1036 = vpop.f32.mrb[0].mxu0
      %v1037 = vadd.f32 %v737, %v1036
      %v1038 = vpop.f32.mrb[0].mxu0
      %1039 = vmatprep.mubr.f32.mxu0 %v824
      %1040 = vmatmul.mubr.f32.gmra.mrb[0].mxu0 %v709
      %v1041 = vpop.f32.mrb[0].mxu0
      %v1042 = vadd.f32 %v737, %v1041
      %v1043 = vpop.f32.mrb[0].mxu0
      %1044 = vmatprep.mubr.f32.mxu0 %v827
      %1045 = vmatmul.mubr.f32.gmra.mrb[0].mxu0 %v711
      %v1046 = vpop.f32.mrb[0].mxu0
      %v1047 = vadd.f32 %v737, %v1046
      %v1048 = vpop.f32.mrb[0].mxu0
      %1049 = vmatprep.mubr.f32.mxu0 %v830
      %1050 = vmatmul.mubr.f32.gmra.mrb[0].mxu0 %v713
      %v1051 = vpop.f32.mrb[0].mxu0
      %v1052 = vadd.f32 %v737, %v1051
      %v1053 = vpop.f32.mrb[0].mxu0
      %1054 = vmatprep.mubr.f32.mxu0 %v833
      %1055 = vmatmul.mubr.f32.gmra.mrb[0].mxu0 %v715
      %v1056 = vpop.f32.mrb[0].mxu0
      %v1057 = vadd.f32 %v737, %v1056
      %v1058 = vpop.f32.mrb[0].mxu0
      %1059 = vdwg.mxu0
      %v1060 = vmax.f32 %v902, 0.0
      %v1061 = vmax.f32 %v907, 0.0
      %v1062 = vmax.f32 %v912, 0.0
      %v1063 = vmax.f32 %v917, 0.0
      %v1064 = vmax.f32 %v922, 0.0
      %v1065 = vmax.f32 %v927, 0.0
      %v1066 = vmax.f32 %v932, 0.0
      %v1067 = vmax.f32 %v937, 0.0
      %v1068 = vmax.f32 %v942, 0.0
      %v1069 = vmax.f32 %v947, 0.0
      %v1070 = vmax.f32 %v952, 0.0
      %v1071 = vmax.f32 %v957, 0.0
      %v1072 = vmax.f32 %v962, 0.0
      %v1073 = vmax.f32 %v967, 0.0
      %v1074 = vmax.f32 %v972, 0.0
      %v1075 = vmax.f32 %v977, 0.0
      %v1076 = vmax.f32 %v982, 0.0
      %v1077 = vmax.f32 %v987, 0.0
      %v1078 = vmax.f32 %v992, 0.0
      %v1079 = vmax.f32 %v997, 0.0
      %v1080 = vmax.f32 %v1002, 0.0
      %v1081 = vmax.f32 %v1007, 0.0
      %v1082 = vmax.f32 %v1012, 0.0
      %v1083 = vmax.f32 %v1017, 0.0
      %v1084 = vmax.f32 %v1022, 0.0
      %v1085 = vmax.f32 %v1027, 0.0
      %v1086 = vmax.f32 %v1032, 0.0
      %v1087 = vmax.f32 %v1037, 0.0
      %v1088 = vmax.f32 %v1042, 0.0
      %v1089 = vmax.f32 %v1047, 0.0
      %v1090 = vmax.f32 %v1052, 0.0
      %v1091 = vmax.f32 %v1057, 0.0
      %v1092 = vld [vmem:[%s3 + $0x270] ss:$0 sm:$0xff]
      %v1093 = vmul.f32 %v1060, %v1092
      %v1094 = vmul.f32 %v1062, %v1092
      %v1095 = vmul.f32 %v1064, %v1092
      %v1096 = vmul.f32 %v1066, %v1092
      %v1097 = vmul.f32 %v1068, %v1092
      %v1098 = vmul.f32 %v1070, %v1092
      %v1099 = vmul.f32 %v1072, %v1092
      %v1100 = vmul.f32 %v1074, %v1092
      %v1101 = vmul.f32 %v1076, %v1092
      %v1102 = vmul.f32 %v1078, %v1092
      %v1103 = vmul.f32 %v1080, %v1092
      %v1104 = vmul.f32 %v1082, %v1092
      %v1105 = vmul.f32 %v1084, %v1092
      %v1106 = vmul.f32 %v1086, %v1092
      %v1107 = vmul.f32 %v1088, %v1092
      %v1108 = vmul.f32 %v1090, %v1092
      %vm1109 = vcmask 64512
      %v1110 = vsel %vm1109, %v1093, 0.0
      %1111 = vadd.xlane.f32.xlu0 %v1110
      %v1112 = vpop.xlane.xlu0 %1111
      %v1113 = vsel %vm1109, %v1094, 0.0
      %1114 = vadd.xlane.f32.xlu0 %v1113
      %v1115 = vpop.xlane.xlu0 %1114
      %v1116 = vsel %vm1109, %v1095, 0.0
      %1117 = vadd.xlane.f32.xlu0 %v1116
      %v1118 = vpop.xlane.xlu0 %1117
      %v1119 = vsel %vm1109, %v1096, 0.0
      %1120 = vadd.xlane.f32.xlu0 %v1119
      %v1121 = vpop.xlane.xlu0 %1120
      %v1122 = vsel %vm1109, %v1097, 0.0
      %1123 = vadd.xlane.f32.xlu0 %v1122
      %v1124 = vpop.xlane.xlu0 %1123
      %v1125 = vsel %vm1109, %v1098, 0.0
      %1126 = vadd.xlane.f32.xlu0 %v1125
      %v1127 = vpop.xlane.xlu0 %1126
      %v1128 = vsel %vm1109, %v1099, 0.0
      %1129 = vadd.xlane.f32.xlu0 %v1128
      %v1130 = vpop.xlane.xlu0 %1129
      %v1131 = vsel %vm1109, %v1100, 0.0
      %1132 = vadd.xlane.f32.xlu0 %v1131
      %v1133 = vpop.xlane.xlu0 %1132
      %v1134 = vsel %vm1109, %v1101, 0.0
      %1135 = vadd.xlane.f32.xlu0 %v1134
      %v1136 = vpop.xlane.xlu0 %1135
      %v1137 = vsel %vm1109, %v1102, 0.0
      %1138 = vadd.xlane.f32.xlu0 %v1137
      %v1139 = vpop.xlane.xlu0 %1138
      %v1140 = vsel %vm1109, %v1103, 0.0
      %1141 = vadd.xlane.f32.xlu0 %v1140
      %v1142 = vpop.xlane.xlu0 %1141
      %v1143 = vsel %vm1109, %v1104, 0.0
      %1144 = vadd.xlane.f32.xlu0 %v1143
      %v1145 = vpop.xlane.xlu0 %1144
      %v1146 = vsel %vm1109, %v1105, 0.0
      %1147 = vadd.xlane.f32.xlu0 %v1146
      %v1148 = vpop.xlane.xlu0 %1147
      %v1149 = vsel %vm1109, %v1106, 0.0
      %1150 = vadd.xlane.f32.xlu0 %v1149
      %v1151 = vpop.xlane.xlu0 %1150
      %v1152 = vsel %vm1109, %v1107, 0.0
      %1153 = vadd.xlane.f32.xlu0 %v1152
      %v1154 = vpop.xlane.xlu0 %1153
      %v1155 = vsel %vm1109, %v1108, 0.0
      %1156 = vadd.xlane.f32.xlu0 %v1155
      %v1157 = vpop.xlane.xlu0 %1156
      %v1158 = vld [vmem:[%s3 + $0x280] ss:$0 sm:$0xff]
      %v1159 = vadd.f32 %v1112, %v1158
      %v1160 = vadd.f32 %v1115, %v1158
      %v1161 = vadd.f32 %v1118, %v1158
      %v1162 = vadd.f32 %v1121, %v1158
      %v1163 = vadd.f32 %v1124, %v1158
      %v1164 = vadd.f32 %v1127, %v1158
      %v1165 = vadd.f32 %v1130, %v1158
      %v1166 = vadd.f32 %v1133, %v1158
      %v1167 = vadd.f32 %v1136, %v1158
      %v1168 = vadd.f32 %v1139, %v1158
      %v1169 = vadd.f32 %v1142, %v1158
      %v1170 = vadd.f32 %v1145, %v1158
      %v1171 = vadd.f32 %v1148, %v1158
      %v1172 = vadd.f32 %v1151, %v1158
      %v1173 = vadd.f32 %v1154, %v1158
      %v1174 = vadd.f32 %v1157, %v1158
      %v1175 = vld [vmem:[%s3 + $0x190] sm:$0xff]
      %v1176 = vld [vmem:[%s3 + $0x1a0] sm:$0xff]
      %v1177 = vld [vmem:[%s3 + $0x1b0] sm:$0xff]
      %v1178 = vld [vmem:[%s3 + $0x1c0] sm:$0xff]
      %v1179 = vld [vmem:[%s3 + $0x1d0] sm:$0xff]
      %v1180 = vld [vmem:[%s3 + $0x1e0] sm:$0xff]
      %v1181 = vld [vmem:[%s3 + $0x1f0] sm:$0xff]
      %v1182 = vld [vmem:[%s3 + $0x200] sm:$0xff]
      %v1183 = vld [vmem:[%s3 + $0x210] ss:$0 sm:$0xff]
      %1216 = vrot.lane.b32.xlu0 %v1060, 120
      %v1217 = vpop.permute.xlu0 %1216
      %1218 = vrot.lane.b32.xlu0 %v1061, 120
      %v1219 = vpop.permute.xlu0 %1218
      %1220 = vrot.lane.b32.xlu0 %v1062, 120
      %v1221 = vpop.permute.xlu0 %1220
      %1222 = vrot.lane.b32.xlu0 %v1063, 120
      %v1223 = vpop.permute.xlu0 %1222
      %1224 = vrot.lane.b32.xlu0 %v1064, 120
      %v1225 = vpop.permute.xlu0 %1224
      %1226 = vrot.lane.b32.xlu0 %v1065, 120
      %v1227 = vpop.permute.xlu0 %1226
      %1228 = vrot.lane.b32.xlu0 %v1066, 120
      %v1229 = vpop.permute.xlu0 %1228
      %1230 = vrot.lane.b32.xlu0 %v1067, 120
      %v1231 = vpop.permute.xlu0 %1230
      %1232 = vrot.lane.b32.xlu0 %v1068, 120
      %v1233 = vpop.permute.xlu0 %1232
      %1234 = vrot.lane.b32.xlu0 %v1069, 120
      %v1235 = vpop.permute.xlu0 %1234
      %1236 = vrot.lane.b32.xlu0 %v1070, 120
      %v1237 = vpop.permute.xlu0 %1236
      %1238 = vrot.lane.b32.xlu0 %v1071, 120
      %v1239 = vpop.permute.xlu0 %1238
      %1240 = vrot.lane.b32.xlu0 %v1072, 120
      %v1241 = vpop.permute.xlu0 %1240
      %1242 = vrot.lane.b32.xlu0 %v1073, 120
      %v1243 = vpop.permute.xlu0 %1242
      %1244 = vrot.lane.b32.xlu0 %v1074, 120
      %v1245 = vpop.permute.xlu0 %1244
      %1246 = vrot.lane.b32.xlu0 %v1075, 120
      %v1247 = vpop.permute.xlu0 %1246
      %1248 = vrot.lane.b32.xlu0 %v1076, 120
      %v1249 = vpop.permute.xlu0 %1248
      %1250 = vrot.lane.b32.xlu0 %v1077, 120
      %v1251 = vpop.permute.xlu0 %1250
      %1252 = vrot.lane.b32.xlu0 %v1078, 120
      %v1253 = vpop.permute.xlu0 %1252
      %1254 = vrot.lane.b32.xlu0 %v1079, 120
      %v1255 = vpop.permute.xlu0 %1254
      %1256 = vrot.lane.b32.xlu0 %v1080, 120
      %v1257 = vpop.permute.xlu0 %1256
      %1258 = vrot.lane.b32.xlu0 %v1081, 120
      %v1259 = vpop.permute.xlu0 %1258
      %1260 = vrot.lane.b32.xlu0 %v1082, 120
      %v1261 = vpop.permute.xlu0 %1260
      %1262 = vrot.lane.b32.xlu0 %v1083, 120
      %v1263 = vpop.permute.xlu0 %1262
      %1264 = vrot.lane.b32.xlu0 %v1084, 120
      %v1265 = vpop.permute.xlu0 %1264
      %1266 = vrot.lane.b32.xlu0 %v1085, 120
      %v1267 = vpop.permute.xlu0 %1266
      %1268 = vrot.lane.b32.xlu0 %v1086, 120
      %v1269 = vpop.permute.xlu0 %1268
      %1270 = vrot.lane.b32.xlu0 %v1087, 120
      %v1271 = vpop.permute.xlu0 %1270
      %1272 = vrot.lane.b32.xlu0 %v1088, 120
      %v1273 = vpop.permute.xlu0 %1272
      %1274 = vrot.lane.b32.xlu0 %v1089, 120
      %v1275 = vpop.permute.xlu0 %1274
      %1276 = vrot.lane.b32.xlu0 %v1090, 120
      %v1277 = vpop.permute.xlu0 %1276
      %1278 = vrot.lane.b32.xlu0 %v1091, 120
      %v1279 = vpop.permute.xlu0 %1278
      %vm1280 = vcmask 523264
      %v1281 = vsel %vm1280, %v1217, 0
      %v1283 = vsel %vm1280, %v1219, 0
      %v1285 = vsel %vm1280, %v1221, 0
      %v1287 = vsel %vm1280, %v1223, 0
      %v1289 = vsel %vm1280, %v1225, 0
      %v1291 = vsel %vm1280, %v1227, 0
      %v1293 = vsel %vm1280, %v1229, 0
      %v1295 = vsel %vm1280, %v1231, 0
      %v1297 = vsel %vm1280, %v1233, 0
      %v1299 = vsel %vm1280, %v1235, 0
      %v1301 = vsel %vm1280, %v1237, 0
      %v1303 = vsel %vm1280, %v1239, 0
      %v1305 = vsel %vm1280, %v1241, 0
      %v1307 = vsel %vm1280, %v1243, 0
      %v1309 = vsel %vm1280, %v1245, 0
      %v1311 = vsel %vm1280, %v1247, 0
      %v1313 = vsel %vm1280, %v1249, 0
      %v1315 = vsel %vm1280, %v1251, 0
      %v1317 = vsel %vm1280, %v1253, 0
      %v1319 = vsel %vm1280, %v1255, 0
      %v1321 = vsel %vm1280, %v1257, 0
      %v1323 = vsel %vm1280, %v1259, 0
      %v1325 = vsel %vm1280, %v1261, 0
      %v1327 = vsel %vm1280, %v1263, 0
      %v1329 = vsel %vm1280, %v1265, 0
      %v1331 = vsel %vm1280, %v1267, 0
      %v1333 = vsel %vm1280, %v1269, 0
      %v1335 = vsel %vm1280, %v1271, 0
      %v1337 = vsel %vm1280, %v1273, 0
      %v1339 = vsel %vm1280, %v1275, 0
      %v1341 = vsel %vm1280, %v1277, 0
      %v1343 = vsel %vm1280, %v1279, 0
      %1345 = vmatprep.subr.mxu0 0.0
      %1346 = vmatpush1.msra.mxu0 %v1175
      %1347 = vmatprep.subr.mxu0 0.0
      %1348 = vmatpush1.msra.mxu0 %v1176
      %1349 = vmatprep.subr.mxu0 0.0
      %1350 = vmatpush1.msra.mxu0 %v1177
      %1351 = vmatprep.subr.mxu0 0.0
      %1352 = vmatpush1.msra.mxu0 %v1178
      %1353 = vmatprep.subr.mxu0 0.0
      %1354 = vmatpush1.msra.mxu0 %v1179
      %1355 = vmatprep.subr.mxu0 0.0
      %1356 = vmatpush1.msra.mxu0 %v1180
      %1357 = vmatprep.subr.mxu0 0.0
      %1358 = vmatpush1.msra.mxu0 %v1181
      %1359 = vmatprep.subr.mxu0 0.0
      %1360 = vmatpush1.msra.mxu0 %v1182
      %1361 = vmatprep.subr.mxu0 0.0
      %1362 = vmatpush1.msra.mxu0 0.0
      %1363 = vmatprep.subr.mxu0 0.0
      %1364 = vmatpush1.msra.mxu0 0.0
      %1365 = vmatprep.subr.mxu0 0.0
      %1366 = vmatpush1.msra.mxu0 0.0
      %1367 = vmatprep.subr.mxu0 0.0
      %1368 = vmatpush1.msra.mxu0 0.0
      %1369 = vmatprep.subr.mxu0 0.0
      %1370 = vmatpush1.msra.mxu0 0.0
      %1371 = vmatprep.subr.mxu0 0.0
      %1372 = vmatpush1.msra.mxu0 0.0
      %1373 = vmatprep.subr.mxu0 0.0
      %1374 = vmatpush1.msra.mxu0 0.0
      %1375 = vmatprep.subr.mxu0 0.0
      %1376 = vmatpush1.msra.mxu0 0.0
      %1377 = vmatprep.subr.mxu0 0.0
      %1378 = vmatpush1.msra.mxu0 0.0
      %1379 = vmatprep.subr.mxu0 0.0
      %1380 = vmatpush1.msra.mxu0 0.0
      %1381 = vmatprep.subr.mxu0 0.0
      %1382 = vmatpush1.msra.mxu0 0.0
      %1383 = vmatprep.subr.mxu0 0.0
      %1384 = vmatpush1.msra.mxu0 0.0
      %1385 = vmatprep.subr.mxu0 0.0
      %1386 = vmatpush1.msra.mxu0 0.0
      %1387 = vmatprep.subr.mxu0 0.0
      %1388 = vmatpush1.msra.mxu0 0.0
      %1389 = vmatprep.subr.mxu0 0.0
      %1390 = vmatpush1.msra.mxu0 0.0
      %1391 = vmatprep.subr.mxu0 0.0
      %1392 = vmatpush1.msra.mxu0 0.0
      %1393 = vmatprep.subr.mxu0 0.0
      %1394 = vmatpush1.msra.mxu0 0.0
      %1395 = vmatprep.subr.mxu0 0.0
      %1396 = vmatpush1.msra.mxu0 0.0
      %1397 = vmatprep.subr.mxu0 0.0
      %1398 = vmatpush1.msra.mxu0 0.0
      %1399 = vmatprep.subr.mxu0 0.0
      %1400 = vmatpush1.msra.mxu0 0.0
      %1401 = vmatprep.subr.mxu0 0.0
      %1402 = vmatpush1.msra.mxu0 0.0
      %1403 = vmatprep.subr.mxu0 0.0
      %1404 = vmatpush1.msra.mxu0 0.0
      %1405 = vmatprep.subr.mxu0 0.0
      %1406 = vmatpush1.msra.mxu0 0.0
      %1407 = vmatprep.subr.mxu0 0.0
      %1408 = vmatpush1.msra.mxu0 0.0
      %1409 = vmatprep.mubr.f32.mxu0 0.0
      %1410 = vmatmul.mubr.f32.gmra.mrb[0].mxu0 %v1281
      %v1411 = vpop.f32.mrb[0].mxu0
      %v1412 = vadd.f32 %v1183, %v1411
      %v1413 = vpop.f32.mrb[0].mxu0
      %1414 = vmatprep.mubr.f32.mxu0 0.0
      %1415 = vmatmul.mubr.f32.gmra.mrb[0].mxu0 %v1283
      %v1416 = vpop.f32.mrb[0].mxu0
      %v1417 = vadd.f32 %v1183, %v1416
      %v1418 = vpop.f32.mrb[0].mxu0
      %1419 = vmatprep.mubr.f32.mxu0 0.0
      %1420 = vmatmul.mubr.f32.gmra.mrb[0].mxu0 %v1285
      %v1421 = vpop.f32.mrb[0].mxu0
      %v1422 = vadd.f32 %v1183, %v1421
      %v1423 = vpop.f32.mrb[0].mxu0
      %1424 = vmatprep.mubr.f32.mxu0 0.0
      %1425 = vmatmul.mubr.f32.gmra.mrb[0].mxu0 %v1287
      %v1426 = vpop.f32.mrb[0].mxu0
      %v1427 = vadd.f32 %v1183, %v1426
      %v1428 = vpop.f32.mrb[0].mxu0
      %1429 = vmatprep.mubr.f32.mxu0 0.0
      %1430 = vmatmul.mubr.f32.gmra.mrb[0].mxu0 %v1289
      %v1431 = vpop.f32.mrb[0].mxu0
      %v1432 = vadd.f32 %v1183, %v1431
      %v1433 = vpop.f32.mrb[0].mxu0
      %1434 = vmatprep.mubr.f32.mxu0 0.0
      %1435 = vmatmul.mubr.f32.gmra.mrb[0].mxu0 %v1291
      %v1436 = vpop.f32.mrb[0].mxu0
      %v1437 = vadd.f32 %v1183, %v1436
      %v1438 = vpop.f32.mrb[0].mxu0
      %1439 = vmatprep.mubr.f32.mxu0 0.0
      %1440 = vmatmul.mubr.f32.gmra.mrb[0].mxu0 %v1293
      %v1441 = vpop.f32.mrb[0].mxu0
      %v1442 = vadd.f32 %v1183, %v1441
      %v1443 = vpop.f32.mrb[0].mxu0
      %1444 = vmatprep.mubr.f32.mxu0 0.0
      %1445 = vmatmul.mubr.f32.gmra.mrb[0].mxu0 %v1295
      %v1446 = vpop.f32.mrb[0].mxu0
      %v1447 = vadd.f32 %v1183, %v1446
      %v1448 = vpop.f32.mrb[0].mxu0
      %1449 = vmatprep.mubr.f32.mxu0 0.0
      %1450 = vmatmul.mubr.f32.gmra.mrb[0].mxu0 %v1297
      %v1451 = vpop.f32.mrb[0].mxu0
      %v1452 = vadd.f32 %v1183, %v1451
      %v1453 = vpop.f32.mrb[0].mxu0
      %1454 = vmatprep.mubr.f32.mxu0 0.0
      %1455 = vmatmul.mubr.f32.gmra.mrb[0].mxu0 %v1299
      %v1456 = vpop.f32.mrb[0].mxu0
      %v1457 = vadd.f32 %v1183, %v1456
      %v1458 = vpop.f32.mrb[0].mxu0
      %1459 = vmatprep.mubr.f32.mxu0 0.0
      %1460 = vmatmul.mubr.f32.gmra.mrb[0].mxu0 %v1301
      %v1461 = vpop.f32.mrb[0].mxu0
      %v1462 = vadd.f32 %v1183, %v1461
      %v1463 = vpop.f32.mrb[0].mxu0
      %1464 = vmatprep.mubr.f32.mxu0 0.0
      %1465 = vmatmul.mubr.f32.gmra.mrb[0].mxu0 %v1303
      %v1466 = vpop.f32.mrb[0].mxu0
      %v1467 = vadd.f32 %v1183, %v1466
      %v1468 = vpop.f32.mrb[0].mxu0
      %1469 = vmatprep.mubr.f32.mxu0 0.0
      %1470 = vmatmul.mubr.f32.gmra.mrb[0].mxu0 %v1305
      %v1471 = vpop.f32.mrb[0].mxu0
      %v1472 = vadd.f32 %v1183, %v1471
      %v1473 = vpop.f32.mrb[0].mxu0
      %1474 = vmatprep.mubr.f32.mxu0 0.0
      %1475 = vmatmul.mubr.f32.gmra.mrb[0].mxu0 %v1307
      %v1476 = vpop.f32.mrb[0].mxu0
      %v1477 = vadd.f32 %v1183, %v1476
      %v1478 = vpop.f32.mrb[0].mxu0
      %1479 = vmatprep.mubr.f32.mxu0 0.0
      %1480 = vmatmul.mubr.f32.gmra.mrb[0].mxu0 %v1309
      %v1481 = vpop.f32.mrb[0].mxu0
      %v1482 = vadd.f32 %v1183, %v1481
      %v1483 = vpop.f32.mrb[0].mxu0
      %1484 = vmatprep.mubr.f32.mxu0 0.0
      %1485 = vmatmul.mubr.f32.gmra.mrb[0].mxu0 %v1311
      %v1486 = vpop.f32.mrb[0].mxu0
      %v1487 = vadd.f32 %v1183, %v1486
      %v1488 = vpop.f32.mrb[0].mxu0
      %1489 = vmatprep.mubr.f32.mxu0 0.0
      %1490 = vmatmul.mubr.f32.gmra.mrb[0].mxu0 %v1313
      %v1491 = vpop.f32.mrb[0].mxu0
      %v1492 = vadd.f32 %v1183, %v1491
      %v1493 = vpop.f32.mrb[0].mxu0
      %1494 = vmatprep.mubr.f32.mxu0 0.0
      %1495 = vmatmul.mubr.f32.gmra.mrb[0].mxu0 %v1315
      %v1496 = vpop.f32.mrb[0].mxu0
      %v1497 = vadd.f32 %v1183, %v1496
      %v1498 = vpop.f32.mrb[0].mxu0
      %1499 = vmatprep.mubr.f32.mxu0 0.0
      %1500 = vmatmul.mubr.f32.gmra.mrb[0].mxu0 %v1317
      %v1501 = vpop.f32.mrb[0].mxu0
      %v1502 = vadd.f32 %v1183, %v1501
      %v1503 = vpop.f32.mrb[0].mxu0
      %1504 = vmatprep.mubr.f32.mxu0 0.0
      %1505 = vmatmul.mubr.f32.gmra.mrb[0].mxu0 %v1319
      %v1506 = vpop.f32.mrb[0].mxu0
      %v1507 = vadd.f32 %v1183, %v1506
      %v1508 = vpop.f32.mrb[0].mxu0
      %1509 = vmatprep.mubr.f32.mxu0 0.0
      %1510 = vmatmul.mubr.f32.gmra.mrb[0].mxu0 %v1321
      %v1511 = vpop.f32.mrb[0].mxu0
      %v1512 = vadd.f32 %v1183, %v1511
      %v1513 = vpop.f32.mrb[0].mxu0
      %1514 = vmatprep.mubr.f32.mxu0 0.0
      %1515 = vmatmul.mubr.f32.gmra.mrb[0].mxu0 %v1323
      %v1516 = vpop.f32.mrb[0].mxu0
      %v1517 = vadd.f32 %v1183, %v1516
      %v1518 = vpop.f32.mrb[0].mxu0
      %1519 = vmatprep.mubr.f32.mxu0 0.0
      %1520 = vmatmul.mubr.f32.gmra.mrb[0].mxu0 %v1325
      %v1521 = vpop.f32.mrb[0].mxu0
      %v1522 = vadd.f32 %v1183, %v1521
      %v1523 = vpop.f32.mrb[0].mxu0
      %1524 = vmatprep.mubr.f32.mxu0 0.0
      %1525 = vmatmul.mubr.f32.gmra.mrb[0].mxu0 %v1327
      %v1526 = vpop.f32.mrb[0].mxu0
      %v1527 = vadd.f32 %v1183, %v1526
      %v1528 = vpop.f32.mrb[0].mxu0
      %1529 = vmatprep.mubr.f32.mxu0 0.0
      %1530 = vmatmul.mubr.f32.gmra.mrb[0].mxu0 %v1329
      %v1531 = vpop.f32.mrb[0].mxu0
      %v1532 = vadd.f32 %v1183, %v1531
      %v1533 = vpop.f32.mrb[0].mxu0
      %1534 = vmatprep.mubr.f32.mxu0 0.0
      %1535 = vmatmul.mubr.f32.gmra.mrb[0].mxu0 %v1331
      %v1536 = vpop.f32.mrb[0].mxu0
      %v1537 = vadd.f32 %v1183, %v1536
      %v1538 = vpop.f32.mrb[0].mxu0
      %1539 = vmatprep.mubr.f32.mxu0 0.0
      %1540 = vmatmul.mubr.f32.gmra.mrb[0].mxu0 %v1333
      %v1541 = vpop.f32.mrb[0].mxu0
      %v1542 = vadd.f32 %v1183, %v1541
      %v1543 = vpop.f32.mrb[0].mxu0
      %1544 = vmatprep.mubr.f32.mxu0 0.0
      %1545 = vmatmul.mubr.f32.gmra.mrb[0].mxu0 %v1335
      %v1546 = vpop.f32.mrb[0].mxu0
      %v1547 = vadd.f32 %v1183, %v1546
      %v1548 = vpop.f32.mrb[0].mxu0
      %1549 = vmatprep.mubr.f32.mxu0 0.0
      %1550 = vmatmul.mubr.f32.gmra.mrb[0].mxu0 %v1337
      %v1551 = vpop.f32.mrb[0].mxu0
      %v1552 = vadd.f32 %v1183, %v1551
      %v1553 = vpop.f32.mrb[0].mxu0
      %1554 = vmatprep.mubr.f32.mxu0 0.0
      %1555 = vmatmul.mubr.f32.gmra.mrb[0].mxu0 %v1339
      %v1556 = vpop.f32.mrb[0].mxu0
      %v1557 = vadd.f32 %v1183, %v1556
      %v1558 = vpop.f32.mrb[0].mxu0
      %1559 = vmatprep.mubr.f32.mxu0 0.0
      %1560 = vmatmul.mubr.f32.gmra.mrb[0].mxu0 %v1341
      %v1561 = vpop.f32.mrb[0].mxu0
      %v1562 = vadd.f32 %v1183, %v1561
      %v1563 = vpop.f32.mrb[0].mxu0
      %1564 = vmatprep.mubr.f32.mxu0 0.0
      %1565 = vmatmul.mubr.f32.gmra.mrb[0].mxu0 %v1343
      %v1566 = vpop.f32.mrb[0].mxu0
      %v1567 = vadd.f32 %v1183, %v1566
      %v1568 = vpop.f32.mrb[0].mxu0
      %1569 = vdwg.mxu0
      %v1570 = vmax.f32 %v1412, 0.0
      %v1571 = vmax.f32 %v1417, 0.0
      %v1572 = vmax.f32 %v1422, 0.0
      %v1573 = vmax.f32 %v1427, 0.0
      %v1574 = vmax.f32 %v1432, 0.0
      %v1575 = vmax.f32 %v1437, 0.0
      %v1576 = vmax.f32 %v1442, 0.0
      %v1577 = vmax.f32 %v1447, 0.0
      %v1578 = vmax.f32 %v1452, 0.0
      %v1579 = vmax.f32 %v1457, 0.0
      %v1580 = vmax.f32 %v1462, 0.0
      %v1581 = vmax.f32 %v1467, 0.0
      %v1582 = vmax.f32 %v1472, 0.0
      %v1583 = vmax.f32 %v1477, 0.0
      %v1584 = vmax.f32 %v1482, 0.0
      %v1585 = vmax.f32 %v1487, 0.0
      %v1586 = vmax.f32 %v1492, 0.0
      %v1587 = vmax.f32 %v1497, 0.0
      %v1588 = vmax.f32 %v1502, 0.0
      %v1589 = vmax.f32 %v1507, 0.0
      %v1590 = vmax.f32 %v1512, 0.0
      %v1591 = vmax.f32 %v1517, 0.0
      %v1592 = vmax.f32 %v1522, 0.0
      %v1593 = vmax.f32 %v1527, 0.0
      %v1594 = vmax.f32 %v1532, 0.0
      %v1595 = vmax.f32 %v1537, 0.0
      %v1596 = vmax.f32 %v1542, 0.0
      %v1597 = vmax.f32 %v1547, 0.0
      %v1598 = vmax.f32 %v1552, 0.0
      %v1599 = vmax.f32 %v1557, 0.0
      %v1600 = vmax.f32 %v1562, 0.0
      %v1601 = vmax.f32 %v1567, 0.0
      %v1602 = vld [vmem:[%s3 + $0x220] sm:$0xff]
      %v1603 = vld [vmem:[%s3 + $0x230] sm:$0xff]
      %v1604 = vld [vmem:[%s3 + $0x240] sm:$0xff]
      %v1605 = vld [vmem:[%s3 + $0x250] sm:$0xff]
      %v1606 = vld [vmem:[%s3 + $0x260] ss:$0 sm:$0xff]
      %v1608 = vsel %vm738, %v1570, 0
      %v1611 = vsel %vm738, %v1571, 0
      %v1614 = vsel %vm738, %v1572, 0
      %v1617 = vsel %vm738, %v1573, 0
      %v1620 = vsel %vm738, %v1574, 0
      %v1623 = vsel %vm738, %v1575, 0
      %v1626 = vsel %vm738, %v1576, 0
      %v1629 = vsel %vm738, %v1577, 0
      %v1632 = vsel %vm738, %v1578, 0
      %v1635 = vsel %vm738, %v1579, 0
      %v1638 = vsel %vm738, %v1580, 0
      %v1641 = vsel %vm738, %v1581, 0
      %v1644 = vsel %vm738, %v1582, 0
      %v1647 = vsel %vm738, %v1583, 0
      %v1650 = vsel %vm738, %v1584, 0
      %v1653 = vsel %vm738, %v1585, 0
      %v1656 = vsel %vm738, %v1586, 0
      %v1659 = vsel %vm738, %v1587, 0
      %v1662 = vsel %vm738, %v1588, 0
      %v1665 = vsel %vm738, %v1589, 0
      %v1668 = vsel %vm738, %v1590, 0
      %v1671 = vsel %vm738, %v1591, 0
      %v1674 = vsel %vm738, %v1592, 0
      %v1677 = vsel %vm738, %v1593, 0
      %v1680 = vsel %vm738, %v1594, 0
      %v1683 = vsel %vm738, %v1595, 0
      %v1686 = vsel %vm738, %v1596, 0
      %v1689 = vsel %vm738, %v1597, 0
      %v1692 = vsel %vm738, %v1598, 0
      %v1695 = vsel %vm738, %v1599, 0
      %v1698 = vsel %vm738, %v1600, 0
      %v1701 = vsel %vm738, %v1601, 0
      %1703 = vmatprep.subr.mxu0 0.0
      %1704 = vmatpush1.msra.mxu0 %v1602
      %1705 = vmatprep.subr.mxu0 0.0
      %1706 = vmatpush1.msra.mxu0 %v1603
      %1707 = vmatprep.subr.mxu0 0.0
      %1708 = vmatpush1.msra.mxu0 %v1604
      %1709 = vmatprep.subr.mxu0 0.0
      %1710 = vmatpush1.msra.mxu0 %v1605
      %1711 = vmatprep.subr.mxu0 0.0
      %1712 = vmatpush1.msra.mxu0 0.0
      %1713 = vmatprep.subr.mxu0 0.0
      %1714 = vmatpush1.msra.mxu0 0.0
      %1715 = vmatprep.subr.mxu0 0.0
      %1716 = vmatpush1.msra.mxu0 0.0
      %1717 = vmatprep.subr.mxu0 0.0
      %1718 = vmatpush1.msra.mxu0 0.0
      %1719 = vmatprep.subr.mxu0 0.0
      %1720 = vmatpush1.msra.mxu0 0.0
      %1721 = vmatprep.subr.mxu0 0.0
      %1722 = vmatpush1.msra.mxu0 0.0
      %1723 = vmatprep.subr.mxu0 0.0
      %1724 = vmatpush1.msra.mxu0 0.0
      %1725 = vmatprep.subr.mxu0 0.0
      %1726 = vmatpush1.msra.mxu0 0.0
      %1727 = vmatprep.subr.mxu0 0.0
      %1728 = vmatpush1.msra.mxu0 0.0
      %1729 = vmatprep.subr.mxu0 0.0
      %1730 = vmatpush1.msra.mxu0 0.0
      %1731 = vmatprep.subr.mxu0 0.0
      %1732 = vmatpush1.msra.mxu0 0.0
      %1733 = vmatprep.subr.mxu0 0.0
      %1734 = vmatpush1.msra.mxu0 0.0
      %1735 = vmatprep.subr.mxu0 0.0
      %1736 = vmatpush1.msra.mxu0 0.0
      %1737 = vmatprep.subr.mxu0 0.0
      %1738 = vmatpush1.msra.mxu0 0.0
      %1739 = vmatprep.subr.mxu0 0.0
      %1740 = vmatpush1.msra.mxu0 0.0
      %1741 = vmatprep.subr.mxu0 0.0
      %1742 = vmatpush1.msra.mxu0 0.0
      %1743 = vmatprep.subr.mxu0 0.0
      %1744 = vmatpush1.msra.mxu0 0.0
      %1745 = vmatprep.subr.mxu0 0.0
      %1746 = vmatpush1.msra.mxu0 0.0
      %1747 = vmatprep.subr.mxu0 0.0
      %1748 = vmatpush1.msra.mxu0 0.0
      %1749 = vmatprep.subr.mxu0 0.0
      %1750 = vmatpush1.msra.mxu0 0.0
      %1751 = vmatprep.subr.mxu0 0.0
      %1752 = vmatpush1.msra.mxu0 0.0
      %1753 = vmatprep.subr.mxu0 0.0
      %1754 = vmatpush1.msra.mxu0 0.0
      %1755 = vmatprep.subr.mxu0 0.0
      %1756 = vmatpush1.msra.mxu0 0.0
      %1757 = vmatprep.subr.mxu0 0.0
      %1758 = vmatpush1.msra.mxu0 0.0
      %1759 = vmatprep.subr.mxu0 0.0
      %1760 = vmatpush1.msra.mxu0 0.0
      %1761 = vmatprep.subr.mxu0 0.0
      %1762 = vmatpush1.msra.mxu0 0.0
      %1763 = vmatprep.subr.mxu0 0.0
      %1764 = vmatpush1.msra.mxu0 0.0
      %1765 = vmatprep.subr.mxu0 0.0
      %1766 = vmatpush1.msra.mxu0 0.0
      %1767 = vmatprep.mubr.f32.mxu0 0.0
      %1768 = vmatmul.mubr.f32.gmra.mrb[0].mxu0 %v1608
      %v1769 = vpop.f32.mrb[0].mxu0
      %v1770 = vpop.f32.mrb[0].mxu0
      %1771 = vmatprep.mubr.f32.mxu0 0.0
      %1772 = vmatmul.mubr.f32.gmra.mrb[0].mxu0 %v1611
      %v1773 = vpop.f32.mrb[0].mxu0
      %v1774 = vadd.f32 %v1606, %v1773
      %v1775 = vpop.f32.mrb[0].mxu0
      %1776 = vmatprep.mubr.f32.mxu0 0.0
      %1777 = vmatmul.mubr.f32.gmra.mrb[0].mxu0 %v1614
      %v1778 = vpop.f32.mrb[0].mxu0
      %v1779 = vpop.f32.mrb[0].mxu0
      %1780 = vmatprep.mubr.f32.mxu0 0.0
      %1781 = vmatmul.mubr.f32.gmra.mrb[0].mxu0 %v1617
      %v1782 = vpop.f32.mrb[0].mxu0
      %v1783 = vadd.f32 %v1606, %v1782
      %v1784 = vpop.f32.mrb[0].mxu0
      %1785 = vmatprep.mubr.f32.mxu0 0.0
      %1786 = vmatmul.mubr.f32.gmra.mrb[0].mxu0 %v1620
      %v1787 = vpop.f32.mrb[0].mxu0
      %v1788 = vpop.f32.mrb[0].mxu0
      %1789 = vmatprep.mubr.f32.mxu0 0.0
      %1790 = vmatmul.mubr.f32.gmra.mrb[0].mxu0 %v1623
      %v1791 = vpop.f32.mrb[0].mxu0
      %v1792 = vadd.f32 %v1606, %v1791
      %v1793 = vpop.f32.mrb[0].mxu0
      %1794 = vmatprep.mubr.f32.mxu0 0.0
      %1795 = vmatmul.mubr.f32.gmra.mrb[0].mxu0 %v1626
      %v1796 = vpop.f32.mrb[0].mxu0
      %v1797 = vpop.f32.mrb[0].mxu0
      %1798 = vmatprep.mubr.f32.mxu0 0.0
      %1799 = vmatmul.mubr.f32.gmra.mrb[0].mxu0 %v1629
      %v1800 = vpop.f32.mrb[0].mxu0
      %v1801 = vadd.f32 %v1606, %v1800
      %v1802 = vpop.f32.mrb[0].mxu0
      %1803 = vmatprep.mubr.f32.mxu0 0.0
      %1804 = vmatmul.mubr.f32.gmra.mrb[0].mxu0 %v1632
      %v1805 = vpop.f32.mrb[0].mxu0
      %v1806 = vpop.f32.mrb[0].mxu0
      %1807 = vmatprep.mubr.f32.mxu0 0.0
      %1808 = vmatmul.mubr.f32.gmra.mrb[0].mxu0 %v1635
      %v1809 = vpop.f32.mrb[0].mxu0
      %v1810 = vadd.f32 %v1606, %v1809
      %v1811 = vpop.f32.mrb[0].mxu0
      %1812 = vmatprep.mubr.f32.mxu0 0.0
      %1813 = vmatmul.mubr.f32.gmra.mrb[0].mxu0 %v1638
      %v1814 = vpop.f32.mrb[0].mxu0
      %v1815 = vpop.f32.mrb[0].mxu0
      %1816 = vmatprep.mubr.f32.mxu0 0.0
      %1817 = vmatmul.mubr.f32.gmra.mrb[0].mxu0 %v1641
      %v1818 = vpop.f32.mrb[0].mxu0
      %v1819 = vadd.f32 %v1606, %v1818
      %v1820 = vpop.f32.mrb[0].mxu0
      %1821 = vmatprep.mubr.f32.mxu0 0.0
      %1822 = vmatmul.mubr.f32.gmra.mrb[0].mxu0 %v1644
      %v1823 = vpop.f32.mrb[0].mxu0
      %v1824 = vpop.f32.mrb[0].mxu0
      %1825 = vmatprep.mubr.f32.mxu0 0.0
      %1826 = vmatmul.mubr.f32.gmra.mrb[0].mxu0 %v1647
      %v1827 = vpop.f32.mrb[0].mxu0
      %v1828 = vadd.f32 %v1606, %v1827
      %v1829 = vpop.f32.mrb[0].mxu0
      %1830 = vmatprep.mubr.f32.mxu0 0.0
      %1831 = vmatmul.mubr.f32.gmra.mrb[0].mxu0 %v1650
      %v1832 = vpop.f32.mrb[0].mxu0
      %v1833 = vpop.f32.mrb[0].mxu0
      %1834 = vmatprep.mubr.f32.mxu0 0.0
      %1835 = vmatmul.mubr.f32.gmra.mrb[0].mxu0 %v1653
      %v1836 = vpop.f32.mrb[0].mxu0
      %v1837 = vadd.f32 %v1606, %v1836
      %v1838 = vpop.f32.mrb[0].mxu0
      %1839 = vmatprep.mubr.f32.mxu0 0.0
      %1840 = vmatmul.mubr.f32.gmra.mrb[0].mxu0 %v1656
      %v1841 = vpop.f32.mrb[0].mxu0
      %v1842 = vpop.f32.mrb[0].mxu0
      %1843 = vmatprep.mubr.f32.mxu0 0.0
      %1844 = vmatmul.mubr.f32.gmra.mrb[0].mxu0 %v1659
      %v1845 = vpop.f32.mrb[0].mxu0
      %v1846 = vadd.f32 %v1606, %v1845
      %v1847 = vpop.f32.mrb[0].mxu0
      %1848 = vmatprep.mubr.f32.mxu0 0.0
      %1849 = vmatmul.mubr.f32.gmra.mrb[0].mxu0 %v1662
      %v1850 = vpop.f32.mrb[0].mxu0
      %v1851 = vpop.f32.mrb[0].mxu0
      %1852 = vmatprep.mubr.f32.mxu0 0.0
      %1853 = vmatmul.mubr.f32.gmra.mrb[0].mxu0 %v1665
      %v1854 = vpop.f32.mrb[0].mxu0
      %v1855 = vadd.f32 %v1606, %v1854
      %v1856 = vpop.f32.mrb[0].mxu0
      %1857 = vmatprep.mubr.f32.mxu0 0.0
      %1858 = vmatmul.mubr.f32.gmra.mrb[0].mxu0 %v1668
      %v1859 = vpop.f32.mrb[0].mxu0
      %v1860 = vpop.f32.mrb[0].mxu0
      %1861 = vmatprep.mubr.f32.mxu0 0.0
      %1862 = vmatmul.mubr.f32.gmra.mrb[0].mxu0 %v1671
      %v1863 = vpop.f32.mrb[0].mxu0
      %v1864 = vadd.f32 %v1606, %v1863
      %v1865 = vpop.f32.mrb[0].mxu0
      %1866 = vmatprep.mubr.f32.mxu0 0.0
      %1867 = vmatmul.mubr.f32.gmra.mrb[0].mxu0 %v1674
      %v1868 = vpop.f32.mrb[0].mxu0
      %v1869 = vpop.f32.mrb[0].mxu0
      %1870 = vmatprep.mubr.f32.mxu0 0.0
      %1871 = vmatmul.mubr.f32.gmra.mrb[0].mxu0 %v1677
      %v1872 = vpop.f32.mrb[0].mxu0
      %v1873 = vadd.f32 %v1606, %v1872
      %v1874 = vpop.f32.mrb[0].mxu0
      %1875 = vmatprep.mubr.f32.mxu0 0.0
      %1876 = vmatmul.mubr.f32.gmra.mrb[0].mxu0 %v1680
      %v1877 = vpop.f32.mrb[0].mxu0
      %v1878 = vpop.f32.mrb[0].mxu0
      %1879 = vmatprep.mubr.f32.mxu0 0.0
      %1880 = vmatmul.mubr.f32.gmra.mrb[0].mxu0 %v1683
      %v1881 = vpop.f32.mrb[0].mxu0
      %v1882 = vadd.f32 %v1606, %v1881
      %v1883 = vpop.f32.mrb[0].mxu0
      %1884 = vmatprep.mubr.f32.mxu0 0.0
      %1885 = vmatmul.mubr.f32.gmra.mrb[0].mxu0 %v1686
      %v1886 = vpop.f32.mrb[0].mxu0
      %v1887 = vpop.f32.mrb[0].mxu0
      %1888 = vmatprep.mubr.f32.mxu0 0.0
      %1889 = vmatmul.mubr.f32.gmra.mrb[0].mxu0 %v1689
      %v1890 = vpop.f32.mrb[0].mxu0
      %v1891 = vadd.f32 %v1606, %v1890
      %v1892 = vpop.f32.mrb[0].mxu0
      %1893 = vmatprep.mubr.f32.mxu0 0.0
      %1894 = vmatmul.mubr.f32.gmra.mrb[0].mxu0 %v1692
      %v1895 = vpop.f32.mrb[0].mxu0
      %v1896 = vpop.f32.mrb[0].mxu0
      %1897 = vmatprep.mubr.f32.mxu0 0.0
      %1898 = vmatmul.mubr.f32.gmra.mrb[0].mxu0 %v1695
      %v1899 = vpop.f32.mrb[0].mxu0
      %v1900 = vadd.f32 %v1606, %v1899
      %v1901 = vpop.f32.mrb[0].mxu0
      %1902 = vmatprep.mubr.f32.mxu0 0.0
      %1903 = vmatmul.mubr.f32.gmra.mrb[0].mxu0 %v1698
      %v1904 = vpop.f32.mrb[0].mxu0
      %v1905 = vpop.f32.mrb[0].mxu0
      %1906 = vmatprep.mubr.f32.mxu0 0.0
      %1907 = vmatmul.mubr.f32.gmra.mrb[0].mxu0 %v1701
      %v1908 = vpop.f32.mrb[0].mxu0
      %v1909 = vadd.f32 %v1606, %v1908
      %v1910 = vpop.f32.mrb[0].mxu0
      %1911 = vdwg.mxu0
      %v1912 = vmax.f32 %v1774, 0.0
      %v1913 = vmax.f32 %v1783, 0.0
      %v1914 = vmax.f32 %v1792, 0.0
      %v1915 = vmax.f32 %v1801, 0.0
      %v1916 = vmax.f32 %v1810, 0.0
      %v1917 = vmax.f32 %v1819, 0.0
      %v1918 = vmax.f32 %v1828, 0.0
      %v1919 = vmax.f32 %v1837, 0.0
      %v1920 = vmax.f32 %v1846, 0.0
      %v1921 = vmax.f32 %v1855, 0.0
      %v1922 = vmax.f32 %v1864, 0.0
      %v1923 = vmax.f32 %v1873, 0.0
      %v1924 = vmax.f32 %v1882, 0.0
      %v1925 = vmax.f32 %v1891, 0.0
      %v1926 = vmax.f32 %v1900, 0.0
      %v1927 = vmax.f32 %v1909, 0.0
      %v1928 = vld [vmem:[%s3 + $0x290] ss:$0 sm:$0xff]
      %v1929 = vmul.f32 %v1912, %v1928
      %v1930 = vmul.f32 %v1913, %v1928
      %v1931 = vmul.f32 %v1914, %v1928
      %v1932 = vmul.f32 %v1915, %v1928
      %v1933 = vmul.f32 %v1916, %v1928
      %v1934 = vmul.f32 %v1917, %v1928
      %v1935 = vmul.f32 %v1918, %v1928
      %v1936 = vmul.f32 %v1919, %v1928
      %v1937 = vmul.f32 %v1920, %v1928
      %v1938 = vmul.f32 %v1921, %v1928
      %v1939 = vmul.f32 %v1922, %v1928
      %v1940 = vmul.f32 %v1923, %v1928
      %v1941 = vmul.f32 %v1924, %v1928
      %v1942 = vmul.f32 %v1925, %v1928
      %v1943 = vmul.f32 %v1926, %v1928
      %v1944 = vmul.f32 %v1927, %v1928
      %v1945 = vsel %vm1109, %v1929, 0.0
      %1946 = vadd.xlane.f32.xlu0 %v1945
      %v1947 = vpop.xlane.xlu0 %1946
      %v1948 = vsel %vm1109, %v1930, 0.0
      %1949 = vadd.xlane.f32.xlu0 %v1948
      %v1950 = vpop.xlane.xlu0 %1949
      %v1951 = vsel %vm1109, %v1931, 0.0
      %1952 = vadd.xlane.f32.xlu0 %v1951
      %v1953 = vpop.xlane.xlu0 %1952
      %v1954 = vsel %vm1109, %v1932, 0.0
      %1955 = vadd.xlane.f32.xlu0 %v1954
      %v1956 = vpop.xlane.xlu0 %1955
      %v1957 = vsel %vm1109, %v1933, 0.0
      %1958 = vadd.xlane.f32.xlu0 %v1957
      %v1959 = vpop.xlane.xlu0 %1958
      %v1960 = vsel %vm1109, %v1934, 0.0
      %1961 = vadd.xlane.f32.xlu0 %v1960
      %v1962 = vpop.xlane.xlu0 %1961
      %v1963 = vsel %vm1109, %v1935, 0.0
      %1964 = vadd.xlane.f32.xlu0 %v1963
      %v1965 = vpop.xlane.xlu0 %1964
      %v1966 = vsel %vm1109, %v1936, 0.0
      %1967 = vadd.xlane.f32.xlu0 %v1966
      %v1968 = vpop.xlane.xlu0 %1967
      %v1969 = vsel %vm1109, %v1937, 0.0
      %1970 = vadd.xlane.f32.xlu0 %v1969
      %v1971 = vpop.xlane.xlu0 %1970
      %v1972 = vsel %vm1109, %v1938, 0.0
      %1973 = vadd.xlane.f32.xlu0 %v1972
      %v1974 = vpop.xlane.xlu0 %1973
      %v1975 = vsel %vm1109, %v1939, 0.0
      %1976 = vadd.xlane.f32.xlu0 %v1975
      %v1977 = vpop.xlane.xlu0 %1976
      %v1978 = vsel %vm1109, %v1940, 0.0
      %1979 = vadd.xlane.f32.xlu0 %v1978
      %v1980 = vpop.xlane.xlu0 %1979
      %v1981 = vsel %vm1109, %v1941, 0.0
      %1982 = vadd.xlane.f32.xlu0 %v1981
      %v1983 = vpop.xlane.xlu0 %1982
      %v1984 = vsel %vm1109, %v1942, 0.0
      %1985 = vadd.xlane.f32.xlu0 %v1984
      %v1986 = vpop.xlane.xlu0 %1985
      %v1987 = vsel %vm1109, %v1943, 0.0
      %1988 = vadd.xlane.f32.xlu0 %v1987
      %v1989 = vpop.xlane.xlu0 %1988
      %v1990 = vsel %vm1109, %v1944, 0.0
      %1991 = vadd.xlane.f32.xlu0 %v1990
      %v1992 = vpop.xlane.xlu0 %1991
      %v1993 = vld [vmem:[%s3 + $0x2a0] ss:$0 sm:$0xff]
      %v1994 = vadd.f32 %v1947, %v1993
      %v1995 = vadd.f32 %v1950, %v1993
      %v1996 = vadd.f32 %v1953, %v1993
      %v1997 = vadd.f32 %v1956, %v1993
      %v1998 = vadd.f32 %v1959, %v1993
      %v1999 = vadd.f32 %v1962, %v1993
      %v2000 = vadd.f32 %v1965, %v1993
      %v2001 = vadd.f32 %v1968, %v1993
      %v2002 = vadd.f32 %v1971, %v1993
      %v2003 = vadd.f32 %v1974, %v1993
      %v2004 = vadd.f32 %v1977, %v1993
      %v2005 = vadd.f32 %v1980, %v1993
      %v2006 = vadd.f32 %v1983, %v1993
      %v2007 = vadd.f32 %v1986, %v1993
      %v2008 = vadd.f32 %v1989, %v1993
      %v2009 = vadd.f32 %v1992, %v1993
      %v2010 = vld [vmem:[%s3 + $0x2b0] sm:$0xff]
      %2012 = vset.pattern.permute.xlu0 0
      %2013 = vperm.xlu0 %2012, %v1159
      %v2014 = vpop.permute.xlu0 %2013
      %2017 = vset.pattern.permute.xlu0 0
      %2018 = vperm.xlu0 %2017, %v1160
      %v2019 = vpop.permute.xlu0 %2018
      %2022 = vset.pattern.permute.xlu0 0
      %2023 = vperm.xlu0 %2022, %v1161
      %v2024 = vpop.permute.xlu0 %2023
      %2027 = vset.pattern.permute.xlu0 0
      %2028 = vperm.xlu0 %2027, %v1162
      %v2029 = vpop.permute.xlu0 %2028
      %2032 = vset.pattern.permute.xlu0 0
      %2033 = vperm.xlu0 %2032, %v1163
      %v2034 = vpop.permute.xlu0 %2033
      %2037 = vset.pattern.permute.xlu0 0
      %2038 = vperm.xlu0 %2037, %v1164
      %v2039 = vpop.permute.xlu0 %2038
      %2042 = vset.pattern.permute.xlu0 0
      %2043 = vperm.xlu0 %2042, %v1165
      %v2044 = vpop.permute.xlu0 %2043
      %2047 = vset.pattern.permute.xlu0 0
      %2048 = vperm.xlu0 %2047, %v1166
      %v2049 = vpop.permute.xlu0 %2048
      %2052 = vset.pattern.permute.xlu0 0
      %2053 = vperm.xlu0 %2052, %v1167
      %v2054 = vpop.permute.xlu0 %2053
      %2057 = vset.pattern.permute.xlu0 0
      %2058 = vperm.xlu0 %2057, %v1168
      %v2059 = vpop.permute.xlu0 %2058
      %2062 = vset.pattern.permute.xlu0 0
      %2063 = vperm.xlu0 %2062, %v1169
      %v2064 = vpop.permute.xlu0 %2063
      %2067 = vset.pattern.permute.xlu0 0
      %2068 = vperm.xlu0 %2067, %v1170
      %v2069 = vpop.permute.xlu0 %2068
      %2072 = vset.pattern.permute.xlu0 0
      %2073 = vperm.xlu0 %2072, %v1171
      %v2074 = vpop.permute.xlu0 %2073
      %2077 = vset.pattern.permute.xlu0 0
      %2078 = vperm.xlu0 %2077, %v1172
      %v2079 = vpop.permute.xlu0 %2078
      %2082 = vset.pattern.permute.xlu0 0
      %2083 = vperm.xlu0 %2082, %v1173
      %v2084 = vpop.permute.xlu0 %2083
      %2087 = vset.pattern.permute.xlu0 0
      %2088 = vperm.xlu0 %2087, %v1174
      %v2089 = vpop.permute.xlu0 %2088
      %v2091 = vmul.f32 %v2014, %v2010
      %v2092 = vmul.f32 %v2019, %v2010
      %v2093 = vmul.f32 %v2024, %v2010
      %v2094 = vmul.f32 %v2029, %v2010
      %v2095 = vmul.f32 %v2034, %v2010
      %v2096 = vmul.f32 %v2039, %v2010
      %v2097 = vmul.f32 %v2044, %v2010
      %v2098 = vmul.f32 %v2049, %v2010
      %v2099 = vmul.f32 %v2054, %v2010
      %v2100 = vmul.f32 %v2059, %v2010
      %v2101 = vmul.f32 %v2064, %v2010
      %v2102 = vmul.f32 %v2069, %v2010
      %v2103 = vmul.f32 %v2074, %v2010
      %v2104 = vmul.f32 %v2079, %v2010
      %v2105 = vmul.f32 %v2084, %v2010
      %v2106 = vmul.f32 %v2089, %v2010
      %vm2107 = vcmask 130048
      %v2108 = vsel %vm2107, %v2091, 0.0
      %v2109 = vrot.slane %v2108, 4
      %v2110 = vadd.f32 %v2108, %v2109
      %v2111 = vrot.slane %v2110, 2
      %v2112 = vadd.f32 %v2110, %v2111
      %v2113 = vrot.slane %v2112, 1
      %v2114 = vadd.f32 %v2112, %v2113
      %v2115 = vsel %vm2107, %v2092, 0.0
      %v2116 = vrot.slane %v2115, 4
      %v2117 = vadd.f32 %v2115, %v2116
      %v2118 = vrot.slane %v2117, 2
      %v2119 = vadd.f32 %v2117, %v2118
      %v2120 = vrot.slane %v2119, 1
      %v2121 = vadd.f32 %v2119, %v2120
      %v2122 = vsel %vm2107, %v2093, 0.0
      %v2123 = vrot.slane %v2122, 4
      %v2124 = vadd.f32 %v2122, %v2123
      %v2125 = vrot.slane %v2124, 2
      %v2126 = vadd.f32 %v2124, %v2125
      %v2127 = vrot.slane %v2126, 1
      %v2128 = vadd.f32 %v2126, %v2127
      %v2129 = vsel %vm2107, %v2094, 0.0
      %v2130 = vrot.slane %v2129, 4
      %v2131 = vadd.f32 %v2129, %v2130
      %v2132 = vrot.slane %v2131, 2
      %v2133 = vadd.f32 %v2131, %v2132
      %v2134 = vrot.slane %v2133, 1
      %v2135 = vadd.f32 %v2133, %v2134
      %v2136 = vsel %vm2107, %v2095, 0.0
      %v2137 = vrot.slane %v2136, 4
      %v2138 = vadd.f32 %v2136, %v2137
      %v2139 = vrot.slane %v2138, 2
      %v2140 = vadd.f32 %v2138, %v2139
      %v2141 = vrot.slane %v2140, 1
      %v2142 = vadd.f32 %v2140, %v2141
      %v2143 = vsel %vm2107, %v2096, 0.0
      %v2144 = vrot.slane %v2143, 4
      %v2145 = vadd.f32 %v2143, %v2144
      %v2146 = vrot.slane %v2145, 2
      %v2147 = vadd.f32 %v2145, %v2146
      %v2148 = vrot.slane %v2147, 1
      %v2149 = vadd.f32 %v2147, %v2148
      %v2150 = vsel %vm2107, %v2097, 0.0
      %v2151 = vrot.slane %v2150, 4
      %v2152 = vadd.f32 %v2150, %v2151
      %v2153 = vrot.slane %v2152, 2
      %v2154 = vadd.f32 %v2152, %v2153
      %v2155 = vrot.slane %v2154, 1
      %v2156 = vadd.f32 %v2154, %v2155
      %v2157 = vsel %vm2107, %v2098, 0.0
      %v2158 = vrot.slane %v2157, 4
      %v2159 = vadd.f32 %v2157, %v2158
      %v2160 = vrot.slane %v2159, 2
      %v2161 = vadd.f32 %v2159, %v2160
      %v2162 = vrot.slane %v2161, 1
      %v2163 = vadd.f32 %v2161, %v2162
      %v2164 = vsel %vm2107, %v2099, 0.0
      %v2165 = vrot.slane %v2164, 4
      %v2166 = vadd.f32 %v2164, %v2165
      %v2167 = vrot.slane %v2166, 2
      %v2168 = vadd.f32 %v2166, %v2167
      %v2169 = vrot.slane %v2168, 1
      %v2170 = vadd.f32 %v2168, %v2169
      %v2171 = vsel %vm2107, %v2100, 0.0
      %v2172 = vrot.slane %v2171, 4
      %v2173 = vadd.f32 %v2171, %v2172
      %v2174 = vrot.slane %v2173, 2
      %v2175 = vadd.f32 %v2173, %v2174
      %v2176 = vrot.slane %v2175, 1
      %v2177 = vadd.f32 %v2175, %v2176
      %v2178 = vsel %vm2107, %v2101, 0.0
      %v2179 = vrot.slane %v2178, 4
      %v2180 = vadd.f32 %v2178, %v2179
      %v2181 = vrot.slane %v2180, 2
      %v2182 = vadd.f32 %v2180, %v2181
      %v2183 = vrot.slane %v2182, 1
      %v2184 = vadd.f32 %v2182, %v2183
      %v2185 = vsel %vm2107, %v2102, 0.0
      %v2186 = vrot.slane %v2185, 4
      %v2187 = vadd.f32 %v2185, %v2186
      %v2188 = vrot.slane %v2187, 2
      %v2189 = vadd.f32 %v2187, %v2188
      %v2190 = vrot.slane %v2189, 1
      %v2191 = vadd.f32 %v2189, %v2190
      %v2192 = vsel %vm2107, %v2103, 0.0
      %v2193 = vrot.slane %v2192, 4
      %v2194 = vadd.f32 %v2192, %v2193
      %v2195 = vrot.slane %v2194, 2
      %v2196 = vadd.f32 %v2194, %v2195
      %v2197 = vrot.slane %v2196, 1
      %v2198 = vadd.f32 %v2196, %v2197
      %v2199 = vsel %vm2107, %v2104, 0.0
      %v2200 = vrot.slane %v2199, 4
      %v2201 = vadd.f32 %v2199, %v2200
      %v2202 = vrot.slane %v2201, 2
      %v2203 = vadd.f32 %v2201, %v2202
      %v2204 = vrot.slane %v2203, 1
      %v2205 = vadd.f32 %v2203, %v2204
      %v2206 = vsel %vm2107, %v2105, 0.0
      %v2207 = vrot.slane %v2206, 4
      %v2208 = vadd.f32 %v2206, %v2207
      %v2209 = vrot.slane %v2208, 2
      %v2210 = vadd.f32 %v2208, %v2209
      %v2211 = vrot.slane %v2210, 1
      %v2212 = vadd.f32 %v2210, %v2211
      %v2213 = vsel %vm2107, %v2106, 0.0
      %v2214 = vrot.slane %v2213, 4
      %v2215 = vadd.f32 %v2213, %v2214
      %v2216 = vrot.slane %v2215, 2
      %v2217 = vadd.f32 %v2215, %v2216
      %v2218 = vrot.slane %v2217, 1
      %v2219 = vadd.f32 %v2217, %v2218
      %v2220 = vld [vmem:[%s3 + $0x2c0] sm:$0xff]
      %2222 = vset.pattern.permute.xlu0 0
      %2223 = vperm.xlu0 %2222, %v1994
      %v2224 = vpop.permute.xlu0 %2223
      %2227 = vset.pattern.permute.xlu0 0
      %2228 = vperm.xlu0 %2227, %v1995
      %v2229 = vpop.permute.xlu0 %2228
      %2232 = vset.pattern.permute.xlu0 0
      %2233 = vperm.xlu0 %2232, %v1996
      %v2234 = vpop.permute.xlu0 %2233
      %2237 = vset.pattern.permute.xlu0 0
      %2238 = vperm.xlu0 %2237, %v1997
      %v2239 = vpop.permute.xlu0 %2238
      %2242 = vset.pattern.permute.xlu0 0
      %2243 = vperm.xlu0 %2242, %v1998
      %v2244 = vpop.permute.xlu0 %2243
      %2247 = vset.pattern.permute.xlu0 0
      %2248 = vperm.xlu0 %2247, %v1999
      %v2249 = vpop.permute.xlu0 %2248
      %2252 = vset.pattern.permute.xlu0 0
      %2253 = vperm.xlu0 %2252, %v2000
      %v2254 = vpop.permute.xlu0 %2253
      %2257 = vset.pattern.permute.xlu0 0
      %2258 = vperm.xlu0 %2257, %v2001
      %v2259 = vpop.permute.xlu0 %2258
      %2262 = vset.pattern.permute.xlu0 0
      %2263 = vperm.xlu0 %2262, %v2002
      %v2264 = vpop.permute.xlu0 %2263
      %2267 = vset.pattern.permute.xlu0 0
      %2268 = vperm.xlu0 %2267, %v2003
      %v2269 = vpop.permute.xlu0 %2268
      %2272 = vset.pattern.permute.xlu0 0
      %2273 = vperm.xlu0 %2272, %v2004
      %v2274 = vpop.permute.xlu0 %2273
      %2277 = vset.pattern.permute.xlu0 0
      %2278 = vperm.xlu0 %2277, %v2005
      %v2279 = vpop.permute.xlu0 %2278
      %2282 = vset.pattern.permute.xlu0 0
      %2283 = vperm.xlu0 %2282, %v2006
      %v2284 = vpop.permute.xlu0 %2283
      %2287 = vset.pattern.permute.xlu0 0
      %2288 = vperm.xlu0 %2287, %v2007
      %v2289 = vpop.permute.xlu0 %2288
      %2292 = vset.pattern.permute.xlu0 0
      %2293 = vperm.xlu0 %2292, %v2008
      %v2294 = vpop.permute.xlu0 %2293
      %2297 = vset.pattern.permute.xlu0 0
      %2298 = vperm.xlu0 %2297, %v2009
      %v2299 = vpop.permute.xlu0 %2298
      %v2301 = vmul.f32 %v2224, %v2220
      %v2302 = vmul.f32 %v2229, %v2220
      %v2303 = vmul.f32 %v2234, %v2220
      %v2304 = vmul.f32 %v2239, %v2220
      %v2305 = vmul.f32 %v2244, %v2220
      %v2306 = vmul.f32 %v2249, %v2220
      %v2307 = vmul.f32 %v2254, %v2220
      %v2308 = vmul.f32 %v2259, %v2220
      %v2309 = vmul.f32 %v2264, %v2220
      %v2310 = vmul.f32 %v2269, %v2220
      %v2311 = vmul.f32 %v2274, %v2220
      %v2312 = vmul.f32 %v2279, %v2220
      %v2313 = vmul.f32 %v2284, %v2220
      %v2314 = vmul.f32 %v2289, %v2220
      %v2315 = vmul.f32 %v2294, %v2220
      %v2316 = vmul.f32 %v2299, %v2220
      %v2317 = vsel %vm2107, %v2301, 0.0
      %v2318 = vrot.slane %v2317, 4
      %v2319 = vadd.f32 %v2317, %v2318
      %v2320 = vrot.slane %v2319, 2
      %v2321 = vadd.f32 %v2319, %v2320
      %v2322 = vrot.slane %v2321, 1
      %v2323 = vadd.f32 %v2321, %v2322
      %v2324 = vsel %vm2107, %v2302, 0.0
      %v2325 = vrot.slane %v2324, 4
      %v2326 = vadd.f32 %v2324, %v2325
      %v2327 = vrot.slane %v2326, 2
      %v2328 = vadd.f32 %v2326, %v2327
      %v2329 = vrot.slane %v2328, 1
      %v2330 = vadd.f32 %v2328, %v2329
      %v2331 = vsel %vm2107, %v2303, 0.0
      %v2332 = vrot.slane %v2331, 4
      %v2333 = vadd.f32 %v2331, %v2332
      %v2334 = vrot.slane %v2333, 2
      %v2335 = vadd.f32 %v2333, %v2334
      %v2336 = vrot.slane %v2335, 1
      %v2337 = vadd.f32 %v2335, %v2336
      %v2338 = vsel %vm2107, %v2304, 0.0
      %v2339 = vrot.slane %v2338, 4
      %v2340 = vadd.f32 %v2338, %v2339
      %v2341 = vrot.slane %v2340, 2
      %v2342 = vadd.f32 %v2340, %v2341
      %v2343 = vrot.slane %v2342, 1
      %v2344 = vadd.f32 %v2342, %v2343
      %v2345 = vsel %vm2107, %v2305, 0.0
      %v2346 = vrot.slane %v2345, 4
      %v2347 = vadd.f32 %v2345, %v2346
      %v2348 = vrot.slane %v2347, 2
      %v2349 = vadd.f32 %v2347, %v2348
      %v2350 = vrot.slane %v2349, 1
      %v2351 = vadd.f32 %v2349, %v2350
      %v2352 = vsel %vm2107, %v2306, 0.0
      %v2353 = vrot.slane %v2352, 4
      %v2354 = vadd.f32 %v2352, %v2353
      %v2355 = vrot.slane %v2354, 2
      %v2356 = vadd.f32 %v2354, %v2355
      %v2357 = vrot.slane %v2356, 1
      %v2358 = vadd.f32 %v2356, %v2357
      %v2359 = vsel %vm2107, %v2307, 0.0
      %v2360 = vrot.slane %v2359, 4
      %v2361 = vadd.f32 %v2359, %v2360
      %v2362 = vrot.slane %v2361, 2
      %v2363 = vadd.f32 %v2361, %v2362
      %v2364 = vrot.slane %v2363, 1
      %v2365 = vadd.f32 %v2363, %v2364
      %v2366 = vsel %vm2107, %v2308, 0.0
      %v2367 = vrot.slane %v2366, 4
      %v2368 = vadd.f32 %v2366, %v2367
      %v2369 = vrot.slane %v2368, 2
      %v2370 = vadd.f32 %v2368, %v2369
      %v2371 = vrot.slane %v2370, 1
      %v2372 = vadd.f32 %v2370, %v2371
      %v2373 = vsel %vm2107, %v2309, 0.0
      %v2374 = vrot.slane %v2373, 4
      %v2375 = vadd.f32 %v2373, %v2374
      %v2376 = vrot.slane %v2375, 2
      %v2377 = vadd.f32 %v2375, %v2376
      %v2378 = vrot.slane %v2377, 1
      %v2379 = vadd.f32 %v2377, %v2378
      %v2380 = vsel %vm2107, %v2310, 0.0
      %v2381 = vrot.slane %v2380, 4
      %v2382 = vadd.f32 %v2380, %v2381
      %v2383 = vrot.slane %v2382, 2
      %v2384 = vadd.f32 %v2382, %v2383
      %v2385 = vrot.slane %v2384, 1
      %v2386 = vadd.f32 %v2384, %v2385
      %v2387 = vsel %vm2107, %v2311, 0.0
      %v2388 = vrot.slane %v2387, 4
      %v2389 = vadd.f32 %v2387, %v2388
      %v2390 = vrot.slane %v2389, 2
      %v2391 = vadd.f32 %v2389, %v2390
      %v2392 = vrot.slane %v2391, 1
      %v2393 = vadd.f32 %v2391, %v2392
      %v2394 = vsel %vm2107, %v2312, 0.0
      %v2395 = vrot.slane %v2394, 4
      %v2396 = vadd.f32 %v2394, %v2395
      %v2397 = vrot.slane %v2396, 2
      %v2398 = vadd.f32 %v2396, %v2397
      %v2399 = vrot.slane %v2398, 1
      %v2400 = vadd.f32 %v2398, %v2399
      %v2401 = vsel %vm2107, %v2313, 0.0
      %v2402 = vrot.slane %v2401, 4
      %v2403 = vadd.f32 %v2401, %v2402
      %v2404 = vrot.slane %v2403, 2
      %v2405 = vadd.f32 %v2403, %v2404
      %v2406 = vrot.slane %v2405, 1
      %v2407 = vadd.f32 %v2405, %v2406
      %v2408 = vsel %vm2107, %v2314, 0.0
      %v2409 = vrot.slane %v2408, 4
      %v2410 = vadd.f32 %v2408, %v2409
      %v2411 = vrot.slane %v2410, 2
      %v2412 = vadd.f32 %v2410, %v2411
      %v2413 = vrot.slane %v2412, 1
      %v2414 = vadd.f32 %v2412, %v2413
      %v2415 = vsel %vm2107, %v2315, 0.0
      %v2416 = vrot.slane %v2415, 4
      %v2417 = vadd.f32 %v2415, %v2416
      %v2418 = vrot.slane %v2417, 2
      %v2419 = vadd.f32 %v2417, %v2418
      %v2420 = vrot.slane %v2419, 1
      %v2421 = vadd.f32 %v2419, %v2420
      %v2422 = vsel %vm2107, %v2316, 0.0
      %v2423 = vrot.slane %v2422, 4
      %v2424 = vadd.f32 %v2422, %v2423
      %v2425 = vrot.slane %v2424, 2
      %v2426 = vadd.f32 %v2424, %v2425
      %v2427 = vrot.slane %v2426, 1
      %v2428 = vadd.f32 %v2426, %v2427
      %v2429 = vadd.f32 %v2114, %v2323
      %v2430 = vadd.f32 %v2121, %v2330
      %v2431 = vadd.f32 %v2128, %v2337
      %v2432 = vadd.f32 %v2135, %v2344
      %v2433 = vadd.f32 %v2142, %v2351
      %v2434 = vadd.f32 %v2149, %v2358
      %v2435 = vadd.f32 %v2156, %v2365
      %v2436 = vadd.f32 %v2163, %v2372
      %v2437 = vadd.f32 %v2170, %v2379
      %v2438 = vadd.f32 %v2177, %v2386
      %v2439 = vadd.f32 %v2184, %v2393
      %v2440 = vadd.f32 %v2191, %v2400
      %v2441 = vadd.f32 %v2198, %v2407
      %v2442 = vadd.f32 %v2205, %v2414
      %v2443 = vadd.f32 %v2212, %v2421
      %v2444 = vadd.f32 %v2219, %v2428
      %v2445 = vld [vmem:[%s3 + $0x2d0] ss:$0 sm:$0xff]
      %v2446 = vadd.f32 %v2429, %v2445
      %v2447 = vadd.f32 %v2430, %v2445
      %v2448 = vadd.f32 %v2431, %v2445
      %v2449 = vadd.f32 %v2432, %v2445
      %v2450 = vadd.f32 %v2433, %v2445
      %v2451 = vadd.f32 %v2434, %v2445
      %v2452 = vadd.f32 %v2435, %v2445
      %v2453 = vadd.f32 %v2436, %v2445
      %v2454 = vadd.f32 %v2437, %v2445
      %v2455 = vadd.f32 %v2438, %v2445
      %v2456 = vadd.f32 %v2439, %v2445
      %v2457 = vadd.f32 %v2440, %v2445
      %v2458 = vadd.f32 %v2441, %v2445
      %v2459 = vadd.f32 %v2442, %v2445
      %v2460 = vadd.f32 %v2443, %v2445
      %v2461 = vadd.f32 %v2444, %v2445
      %vm2462 = vcmp.eq.f32.partialorder %v248, 1.0
      %vm2463 = vcmp.eq.f32.partialorder %v250, 1.0
      %vm2464 = vcmp.eq.f32.partialorder %v252, 1.0
      %vm2465 = vcmp.eq.f32.partialorder %v254, 1.0
      %vm2466 = vcmp.eq.f32.partialorder %v256, 1.0
      %vm2467 = vcmp.eq.f32.partialorder %v258, 1.0
      %vm2468 = vcmp.eq.f32.partialorder %v260, 1.0
      %vm2469 = vcmp.eq.f32.partialorder %v262, 1.0
      %vm2470 = vcmp.eq.f32.partialorder %v264, 1.0
      %vm2471 = vcmp.eq.f32.partialorder %v266, 1.0
      %vm2472 = vcmp.eq.f32.partialorder %v268, 1.0
      %vm2473 = vcmp.eq.f32.partialorder %v270, 1.0
      %vm2474 = vcmp.eq.f32.partialorder %v272, 1.0
      %vm2475 = vcmp.eq.f32.partialorder %v274, 1.0
      %vm2476 = vcmp.eq.f32.partialorder %v276, 1.0
      %vm2477 = vcmp.eq.f32.partialorder %v278, 1.0
      %v2478 = vsel %vm2462, %v2014, -inf
      %v2479 = vsel %vm2463, %v2019, -inf
      %v2480 = vsel %vm2464, %v2024, -inf
      %v2481 = vsel %vm2465, %v2029, -inf
      %v2482 = vsel %vm2466, %v2034, -inf
      %v2483 = vsel %vm2467, %v2039, -inf
      %v2484 = vsel %vm2468, %v2044, -inf
      %v2485 = vsel %vm2469, %v2049, -inf
      %v2486 = vsel %vm2470, %v2054, -inf
      %v2487 = vsel %vm2471, %v2059, -inf
      %v2488 = vsel %vm2472, %v2064, -inf
      %v2489 = vsel %vm2473, %v2069, -inf
      %v2490 = vsel %vm2474, %v2074, -inf
      %v2491 = vsel %vm2475, %v2079, -inf
      %v2492 = vsel %vm2476, %v2084, -inf
      %v2493 = vsel %vm2477, %v2089, -inf
      %vm2494 = vcmask 31744
      %v2495 = vsel %vm2494, %v2478, -inf
      %v2496 = vrot.slane %v2495, 4
      %v2497 = vmax.f32 %v2495, %v2496
      %v2498 = vrot.slane %v2497, 2
      %v2499 = vmax.f32 %v2497, %v2498
      %v2500 = vrot.slane %v2499, 1
      %v2501 = vmax.f32 %v2499, %v2500
      %v2502 = vsel %vm2494, %v2479, -inf
      %v2503 = vrot.slane %v2502, 4
      %v2504 = vmax.f32 %v2502, %v2503
      %v2505 = vrot.slane %v2504, 2
      %v2506 = vmax.f32 %v2504, %v2505
      %v2507 = vrot.slane %v2506, 1
      %v2508 = vmax.f32 %v2506, %v2507
      %v2509 = vsel %vm2494, %v2480, -inf
      %v2510 = vrot.slane %v2509, 4
      %v2511 = vmax.f32 %v2509, %v2510
      %v2512 = vrot.slane %v2511, 2
      %v2513 = vmax.f32 %v2511, %v2512
      %v2514 = vrot.slane %v2513, 1
      %v2515 = vmax.f32 %v2513, %v2514
      %v2516 = vsel %vm2494, %v2481, -inf
      %v2517 = vrot.slane %v2516, 4
      %v2518 = vmax.f32 %v2516, %v2517
      %v2519 = vrot.slane %v2518, 2
      %v2520 = vmax.f32 %v2518, %v2519
      %v2521 = vrot.slane %v2520, 1
      %v2522 = vmax.f32 %v2520, %v2521
      %v2523 = vsel %vm2494, %v2482, -inf
      %v2524 = vrot.slane %v2523, 4
      %v2525 = vmax.f32 %v2523, %v2524
      %v2526 = vrot.slane %v2525, 2
      %v2527 = vmax.f32 %v2525, %v2526
      %v2528 = vrot.slane %v2527, 1
      %v2529 = vmax.f32 %v2527, %v2528
      %v2530 = vsel %vm2494, %v2483, -inf
      %v2531 = vrot.slane %v2530, 4
      %v2532 = vmax.f32 %v2530, %v2531
      %v2533 = vrot.slane %v2532, 2
      %v2534 = vmax.f32 %v2532, %v2533
      %v2535 = vrot.slane %v2534, 1
      %v2536 = vmax.f32 %v2534, %v2535
      %v2537 = vsel %vm2494, %v2484, -inf
      %v2538 = vrot.slane %v2537, 4
      %v2539 = vmax.f32 %v2537, %v2538
      %v2540 = vrot.slane %v2539, 2
      %v2541 = vmax.f32 %v2539, %v2540
      %v2542 = vrot.slane %v2541, 1
      %v2543 = vmax.f32 %v2541, %v2542
      %v2544 = vsel %vm2494, %v2485, -inf
      %v2545 = vrot.slane %v2544, 4
      %v2546 = vmax.f32 %v2544, %v2545
      %v2547 = vrot.slane %v2546, 2
      %v2548 = vmax.f32 %v2546, %v2547
      %v2549 = vrot.slane %v2548, 1
      %v2550 = vmax.f32 %v2548, %v2549
      %v2551 = vsel %vm2494, %v2486, -inf
      %v2552 = vrot.slane %v2551, 4
      %v2553 = vmax.f32 %v2551, %v2552
      %v2554 = vrot.slane %v2553, 2
      %v2555 = vmax.f32 %v2553, %v2554
      %v2556 = vrot.slane %v2555, 1
      %v2557 = vmax.f32 %v2555, %v2556
      %v2558 = vsel %vm2494, %v2487, -inf
      %v2559 = vrot.slane %v2558, 4
      %v2560 = vmax.f32 %v2558, %v2559
      %v2561 = vrot.slane %v2560, 2
      %v2562 = vmax.f32 %v2560, %v2561
      %v2563 = vrot.slane %v2562, 1
      %v2564 = vmax.f32 %v2562, %v2563
      %v2565 = vsel %vm2494, %v2488, -inf
      %v2566 = vrot.slane %v2565, 4
      %v2567 = vmax.f32 %v2565, %v2566
      %v2568 = vrot.slane %v2567, 2
      %v2569 = vmax.f32 %v2567, %v2568
      %v2570 = vrot.slane %v2569, 1
      %v2571 = vmax.f32 %v2569, %v2570
      %v2572 = vsel %vm2494, %v2489, -inf
      %v2573 = vrot.slane %v2572, 4
      %v2574 = vmax.f32 %v2572, %v2573
      %v2575 = vrot.slane %v2574, 2
      %v2576 = vmax.f32 %v2574, %v2575
      %v2577 = vrot.slane %v2576, 1
      %v2578 = vmax.f32 %v2576, %v2577
      %v2579 = vsel %vm2494, %v2490, -inf
      %v2580 = vrot.slane %v2579, 4
      %v2581 = vmax.f32 %v2579, %v2580
      %v2582 = vrot.slane %v2581, 2
      %v2583 = vmax.f32 %v2581, %v2582
      %v2584 = vrot.slane %v2583, 1
      %v2585 = vmax.f32 %v2583, %v2584
      %v2586 = vsel %vm2494, %v2491, -inf
      %v2587 = vrot.slane %v2586, 4
      %v2588 = vmax.f32 %v2586, %v2587
      %v2589 = vrot.slane %v2588, 2
      %v2590 = vmax.f32 %v2588, %v2589
      %v2591 = vrot.slane %v2590, 1
      %v2592 = vmax.f32 %v2590, %v2591
      %v2593 = vsel %vm2494, %v2492, -inf
      %v2594 = vrot.slane %v2593, 4
      %v2595 = vmax.f32 %v2593, %v2594
      %v2596 = vrot.slane %v2595, 2
      %v2597 = vmax.f32 %v2595, %v2596
      %v2598 = vrot.slane %v2597, 1
      %v2599 = vmax.f32 %v2597, %v2598
      %v2600 = vsel %vm2494, %v2493, -inf
      %v2601 = vrot.slane %v2600, 4
      %v2602 = vmax.f32 %v2600, %v2601
      %v2603 = vrot.slane %v2602, 2
      %v2604 = vmax.f32 %v2602, %v2603
      %v2605 = vrot.slane %v2604, 1
      %v2606 = vmax.f32 %v2604, %v2605
      %v2607 = vsel %vm2462, 1, 0
      %v2608 = vsel %vm2463, 1, 0
      %v2609 = vsel %vm2464, 1, 0
      %v2610 = vsel %vm2465, 1, 0
      %v2611 = vsel %vm2466, 1, 0
      %v2612 = vsel %vm2467, 1, 0
      %v2613 = vsel %vm2468, 1, 0
      %v2614 = vsel %vm2469, 1, 0
      %v2615 = vsel %vm2470, 1, 0
      %v2616 = vsel %vm2471, 1, 0
      %v2617 = vsel %vm2472, 1, 0
      %v2618 = vsel %vm2473, 1, 0
      %v2619 = vsel %vm2474, 1, 0
      %v2620 = vsel %vm2475, 1, 0
      %v2621 = vsel %vm2476, 1, 0
      %v2622 = vsel %vm2477, 1, 0
      %v2623 = vcvt.s32.f32 %v2607
      %v2624 = vcvt.s32.f32 %v2608
      %v2625 = vcvt.s32.f32 %v2609
      %v2626 = vcvt.s32.f32 %v2610
      %v2627 = vcvt.s32.f32 %v2611
      %v2628 = vcvt.s32.f32 %v2612
      %v2629 = vcvt.s32.f32 %v2613
      %v2630 = vcvt.s32.f32 %v2614
      %v2631 = vcvt.s32.f32 %v2615
      %v2632 = vcvt.s32.f32 %v2616
      %v2633 = vcvt.s32.f32 %v2617
      %v2634 = vcvt.s32.f32 %v2618
      %v2635 = vcvt.s32.f32 %v2619
      %v2636 = vcvt.s32.f32 %v2620
      %v2637 = vcvt.s32.f32 %v2621
      %v2638 = vcvt.s32.f32 %v2622
      %v2639 = vsel %vm2494, %v2623, -inf
      %v2640 = vrot.slane %v2639, 4
      %v2641 = vmax.f32 %v2639, %v2640
      %v2642 = vrot.slane %v2641, 2
      %v2643 = vmax.f32 %v2641, %v2642
      %v2644 = vrot.slane %v2643, 1
      %v2645 = vmax.f32 %v2643, %v2644
      %v2646 = vsel %vm2494, %v2624, -inf
      %v2647 = vrot.slane %v2646, 4
      %v2648 = vmax.f32 %v2646, %v2647
      %v2649 = vrot.slane %v2648, 2
      %v2650 = vmax.f32 %v2648, %v2649
      %v2651 = vrot.slane %v2650, 1
      %v2652 = vmax.f32 %v2650, %v2651
      %v2653 = vsel %vm2494, %v2625, -inf
      %v2654 = vrot.slane %v2653, 4
      %v2655 = vmax.f32 %v2653, %v2654
      %v2656 = vrot.slane %v2655, 2
      %v2657 = vmax.f32 %v2655, %v2656
      %v2658 = vrot.slane %v2657, 1
      %v2659 = vmax.f32 %v2657, %v2658
      %v2660 = vsel %vm2494, %v2626, -inf
      %v2661 = vrot.slane %v2660, 4
      %v2662 = vmax.f32 %v2660, %v2661
      %v2663 = vrot.slane %v2662, 2
      %v2664 = vmax.f32 %v2662, %v2663
      %v2665 = vrot.slane %v2664, 1
      %v2666 = vmax.f32 %v2664, %v2665
      %v2667 = vsel %vm2494, %v2627, -inf
      %v2668 = vrot.slane %v2667, 4
      %v2669 = vmax.f32 %v2667, %v2668
      %v2670 = vrot.slane %v2669, 2
      %v2671 = vmax.f32 %v2669, %v2670
      %v2672 = vrot.slane %v2671, 1
      %v2673 = vmax.f32 %v2671, %v2672
      %v2674 = vsel %vm2494, %v2628, -inf
      %v2675 = vrot.slane %v2674, 4
      %v2676 = vmax.f32 %v2674, %v2675
      %v2677 = vrot.slane %v2676, 2
      %v2678 = vmax.f32 %v2676, %v2677
      %v2679 = vrot.slane %v2678, 1
      %v2680 = vmax.f32 %v2678, %v2679
      %v2681 = vsel %vm2494, %v2629, -inf
      %v2682 = vrot.slane %v2681, 4
      %v2683 = vmax.f32 %v2681, %v2682
      %v2684 = vrot.slane %v2683, 2
      %v2685 = vmax.f32 %v2683, %v2684
      %v2686 = vrot.slane %v2685, 1
      %v2687 = vmax.f32 %v2685, %v2686
      %v2688 = vsel %vm2494, %v2630, -inf
      %v2689 = vrot.slane %v2688, 4
      %v2690 = vmax.f32 %v2688, %v2689
      %v2691 = vrot.slane %v2690, 2
      %v2692 = vmax.f32 %v2690, %v2691
      %v2693 = vrot.slane %v2692, 1
      %v2694 = vmax.f32 %v2692, %v2693
      %v2695 = vsel %vm2494, %v2631, -inf
      %v2696 = vrot.slane %v2695, 4
      %v2697 = vmax.f32 %v2695, %v2696
      %v2698 = vrot.slane %v2697, 2
      %v2699 = vmax.f32 %v2697, %v2698
      %v2700 = vrot.slane %v2699, 1
      %v2701 = vmax.f32 %v2699, %v2700
      %v2702 = vsel %vm2494, %v2632, -inf
      %v2703 = vrot.slane %v2702, 4
      %v2704 = vmax.f32 %v2702, %v2703
      %v2705 = vrot.slane %v2704, 2
      %v2706 = vmax.f32 %v2704, %v2705
      %v2707 = vrot.slane %v2706, 1
      %v2708 = vmax.f32 %v2706, %v2707
      %v2709 = vsel %vm2494, %v2633, -inf
      %v2710 = vrot.slane %v2709, 4
      %v2711 = vmax.f32 %v2709, %v2710
      %v2712 = vrot.slane %v2711, 2
      %v2713 = vmax.f32 %v2711, %v2712
      %v2714 = vrot.slane %v2713, 1
      %v2715 = vmax.f32 %v2713, %v2714
      %v2716 = vsel %vm2494, %v2634, -inf
      %v2717 = vrot.slane %v2716, 4
      %v2718 = vmax.f32 %v2716, %v2717
      %v2719 = vrot.slane %v2718, 2
      %v2720 = vmax.f32 %v2718, %v2719
      %v2721 = vrot.slane %v2720, 1
      %v2722 = vmax.f32 %v2720, %v2721
      %v2723 = vsel %vm2494, %v2635, -inf
      %v2724 = vrot.slane %v2723, 4
      %v2725 = vmax.f32 %v2723, %v2724
      %v2726 = vrot.slane %v2725, 2
      %v2727 = vmax.f32 %v2725, %v2726
      %v2728 = vrot.slane %v2727, 1
      %v2729 = vmax.f32 %v2727, %v2728
      %v2730 = vsel %vm2494, %v2636, -inf
      %v2731 = vrot.slane %v2730, 4
      %v2732 = vmax.f32 %v2730, %v2731
      %v2733 = vrot.slane %v2732, 2
      %v2734 = vmax.f32 %v2732, %v2733
      %v2735 = vrot.slane %v2734, 1
      %v2736 = vmax.f32 %v2734, %v2735
      %v2737 = vsel %vm2494, %v2637, -inf
      %v2738 = vrot.slane %v2737, 4
      %v2739 = vmax.f32 %v2737, %v2738
      %v2740 = vrot.slane %v2739, 2
      %v2741 = vmax.f32 %v2739, %v2740
      %v2742 = vrot.slane %v2741, 1
      %v2743 = vmax.f32 %v2741, %v2742
      %v2744 = vsel %vm2494, %v2638, -inf
      %v2745 = vrot.slane %v2744, 4
      %v2746 = vmax.f32 %v2744, %v2745
      %v2747 = vrot.slane %v2746, 2
      %v2748 = vmax.f32 %v2746, %v2747
      %v2749 = vrot.slane %v2748, 1
      %v2750 = vmax.f32 %v2748, %v2749
      %vm2751 = vcmp.gt.f32.partialorder %v2645, 0.0
      %vm2752 = vcmp.gt.f32.partialorder %v2652, 0.0
      %vm2753 = vcmp.gt.f32.partialorder %v2659, 0.0
      %vm2754 = vcmp.gt.f32.partialorder %v2666, 0.0
      %vm2755 = vcmp.gt.f32.partialorder %v2673, 0.0
      %vm2756 = vcmp.gt.f32.partialorder %v2680, 0.0
      %vm2757 = vcmp.gt.f32.partialorder %v2687, 0.0
      %vm2758 = vcmp.gt.f32.partialorder %v2694, 0.0
      %vm2759 = vcmp.gt.f32.partialorder %v2701, 0.0
      %vm2760 = vcmp.gt.f32.partialorder %v2708, 0.0
      %vm2761 = vcmp.gt.f32.partialorder %v2715, 0.0
      %vm2762 = vcmp.gt.f32.partialorder %v2722, 0.0
      %vm2763 = vcmp.gt.f32.partialorder %v2729, 0.0
      %vm2764 = vcmp.gt.f32.partialorder %v2736, 0.0
      %vm2765 = vcmp.gt.f32.partialorder %v2743, 0.0
      %vm2766 = vcmp.gt.f32.partialorder %v2750, 0.0
      %v2767 = vsel %vm2751, %v2501, 0.0
      %v2768 = vsel %vm2752, %v2508, 0.0
      %v2769 = vsel %vm2753, %v2515, 0.0
      %v2770 = vsel %vm2754, %v2522, 0.0
      %v2771 = vsel %vm2755, %v2529, 0.0
      %v2772 = vsel %vm2756, %v2536, 0.0
      %v2773 = vsel %vm2757, %v2543, 0.0
      %v2774 = vsel %vm2758, %v2550, 0.0
      %v2775 = vsel %vm2759, %v2557, 0.0
      %v2776 = vsel %vm2760, %v2564, 0.0
      %v2777 = vsel %vm2761, %v2571, 0.0
      %v2778 = vsel %vm2762, %v2578, 0.0
      %v2779 = vsel %vm2763, %v2585, 0.0
      %v2780 = vsel %vm2764, %v2592, 0.0
      %v2781 = vsel %vm2765, %v2599, 0.0
      %v2782 = vsel %vm2766, %v2606, 0.0
      %vm2783 = vcmp.eq.f32.partialorder %v249, 1.0
      %vm2784 = vcmp.eq.f32.partialorder %v251, 1.0
      %vm2785 = vcmp.eq.f32.partialorder %v253, 1.0
      %vm2786 = vcmp.eq.f32.partialorder %v255, 1.0
      %vm2787 = vcmp.eq.f32.partialorder %v257, 1.0
      %vm2788 = vcmp.eq.f32.partialorder %v259, 1.0
      %vm2789 = vcmp.eq.f32.partialorder %v261, 1.0
      %vm2790 = vcmp.eq.f32.partialorder %v263, 1.0
      %vm2791 = vcmp.eq.f32.partialorder %v265, 1.0
      %vm2792 = vcmp.eq.f32.partialorder %v267, 1.0
      %vm2793 = vcmp.eq.f32.partialorder %v269, 1.0
      %vm2794 = vcmp.eq.f32.partialorder %v271, 1.0
      %vm2795 = vcmp.eq.f32.partialorder %v273, 1.0
      %vm2796 = vcmp.eq.f32.partialorder %v275, 1.0
      %vm2797 = vcmp.eq.f32.partialorder %v277, 1.0
      %vm2798 = vcmp.eq.f32.partialorder %v279, 1.0
      %v2799 = vsel %vm2783, %v2224, -inf
      %v2800 = vsel %vm2784, %v2229, -inf
      %v2801 = vsel %vm2785, %v2234, -inf
      %v2802 = vsel %vm2786, %v2239, -inf
      %v2803 = vsel %vm2787, %v2244, -inf
      %v2804 = vsel %vm2788, %v2249, -inf
      %v2805 = vsel %vm2789, %v2254, -inf
      %v2806 = vsel %vm2790, %v2259, -inf
      %v2807 = vsel %vm2791, %v2264, -inf
      %v2808 = vsel %vm2792, %v2269, -inf
      %v2809 = vsel %vm2793, %v2274, -inf
      %v2810 = vsel %vm2794, %v2279, -inf
      %v2811 = vsel %vm2795, %v2284, -inf
      %v2812 = vsel %vm2796, %v2289, -inf
      %v2813 = vsel %vm2797, %v2294, -inf
      %v2814 = vsel %vm2798, %v2299, -inf
      %vm2815 = vcmask 97344
      %v2816 = vsel %vm2815, %v2799, -inf
      %v2817 = vrot.slane %v2816, 4
      %v2818 = vmax.f32 %v2816, %v2817
      %v2819 = vrot.slane %v2818, 2
      %v2820 = vmax.f32 %v2818, %v2819
      %v2821 = vrot.slane %v2820, 1
      %v2822 = vmax.f32 %v2820, %v2821
      %v2823 = vsel %vm2815, %v2800, -inf
      %v2824 = vrot.slane %v2823, 4
      %v2825 = vmax.f32 %v2823, %v2824
      %v2826 = vrot.slane %v2825, 2
      %v2827 = vmax.f32 %v2825, %v2826
      %v2828 = vrot.slane %v2827, 1
      %v2829 = vmax.f32 %v2827, %v2828
      %v2830 = vsel %vm2815, %v2801, -inf
      %v2831 = vrot.slane %v2830, 4
      %v2832 = vmax.f32 %v2830, %v2831
      %v2833 = vrot.slane %v2832, 2
      %v2834 = vmax.f32 %v2832, %v2833
      %v2835 = vrot.slane %v2834, 1
      %v2836 = vmax.f32 %v2834, %v2835
      %v2837 = vsel %vm2815, %v2802, -inf
      %v2838 = vrot.slane %v2837, 4
      %v2839 = vmax.f32 %v2837, %v2838
      %v2840 = vrot.slane %v2839, 2
      %v2841 = vmax.f32 %v2839, %v2840
      %v2842 = vrot.slane %v2841, 1
      %v2843 = vmax.f32 %v2841, %v2842
      %v2844 = vsel %vm2815, %v2803, -inf
      %v2845 = vrot.slane %v2844, 4
      %v2846 = vmax.f32 %v2844, %v2845
      %v2847 = vrot.slane %v2846, 2
      %v2848 = vmax.f32 %v2846, %v2847
      %v2849 = vrot.slane %v2848, 1
      %v2850 = vmax.f32 %v2848, %v2849
      %v2851 = vsel %vm2815, %v2804, -inf
      %v2852 = vrot.slane %v2851, 4
      %v2853 = vmax.f32 %v2851, %v2852
      %v2854 = vrot.slane %v2853, 2
      %v2855 = vmax.f32 %v2853, %v2854
      %v2856 = vrot.slane %v2855, 1
      %v2857 = vmax.f32 %v2855, %v2856
      %v2858 = vsel %vm2815, %v2805, -inf
      %v2859 = vrot.slane %v2858, 4
      %v2860 = vmax.f32 %v2858, %v2859
      %v2861 = vrot.slane %v2860, 2
      %v2862 = vmax.f32 %v2860, %v2861
      %v2863 = vrot.slane %v2862, 1
      %v2864 = vmax.f32 %v2862, %v2863
      %v2865 = vsel %vm2815, %v2806, -inf
      %v2866 = vrot.slane %v2865, 4
      %v2867 = vmax.f32 %v2865, %v2866
      %v2868 = vrot.slane %v2867, 2
      %v2869 = vmax.f32 %v2867, %v2868
      %v2870 = vrot.slane %v2869, 1
      %v2871 = vmax.f32 %v2869, %v2870
      %v2872 = vsel %vm2815, %v2807, -inf
      %v2873 = vrot.slane %v2872, 4
      %v2874 = vmax.f32 %v2872, %v2873
      %v2875 = vrot.slane %v2874, 2
      %v2876 = vmax.f32 %v2874, %v2875
      %v2877 = vrot.slane %v2876, 1
      %v2878 = vmax.f32 %v2876, %v2877
      %v2879 = vsel %vm2815, %v2808, -inf
      %v2880 = vrot.slane %v2879, 4
      %v2881 = vmax.f32 %v2879, %v2880
      %v2882 = vrot.slane %v2881, 2
      %v2883 = vmax.f32 %v2881, %v2882
      %v2884 = vrot.slane %v2883, 1
      %v2885 = vmax.f32 %v2883, %v2884
      %v2886 = vsel %vm2815, %v2809, -inf
      %v2887 = vrot.slane %v2886, 4
      %v2888 = vmax.f32 %v2886, %v2887
      %v2889 = vrot.slane %v2888, 2
      %v2890 = vmax.f32 %v2888, %v2889
      %v2891 = vrot.slane %v2890, 1
      %v2892 = vmax.f32 %v2890, %v2891
      %v2893 = vsel %vm2815, %v2810, -inf
      %v2894 = vrot.slane %v2893, 4
      %v2895 = vmax.f32 %v2893, %v2894
      %v2896 = vrot.slane %v2895, 2
      %v2897 = vmax.f32 %v2895, %v2896
      %v2898 = vrot.slane %v2897, 1
      %v2899 = vmax.f32 %v2897, %v2898
      %v2900 = vsel %vm2815, %v2811, -inf
      %v2901 = vrot.slane %v2900, 4
      %v2902 = vmax.f32 %v2900, %v2901
      %v2903 = vrot.slane %v2902, 2
      %v2904 = vmax.f32 %v2902, %v2903
      %v2905 = vrot.slane %v2904, 1
      %v2906 = vmax.f32 %v2904, %v2905
      %v2907 = vsel %vm2815, %v2812, -inf
      %v2908 = vrot.slane %v2907, 4
      %v2909 = vmax.f32 %v2907, %v2908
      %v2910 = vrot.slane %v2909, 2
      %v2911 = vmax.f32 %v2909, %v2910
      %v2912 = vrot.slane %v2911, 1
      %v2913 = vmax.f32 %v2911, %v2912
      %v2914 = vsel %vm2815, %v2813, -inf
      %v2915 = vrot.slane %v2914, 4
      %v2916 = vmax.f32 %v2914, %v2915
      %v2917 = vrot.slane %v2916, 2
      %v2918 = vmax.f32 %v2916, %v2917
      %v2919 = vrot.slane %v2918, 1
      %v2920 = vmax.f32 %v2918, %v2919
      %v2921 = vsel %vm2815, %v2814, -inf
      %v2922 = vrot.slane %v2921, 4
      %v2923 = vmax.f32 %v2921, %v2922
      %v2924 = vrot.slane %v2923, 2
      %v2925 = vmax.f32 %v2923, %v2924
      %v2926 = vrot.slane %v2925, 1
      %v2927 = vmax.f32 %v2925, %v2926
      %v2928 = vsel %vm2783, 1, 0
      %v2929 = vsel %vm2784, 1, 0
      %v2930 = vsel %vm2785, 1, 0
      %v2931 = vsel %vm2786, 1, 0
      %v2932 = vsel %vm2787, 1, 0
      %v2933 = vsel %vm2788, 1, 0
      %v2934 = vsel %vm2789, 1, 0
      %v2935 = vsel %vm2790, 1, 0
      %v2936 = vsel %vm2791, 1, 0
      %v2937 = vsel %vm2792, 1, 0
      %v2938 = vsel %vm2793, 1, 0
      %v2939 = vsel %vm2794, 1, 0
      %v2940 = vsel %vm2795, 1, 0
      %v2941 = vsel %vm2796, 1, 0
      %v2942 = vsel %vm2797, 1, 0
      %v2943 = vsel %vm2798, 1, 0
      %v2944 = vcvt.s32.f32 %v2928
      %v2945 = vcvt.s32.f32 %v2929
      %v2946 = vcvt.s32.f32 %v2930
      %v2947 = vcvt.s32.f32 %v2931
      %v2948 = vcvt.s32.f32 %v2932
      %v2949 = vcvt.s32.f32 %v2933
      %v2950 = vcvt.s32.f32 %v2934
      %v2951 = vcvt.s32.f32 %v2935
      %v2952 = vcvt.s32.f32 %v2936
      %v2953 = vcvt.s32.f32 %v2937
      %v2954 = vcvt.s32.f32 %v2938
      %v2955 = vcvt.s32.f32 %v2939
      %v2956 = vcvt.s32.f32 %v2940
      %v2957 = vcvt.s32.f32 %v2941
      %v2958 = vcvt.s32.f32 %v2942
      %v2959 = vcvt.s32.f32 %v2943
      %v2960 = vsel %vm2815, %v2944, -inf
      %v2961 = vrot.slane %v2960, 4
      %v2962 = vmax.f32 %v2960, %v2961
      %v2963 = vrot.slane %v2962, 2
      %v2964 = vmax.f32 %v2962, %v2963
      %v2965 = vrot.slane %v2964, 1
      %v2966 = vmax.f32 %v2964, %v2965
      %v2967 = vsel %vm2815, %v2945, -inf
      %v2968 = vrot.slane %v2967, 4
      %v2969 = vmax.f32 %v2967, %v2968
      %v2970 = vrot.slane %v2969, 2
      %v2971 = vmax.f32 %v2969, %v2970
      %v2972 = vrot.slane %v2971, 1
      %v2973 = vmax.f32 %v2971, %v2972
      %v2974 = vsel %vm2815, %v2946, -inf
      %v2975 = vrot.slane %v2974, 4
      %v2976 = vmax.f32 %v2974, %v2975
      %v2977 = vrot.slane %v2976, 2
      %v2978 = vmax.f32 %v2976, %v2977
      %v2979 = vrot.slane %v2978, 1
      %v2980 = vmax.f32 %v2978, %v2979
      %v2981 = vsel %vm2815, %v2947, -inf
      %v2982 = vrot.slane %v2981, 4
      %v2983 = vmax.f32 %v2981, %v2982
      %v2984 = vrot.slane %v2983, 2
      %v2985 = vmax.f32 %v2983, %v2984
      %v2986 = vrot.slane %v2985, 1
      %v2987 = vmax.f32 %v2985, %v2986
      %v2988 = vsel %vm2815, %v2948, -inf
      %v2989 = vrot.slane %v2988, 4
      %v2990 = vmax.f32 %v2988, %v2989
      %v2991 = vrot.slane %v2990, 2
      %v2992 = vmax.f32 %v2990, %v2991
      %v2993 = vrot.slane %v2992, 1
      %v2994 = vmax.f32 %v2992, %v2993
      %v2995 = vsel %vm2815, %v2949, -inf
      %v2996 = vrot.slane %v2995, 4
      %v2997 = vmax.f32 %v2995, %v2996
      %v2998 = vrot.slane %v2997, 2
      %v2999 = vmax.f32 %v2997, %v2998
      %v3000 = vrot.slane %v2999, 1
      %v3001 = vmax.f32 %v2999, %v3000
      %v3002 = vsel %vm2815, %v2950, -inf
      %v3003 = vrot.slane %v3002, 4
      %v3004 = vmax.f32 %v3002, %v3003
      %v3005 = vrot.slane %v3004, 2
      %v3006 = vmax.f32 %v3004, %v3005
      %v3007 = vrot.slane %v3006, 1
      %v3008 = vmax.f32 %v3006, %v3007
      %v3009 = vsel %vm2815, %v2951, -inf
      %v3010 = vrot.slane %v3009, 4
      %v3011 = vmax.f32 %v3009, %v3010
      %v3012 = vrot.slane %v3011, 2
      %v3013 = vmax.f32 %v3011, %v3012
      %v3014 = vrot.slane %v3013, 1
      %v3015 = vmax.f32 %v3013, %v3014
      %v3016 = vsel %vm2815, %v2952, -inf
      %v3017 = vrot.slane %v3016, 4
      %v3018 = vmax.f32 %v3016, %v3017
      %v3019 = vrot.slane %v3018, 2
      %v3020 = vmax.f32 %v3018, %v3019
      %v3021 = vrot.slane %v3020, 1
      %v3022 = vmax.f32 %v3020, %v3021
      %v3023 = vsel %vm2815, %v2953, -inf
      %v3024 = vrot.slane %v3023, 4
      %v3025 = vmax.f32 %v3023, %v3024
      %v3026 = vrot.slane %v3025, 2
      %v3027 = vmax.f32 %v3025, %v3026
      %v3028 = vrot.slane %v3027, 1
      %v3029 = vmax.f32 %v3027, %v3028
      %v3030 = vsel %vm2815, %v2954, -inf
      %v3031 = vrot.slane %v3030, 4
      %v3032 = vmax.f32 %v3030, %v3031
      %v3033 = vrot.slane %v3032, 2
      %v3034 = vmax.f32 %v3032, %v3033
      %v3035 = vrot.slane %v3034, 1
      %v3036 = vmax.f32 %v3034, %v3035
      %v3037 = vsel %vm2815, %v2955, -inf
      %v3038 = vrot.slane %v3037, 4
      %v3039 = vmax.f32 %v3037, %v3038
      %v3040 = vrot.slane %v3039, 2
      %v3041 = vmax.f32 %v3039, %v3040
      %v3042 = vrot.slane %v3041, 1
      %v3043 = vmax.f32 %v3041, %v3042
      %v3044 = vsel %vm2815, %v2956, -inf
      %v3045 = vrot.slane %v3044, 4
      %v3046 = vmax.f32 %v3044, %v3045
      %v3047 = vrot.slane %v3046, 2
      %v3048 = vmax.f32 %v3046, %v3047
      %v3049 = vrot.slane %v3048, 1
      %v3050 = vmax.f32 %v3048, %v3049
      %v3051 = vsel %vm2815, %v2957, -inf
      %v3052 = vrot.slane %v3051, 4
      %v3053 = vmax.f32 %v3051, %v3052
      %v3054 = vrot.slane %v3053, 2
      %v3055 = vmax.f32 %v3053, %v3054
      %v3056 = vrot.slane %v3055, 1
      %v3057 = vmax.f32 %v3055, %v3056
      %v3058 = vsel %vm2815, %v2958, -inf
      %v3059 = vrot.slane %v3058, 4
      %v3060 = vmax.f32 %v3058, %v3059
      %v3061 = vrot.slane %v3060, 2
      %v3062 = vmax.f32 %v3060, %v3061
      %v3063 = vrot.slane %v3062, 1
      %v3064 = vmax.f32 %v3062, %v3063
      %v3065 = vsel %vm2815, %v2959, -inf
      %v3066 = vrot.slane %v3065, 4
      %v3067 = vmax.f32 %v3065, %v3066
      %v3068 = vrot.slane %v3067, 2
      %v3069 = vmax.f32 %v3067, %v3068
      %v3070 = vrot.slane %v3069, 1
      %v3071 = vmax.f32 %v3069, %v3070
      %vm3072 = vcmp.gt.f32.partialorder %v2966, 0.0
      %vm3073 = vcmp.gt.f32.partialorder %v2973, 0.0
      %vm3074 = vcmp.gt.f32.partialorder %v2980, 0.0
      %vm3075 = vcmp.gt.f32.partialorder %v2987, 0.0
      %vm3076 = vcmp.gt.f32.partialorder %v2994, 0.0
      %vm3077 = vcmp.gt.f32.partialorder %v3001, 0.0
      %vm3078 = vcmp.gt.f32.partialorder %v3008, 0.0
      %vm3079 = vcmp.gt.f32.partialorder %v3015, 0.0
      %vm3080 = vcmp.gt.f32.partialorder %v3022, 0.0
      %vm3081 = vcmp.gt.f32.partialorder %v3029, 0.0
      %vm3082 = vcmp.gt.f32.partialorder %v3036, 0.0
      %vm3083 = vcmp.gt.f32.partialorder %v3043, 0.0
      %vm3084 = vcmp.gt.f32.partialorder %v3050, 0.0
      %vm3085 = vcmp.gt.f32.partialorder %v3057, 0.0
      %vm3086 = vcmp.gt.f32.partialorder %v3064, 0.0
      %vm3087 = vcmp.gt.f32.partialorder %v3071, 0.0
      %v3088 = vsel %vm3072, %v2822, 0.0
      %v3089 = vsel %vm3073, %v2829, 0.0
      %v3090 = vsel %vm3074, %v2836, 0.0
      %v3091 = vsel %vm3075, %v2843, 0.0
      %v3092 = vsel %vm3076, %v2850, 0.0
      %v3093 = vsel %vm3077, %v2857, 0.0
      %v3094 = vsel %vm3078, %v2864, 0.0
      %v3095 = vsel %vm3079, %v2871, 0.0
      %v3096 = vsel %vm3080, %v2878, 0.0
      %v3097 = vsel %vm3081, %v2885, 0.0
      %v3098 = vsel %vm3082, %v2892, 0.0
      %v3099 = vsel %vm3083, %v2899, 0.0
      %v3100 = vsel %vm3084, %v2906, 0.0
      %v3101 = vsel %vm3085, %v2913, 0.0
      %v3102 = vsel %vm3086, %v2920, 0.0
      %v3103 = vsel %vm3087, %v2927, 0.0
      %v3104 = vld [vmem:[%s234] sm:$0xff]
      %v3105 = vld [vmem:[%s234 + $0x8] sm:$0xff]
      %v3106 = vld [vmem:[%s3 + $0x2e0] sm:$0xff]
      %v3107 = vld [vmem:[%s3 + $0x2f0] sm:$0xff]
      %v3108 = vld [vmem:[%s3 + $0x300] sm:$0xff]
      %v3109 = vld [vmem:[%s3 + $0x310] ss:$0 sm:$0xff]
      %v3111 = vsel %vm299, %v3104, 0
      %v3114 = vsel %vm299, %v3105, 0
      %3116 = vmatprep.subr.mxu0 0.0
      %3117 = vmatpush1.msra.mxu0 %v3106
      %3118 = vmatprep.subr.mxu0 0.0
      %3119 = vmatpush1.msra.mxu0 %v3107
      %3120 = vmatprep.subr.mxu0 0.0
      %3121 = vmatpush1.msra.mxu0 %v3108
      %3122 = vmatprep.subr.mxu0 0.0
      %3123 = vmatpush1.msra.mxu0 0.0
      %3124 = vmatprep.subr.mxu0 0.0
      %3125 = vmatpush1.msra.mxu0 0.0
      %3126 = vmatprep.subr.mxu0 0.0
      %3127 = vmatpush1.msra.mxu0 0.0
      %3128 = vmatprep.subr.mxu0 0.0
      %3129 = vmatpush1.msra.mxu0 0.0
      %3130 = vmatprep.subr.mxu0 0.0
      %3131 = vmatpush1.msra.mxu0 0.0
      %3132 = vmatprep.subr.mxu0 0.0
      %3133 = vmatpush1.msra.mxu0 0.0
      %3134 = vmatprep.subr.mxu0 0.0
      %3135 = vmatpush1.msra.mxu0 0.0
      %3136 = vmatprep.subr.mxu0 0.0
      %3137 = vmatpush1.msra.mxu0 0.0
      %3138 = vmatprep.subr.mxu0 0.0
      %3139 = vmatpush1.msra.mxu0 0.0
      %3140 = vmatprep.subr.mxu0 0.0
      %3141 = vmatpush1.msra.mxu0 0.0
      %3142 = vmatprep.subr.mxu0 0.0
      %3143 = vmatpush1.msra.mxu0 0.0
      %3144 = vmatprep.subr.mxu0 0.0
      %3145 = vmatpush1.msra.mxu0 0.0
      %3146 = vmatprep.subr.mxu0 0.0
      %3147 = vmatpush1.msra.mxu0 0.0
      %3148 = vmatprep.subr.mxu0 0.0
      %3149 = vmatpush1.msra.mxu0 0.0
      %3150 = vmatprep.subr.mxu0 0.0
      %3151 = vmatpush1.msra.mxu0 0.0
      %3152 = vmatprep.subr.mxu0 0.0
      %3153 = vmatpush1.msra.mxu0 0.0
      %3154 = vmatprep.subr.mxu0 0.0
      %3155 = vmatpush1.msra.mxu0 0.0
      %3156 = vmatprep.subr.mxu0 0.0
      %3157 = vmatpush1.msra.mxu0 0.0
      %3158 = vmatprep.subr.mxu0 0.0
      %3159 = vmatpush1.msra.mxu0 0.0
      %3160 = vmatprep.subr.mxu0 0.0
      %3161 = vmatpush1.msra.mxu0 0.0
      %3162 = vmatprep.subr.mxu0 0.0
      %3163 = vmatpush1.msra.mxu0 0.0
      %3164 = vmatprep.subr.mxu0 0.0
      %3165 = vmatpush1.msra.mxu0 0.0
      %3166 = vmatprep.subr.mxu0 0.0
      %3167 = vmatpush1.msra.mxu0 0.0
      %3168 = vmatprep.subr.mxu0 0.0
      %3169 = vmatpush1.msra.mxu0 0.0
      %3170 = vmatprep.subr.mxu0 0.0
      %3171 = vmatpush1.msra.mxu0 0.0
      %3172 = vmatprep.subr.mxu0 0.0
      %3173 = vmatpush1.msra.mxu0 0.0
      %3174 = vmatprep.subr.mxu0 0.0
      %3175 = vmatpush1.msra.mxu0 0.0
      %3176 = vmatprep.subr.mxu0 0.0
      %3177 = vmatpush1.msra.mxu0 0.0
      %3178 = vmatprep.subr.mxu0 0.0
      %3179 = vmatpush1.msra.mxu0 0.0
      %3180 = vmatprep.mubr.f32.mxu0 0.0
      %3181 = vmatmul.mubr.f32.gmra.mrb[0].mxu0 %v3111
      %v3182 = vpop.f32.mrb[0].mxu0
      %v3183 = vadd.f32 %v3109, %v3182
      %v3184 = vpop.f32.mrb[0].mxu0
      %3185 = vmatprep.mubr.f32.mxu0 0.0
      %3186 = vmatmul.mubr.f32.gmra.mrb[0].mxu0 %v3114
      %v3187 = vpop.f32.mrb[0].mxu0
      %v3188 = vadd.f32 %v3109, %v3187
      %v3189 = vpop.f32.mrb[0].mxu0
      %3190 = vdwg.mxu0
      %v3191 = vmax.f32 %v3183, 0.0
      %v3192 = vmax.f32 %v3188, 0.0
      %v3193 = vld [vmem:[%s3 + $0x320] sm:$0xff]
      %v3194 = vld [vmem:[%s3 + $0x330] sm:$0xff]
      %v3195 = vld [vmem:[%s3 + $0x340] sm:$0xff]
      %v3196 = vld [vmem:[%s3 + $0x350] sm:$0xff]
      %v3197 = vld [vmem:[%s3 + $0x360] sm:$0xff]
      %v3198 = vld [vmem:[%s3 + $0x370] sm:$0xff]
      %v3199 = vld [vmem:[%s3 + $0x380] sm:$0xff]
      %v3200 = vld [vmem:[%s3 + $0x390] sm:$0xff]
      %v3201 = vld [vmem:[%s3 + $0x3a0] ss:$0 sm:$0xff]
      %v3203 = vsel %vm1280, %v3191, 0
      %v3206 = vsel %vm1280, %v3192, 0
      %3208 = vmatprep.subr.mxu0 0.0
      %3209 = vmatpush1.msra.mxu0 %v3193
      %3210 = vmatprep.subr.mxu0 0.0
      %3211 = vmatpush1.msra.mxu0 %v3194
      %3212 = vmatprep.subr.mxu0 0.0
      %3213 = vmatpush1.msra.mxu0 %v3195
      %3214 = vmatprep.subr.mxu0 0.0
      %3215 = vmatpush1.msra.mxu0 %v3196
      %3216 = vmatprep.subr.mxu0 0.0
      %3217 = vmatpush1.msra.mxu0 %v3197
      %3218 = vmatprep.subr.mxu0 0.0
      %3219 = vmatpush1.msra.mxu0 %v3198
      %3220 = vmatprep.subr.mxu0 0.0
      %3221 = vmatpush1.msra.mxu0 %v3199
      %3222 = vmatprep.subr.mxu0 0.0
      %3223 = vmatpush1.msra.mxu0 %v3200
      %3224 = vmatprep.subr.mxu0 0.0
      %3225 = vmatpush1.msra.mxu0 0.0
      %3226 = vmatprep.subr.mxu0 0.0
      %3227 = vmatpush1.msra.mxu0 0.0
      %3228 = vmatprep.subr.mxu0 0.0
      %3229 = vmatpush1.msra.mxu0 0.0
      %3230 = vmatprep.subr.mxu0 0.0
      %3231 = vmatpush1.msra.mxu0 0.0
      %3232 = vmatprep.subr.mxu0 0.0
      %3233 = vmatpush1.msra.mxu0 0.0
      %3234 = vmatprep.subr.mxu0 0.0
      %3235 = vmatpush1.msra.mxu0 0.0
      %3236 = vmatprep.subr.mxu0 0.0
      %3237 = vmatpush1.msra.mxu0 0.0
      %3238 = vmatprep.subr.mxu0 0.0
      %3239 = vmatpush1.msra.mxu0 0.0
      %3240 = vmatprep.subr.mxu0 0.0
      %3241 = vmatpush1.msra.mxu0 0.0
      %3242 = vmatprep.subr.mxu0 0.0
      %3243 = vmatpush1.msra.mxu0 0.0
      %3244 = vmatprep.subr.mxu0 0.0
      %3245 = vmatpush1.msra.mxu0 0.0
      %3246 = vmatprep.subr.mxu0 0.0
      %3247 = vmatpush1.msra.mxu0 0.0
      %3248 = vmatprep.subr.mxu0 0.0
      %3249 = vmatpush1.msra.mxu0 0.0
      %3250 = vmatprep.subr.mxu0 0.0
      %3251 = vmatpush1.msra.mxu0 0.0
      %3252 = vmatprep.subr.mxu0 0.0
      %3253 = vmatpush1.msra.mxu0 0.0
      %3254 = vmatprep.subr.mxu0 0.0
      %3255 = vmatpush1.msra.mxu0 0.0
      %3256 = vmatprep.subr.mxu0 0.0
      %3257 = vmatpush1.msra.mxu0 0.0
      %3258 = vmatprep.subr.mxu0 0.0
      %3259 = vmatpush1.msra.mxu0 0.0
      %3260 = vmatprep.subr.mxu0 0.0
      %3261 = vmatpush1.msra.mxu0 0.0
      %3262 = vmatprep.subr.mxu0 0.0
      %3263 = vmatpush1.msra.mxu0 0.0
      %3264 = vmatprep.subr.mxu0 0.0
      %3265 = vmatpush1.msra.mxu0 0.0
      %3266 = vmatprep.subr.mxu0 0.0
      %3267 = vmatpush1.msra.mxu0 0.0
      %3268 = vmatprep.subr.mxu0 0.0
      %3269 = vmatpush1.msra.mxu0 0.0
      %3270 = vmatprep.subr.mxu0 0.0
      %3271 = vmatpush1.msra.mxu0 0.0
      %3272 = vmatprep.mubr.f32.mxu0 0.0
      %3273 = vmatmul.mubr.f32.gmra.mrb[0].mxu0 %v3203
      %v3274 = vpop.f32.mrb[0].mxu0
      %v3275 = vadd.f32 %v3201, %v3274
      %v3276 = vpop.f32.mrb[0].mxu0
      %3277 = vmatprep.mubr.f32.mxu0 0.0
      %3278 = vmatmul.mubr.f32.gmra.mrb[0].mxu0 %v3206
      %v3279 = vpop.f32.mrb[0].mxu0
      %v3280 = vadd.f32 %v3201, %v3279
      %v3281 = vpop.f32.mrb[0].mxu0
      %3282 = vdwg.mxu0
      %vm3299 = vcmask 1041409
      %v3300 = vsel %vm3299, %v2768, %v2767
      %vm3301 = vcmask 1042434
      %v3302 = vsel %vm3301, %v2769, %v3300
      %vm3303 = vcmask 1043459
      %v3304 = vsel %vm3303, %v2770, %v3302
      %vm3305 = vcmask 1044484
      %v3306 = vsel %vm3305, %v2771, %v3304
      %vm3307 = vcmask 1045509
      %v3308 = vsel %vm3307, %v2772, %v3306
      %vm3309 = vcmask 1046534
      %v3310 = vsel %vm3309, %v2773, %v3308
      %vm3311 = vcmask 1047559
      %v3312 = vsel %vm3311, %v2774, %v3310
      %v3313 = vsel %vm3299, %v2776, %v2775
      %v3314 = vsel %vm3301, %v2777, %v3313
      %v3315 = vsel %vm3303, %v2778, %v3314
      %v3316 = vsel %vm3305, %v2779, %v3315
      %v3317 = vsel %vm3307, %v2780, %v3316
      %v3318 = vsel %vm3309, %v2781, %v3317
      %v3319 = vsel %vm3311, %v2782, %v3318
      %v3338 = vsel %vm3299, %v3089, %v3088
      %v3339 = vsel %vm3301, %v3090, %v3338
      %v3340 = vsel %vm3303, %v3091, %v3339
      %v3341 = vsel %vm3305, %v3092, %v3340
      %v3342 = vsel %vm3307, %v3093, %v3341
      %v3343 = vsel %vm3309, %v3094, %v3342
      %v3344 = vsel %vm3311, %v3095, %v3343
      %v3345 = vsel %vm3299, %v3097, %v3096
      %v3346 = vsel %vm3301, %v3098, %v3345
      %v3347 = vsel %vm3303, %v3099, %v3346
      %v3348 = vsel %vm3305, %v3100, %v3347
      %v3349 = vsel %vm3307, %v3101, %v3348
      %v3350 = vsel %vm3309, %v3102, %v3349
      %v3351 = vsel %vm3311, %v3103, %v3350
      %3352 = vrot.lane.b32.xlu0 %v3344, 124
      %v3353 = vpop.permute.xlu0 %3352
      %3354 = vrot.lane.b32.xlu0 %v3351, 124
      %v3355 = vpop.permute.xlu0 %3354
      %3360 = vrot.lane.b32.xlu0 %v3275, 8
      %v3361 = vpop.permute.xlu0 %3360
      %3362 = vrot.lane.b32.xlu0 %v3280, 8
      %v3363 = vpop.permute.xlu0 %3362
      %v3366 = vsel %vm2494, %v3312, %v3353
      %v3367 = vsel %vm2494, %v3319, %v3355
      %v3368 = vsel %vm1109, %v3366, %v3361
      %v3369 = vsel %vm1109, %v3367, %v3363
      %v3370 = vld [vmem:[%s3 + $0x3b0] sm:$0xff]
      %v3371 = vld [vmem:[%s3 + $0x3c0] sm:$0xff]
      %v3372 = vld [vmem:[%s3 + $0x3d0] sm:$0xff]
      %v3373 = vld [vmem:[%s3 + $0x3e0] ss:$0 sm:$0xff]
      %v3375 = vsel %vm299, %v3368, 0
      %v3378 = vsel %vm299, %v3369, 0
      %3380 = vmatprep.subr.mxu0 0.0
      %3381 = vmatpush1.msra.mxu0 %v3370
      %3382 = vmatprep.subr.mxu0 0.0
      %3383 = vmatpush1.msra.mxu0 %v3371
      %3384 = vmatprep.subr.mxu0 0.0
      %3385 = vmatpush1.msra.mxu0 %v3372
      %3386 = vmatprep.subr.mxu0 0.0
      %3387 = vmatpush1.msra.mxu0 0.0
      %3388 = vmatprep.subr.mxu0 0.0
      %3389 = vmatpush1.msra.mxu0 0.0
      %3390 = vmatprep.subr.mxu0 0.0
      %3391 = vmatpush1.msra.mxu0 0.0
      %3392 = vmatprep.subr.mxu0 0.0
      %3393 = vmatpush1.msra.mxu0 0.0
      %3394 = vmatprep.subr.mxu0 0.0
      %3395 = vmatpush1.msra.mxu0 0.0
      %3396 = vmatprep.subr.mxu0 0.0
      %3397 = vmatpush1.msra.mxu0 0.0
      %3398 = vmatprep.subr.mxu0 0.0
      %3399 = vmatpush1.msra.mxu0 0.0
      %3400 = vmatprep.subr.mxu0 0.0
      %3401 = vmatpush1.msra.mxu0 0.0
      %3402 = vmatprep.subr.mxu0 0.0
      %3403 = vmatpush1.msra.mxu0 0.0
      %3404 = vmatprep.subr.mxu0 0.0
      %3405 = vmatpush1.msra.mxu0 0.0
      %3406 = vmatprep.subr.mxu0 0.0
      %3407 = vmatpush1.msra.mxu0 0.0
      %3408 = vmatprep.subr.mxu0 0.0
      %3409 = vmatpush1.msra.mxu0 0.0
      %3410 = vmatprep.subr.mxu0 0.0
      %3411 = vmatpush1.msra.mxu0 0.0
      %3412 = vmatprep.subr.mxu0 0.0
      %3413 = vmatpush1.msra.mxu0 0.0
      %3414 = vmatprep.subr.mxu0 0.0
      %3415 = vmatpush1.msra.mxu0 0.0
      %3416 = vmatprep.subr.mxu0 0.0
      %3417 = vmatpush1.msra.mxu0 0.0
      %3418 = vmatprep.subr.mxu0 0.0
      %3419 = vmatpush1.msra.mxu0 0.0
      %3420 = vmatprep.subr.mxu0 0.0
      %3421 = vmatpush1.msra.mxu0 0.0
      %3422 = vmatprep.subr.mxu0 0.0
      %3423 = vmatpush1.msra.mxu0 0.0
      %3424 = vmatprep.subr.mxu0 0.0
      %3425 = vmatpush1.msra.mxu0 0.0
      %3426 = vmatprep.subr.mxu0 0.0
      %3427 = vmatpush1.msra.mxu0 0.0
      %3428 = vmatprep.subr.mxu0 0.0
      %3429 = vmatpush1.msra.mxu0 0.0
      %3430 = vmatprep.subr.mxu0 0.0
      %3431 = vmatpush1.msra.mxu0 0.0
      %3432 = vmatprep.subr.mxu0 0.0
      %3433 = vmatpush1.msra.mxu0 0.0
      %3434 = vmatprep.subr.mxu0 0.0
      %3435 = vmatpush1.msra.mxu0 0.0
      %3436 = vmatprep.subr.mxu0 0.0
      %3437 = vmatpush1.msra.mxu0 0.0
      %3438 = vmatprep.subr.mxu0 0.0
      %3439 = vmatpush1.msra.mxu0 0.0
      %3440 = vmatprep.subr.mxu0 0.0
      %3441 = vmatpush1.msra.mxu0 0.0
      %3442 = vmatprep.subr.mxu0 0.0
      %3443 = vmatpush1.msra.mxu0 0.0
      %3444 = vmatprep.mubr.f32.mxu0 0.0
      %3445 = vmatmul.mubr.f32.gmra.mrb[0].mxu0 %v3375
      %v3446 = vpop.f32.mrb[0].mxu0
      %v3447 = vadd.f32 %v3373, %v3446
      %v3448 = vpop.f32.mrb[0].mxu0
      %3449 = vmatprep.mubr.f32.mxu0 0.0
      %3450 = vmatmul.mubr.f32.gmra.mrb[0].mxu0 %v3378
      %v3451 = vpop.f32.mrb[0].mxu0
      %v3452 = vadd.f32 %v3373, %v3451
      %v3453 = vpop.f32.mrb[0].mxu0
      %3454 = vdwg.mxu0
      %v3455 = vmax.f32 %v3447, 0.0
      %v3456 = vmax.f32 %v3452, 0.0
      %v3457 = vld [vmem:[%s3 + $0x3f0] sm:$0xff]
      %v3458 = vld [vmem:[%s3 + $0x400] sm:$0xff]
      %v3459 = vld [vmem:[%s3 + $0x410] sm:$0xff]
      %v3460 = vld [vmem:[%s3 + $0x420] sm:$0xff]
      %v3461 = vld [vmem:[%s3 + $0x430] sm:$0xff]
      %v3462 = vld [vmem:[%s3 + $0x440] sm:$0xff]
      %v3463 = vld [vmem:[%s3 + $0x450] sm:$0xff]
      %v3464 = vld [vmem:[%s3 + $0x460] sm:$0xff]
      %v3465 = vld [vmem:[%s3 + $0x470] sm:$0xff]
      %v3466 = vld [vmem:[%s3 + $0x480] sm:$0xff]
      %v3467 = vld [vmem:[%s3 + $0x490] sm:$0xff]
      %v3468 = vld [vmem:[%s3 + $0x4a0] sm:$0xff]
      %v3469 = vld [vmem:[%s3 + $0x4b0] sm:$0xff]
      %v3470 = vld [vmem:[%s3 + $0x4c0] sm:$0xff]
      %v3471 = vld [vmem:[%s3 + $0x4d0] sm:$0xff]
      %v3472 = vld [vmem:[%s3 + $0x4e0] sm:$0xff]
      %v3473 = vld [vmem:[%s3 + $0x4f0] ss:$0 sm:$0xff]
      %3474 = vmatprep.subr.mxu0 0.0
      %3475 = vmatpush1.msra.mxu0 %v3457
      %3476 = vmatprep.subr.mxu0 0.0
      %3477 = vmatpush1.msra.mxu0 %v3458
      %3478 = vmatprep.subr.mxu0 0.0
      %3479 = vmatpush1.msra.mxu0 %v3459
      %3480 = vmatprep.subr.mxu0 0.0
      %3481 = vmatpush1.msra.mxu0 %v3460
      %3482 = vmatprep.subr.mxu0 0.0
      %3483 = vmatpush1.msra.mxu0 %v3461
      %3484 = vmatprep.subr.mxu0 0.0
      %3485 = vmatpush1.msra.mxu0 %v3462
      %3486 = vmatprep.subr.mxu0 0.0
      %3487 = vmatpush1.msra.mxu0 %v3463
      %3488 = vmatprep.subr.mxu0 0.0
      %3489 = vmatpush1.msra.mxu0 %v3464
      %3490 = vmatprep.subr.mxu0 0.0
      %3491 = vmatpush1.msra.mxu0 %v3465
      %3492 = vmatprep.subr.mxu0 0.0
      %3493 = vmatpush1.msra.mxu0 %v3466
      %3494 = vmatprep.subr.mxu0 0.0
      %3495 = vmatpush1.msra.mxu0 %v3467
      %3496 = vmatprep.subr.mxu0 0.0
      %3497 = vmatpush1.msra.mxu0 %v3468
      %3498 = vmatprep.subr.mxu0 0.0
      %3499 = vmatpush1.msra.mxu0 %v3469
      %3500 = vmatprep.subr.mxu0 0.0
      %3501 = vmatpush1.msra.mxu0 %v3470
      %3502 = vmatprep.subr.mxu0 0.0
      %3503 = vmatpush1.msra.mxu0 %v3471
      %3504 = vmatprep.subr.mxu0 0.0
      %3505 = vmatpush1.msra.mxu0 %v3472
      %3506 = vmatprep.subr.mxu0 0.0
      %3507 = vmatpush1.msra.mxu0 0.0
      %3508 = vmatprep.subr.mxu0 0.0
      %3509 = vmatpush1.msra.mxu0 0.0
      %3510 = vmatprep.subr.mxu0 0.0
      %3511 = vmatpush1.msra.mxu0 0.0
      %3512 = vmatprep.subr.mxu0 0.0
      %3513 = vmatpush1.msra.mxu0 0.0
      %3514 = vmatprep.subr.mxu0 0.0
      %3515 = vmatpush1.msra.mxu0 0.0
      %3516 = vmatprep.subr.mxu0 0.0
      %3517 = vmatpush1.msra.mxu0 0.0
      %3518 = vmatprep.subr.mxu0 0.0
      %3519 = vmatpush1.msra.mxu0 0.0
      %3520 = vmatprep.subr.mxu0 0.0
      %3521 = vmatpush1.msra.mxu0 0.0
      %3522 = vmatprep.subr.mxu0 0.0
      %3523 = vmatpush1.msra.mxu0 0.0
      %3524 = vmatprep.subr.mxu0 0.0
      %3525 = vmatpush1.msra.mxu0 0.0
      %3526 = vmatprep.subr.mxu0 0.0
      %3527 = vmatpush1.msra.mxu0 0.0
      %3528 = vmatprep.subr.mxu0 0.0
      %3529 = vmatpush1.msra.mxu0 0.0
      %3530 = vmatprep.subr.mxu0 0.0
      %3531 = vmatpush1.msra.mxu0 0.0
      %3532 = vmatprep.subr.mxu0 0.0
      %3533 = vmatpush1.msra.mxu0 0.0
      %3534 = vmatprep.subr.mxu0 0.0
      %3535 = vmatpush1.msra.mxu0 0.0
      %3536 = vmatprep.subr.mxu0 0.0
      %3537 = vmatpush1.msra.mxu0 0.0
      %3538 = vmatprep.mubr.f32.mxu0 0.0
      %3539 = vmatmul.mubr.f32.gmra.mrb[0].mxu0 %v3455
      %v3540 = vpop.f32.mrb[0].mxu0
      %v3541 = vadd.f32 %v3473, %v3540
      %v3542 = vpop.f32.mrb[0].mxu0
      %3543 = vmatprep.mubr.f32.mxu0 0.0
      %3544 = vmatmul.mubr.f32.gmra.mrb[0].mxu0 %v3456
      %v3545 = vpop.f32.mrb[0].mxu0
      %v3546 = vadd.f32 %v3473, %v3545
      %v3547 = vpop.f32.mrb[0].mxu0
      %3548 = vdwg.mxu0
      %v3565 = vrot.slane %v2447, 7
      %v3566 = vsel %vm3299, %v3565, %v2446
      %v3567 = vrot.slane %v2448, 6
      %v3568 = vsel %vm3301, %v3567, %v3566
      %v3569 = vrot.slane %v2449, 5
      %v3570 = vsel %vm3303, %v3569, %v3568
      %v3571 = vrot.slane %v2450, 4
      %v3572 = vsel %vm3305, %v3571, %v3570
      %v3573 = vrot.slane %v2451, 3
      %v3574 = vsel %vm3307, %v3573, %v3572
      %v3575 = vrot.slane %v2452, 2
      %v3576 = vsel %vm3309, %v3575, %v3574
      %v3577 = vrot.slane %v2453, 1
      %v3578 = vsel %vm3311, %v3577, %v3576
      %v3579 = vrot.slane %v2455, 7
      %v3580 = vsel %vm3299, %v3579, %v2454
      %v3581 = vrot.slane %v2456, 6
      %v3582 = vsel %vm3301, %v3581, %v3580
      %v3583 = vrot.slane %v2457, 5
      %v3584 = vsel %vm3303, %v3583, %v3582
      %v3585 = vrot.slane %v2458, 4
      %v3586 = vsel %vm3305, %v3585, %v3584
      %v3587 = vrot.slane %v2459, 3
      %v3588 = vsel %vm3307, %v3587, %v3586
      %v3589 = vrot.slane %v2460, 2
      %v3590 = vsel %vm3309, %v3589, %v3588
      %v3591 = vrot.slane %v2461, 1
      %v3592 = vsel %vm3311, %v3591, %v3590
      %v3595 = vmul.f32 %v3541, %v3578
      %v3596 = vmul.f32 %v3546, %v3592
      %v3597 = vsel %vm2107, %v3595, -inf
      %3598 = vmax.xlane.f32.xlu0 %v3597
      %v3599 = vpop.xlane.xlu0 %3598
      %v3600 = vsel %vm2107, %v3596, -inf
      %3601 = vmax.xlane.f32.xlu0 %v3600
      %v3602 = vpop.xlane.xlu0 %3601
      %v3603 = vsub.f32 %v3595, %v3599
      %v3604 = vsub.f32 %v3596, %v3602
      %v3605 = vmul.f32 %v3603, 1.442695
      %v3606 = vpow.pop %v3605
      %v3607 = vmul.f32 %v3604, 1.442695
      %v3608 = vpow.pop %v3607
      %v3609 = vsel %vm2107, %v3606, 0.0
      %3610 = vadd.xlane.f32.xlu0 %v3609
      %v3611 = vpop.xlane.xlu0 %3610
      %v3612 = vsel %vm2107, %v3608, 0.0
      %3613 = vadd.xlane.f32.xlu0 %v3612
      %v3614 = vpop.xlane.xlu0 %3613
      %v3615 = vrcp.pop %v3611
      %v3616 = vrcp.pop %v3614
      %v3617 = vmul.f32 %v3606, %v3615
      %v3618 = vmul.f32 %v3608, %v3616
      %v3619 = vld [vmem:[%s240] sm:$0xff]
      %v3620 = vld [vmem:[%s240 + $0x8] sm:$0xff]
      %v3621 = vmul.f32 %v3617, %v3619
      %v3622 = vmul.f32 %v3618, %v3620
      %3623 = vst.msk [vmem:[%s246] sm:$0xff] %vm2107, %v3621
      %3624 = vst.msk [vmem:[%s246 + $0x8] sm:$0xff] %vm2107, %v3622
      %s3625 = smul.u32 2, %s15
      %p3626 = scmp.lt.s32.totalorder %s3625, 7
      %s3627 = scalar_select %p3626, %s3625, 7
      %s3628 = smul.addr %s3627, 8
      %s3629 = scalar_lea.vmem %s4, %s3628
      // Predicated region
      $region37: #{forward.1} parent=35 // pred_check
        %p3630 = pneg %p132
      $region38: #{forward.1} parent=35 // pred_check_branch
        %3632 = sbr.rel (%p3630) target = $region40
      $region39: #{forward.1} parent=35 // pred_region
        %s3633 = smul.u32 2, %s15
      $region40: #{forward.1} parent=35 // pred_fallthru
        _
    $region36: #{forward.1} parent=5 // pred_fallthru
      _
    %p3634 = scmp.le.s32.totalorder 2, %s10
    // Predicated region
    $region41: #{forward.1} parent=5 // pred_check
      %p3635 = pneg %p3634
    $region42: #{forward.1} parent=5 // pred_check_branch
      %3637 = sbr.rel (%p3635) target = $region44
    $region43: #{forward.1} parent=5 // pred_region
      %s3638 = ssub.s32 %s10, 2
      // Predicated region
      $region45: #{forward.1} parent=43 // pred_check
        %p3639 = pneg %p138
      $region46: #{forward.1} parent=43 // pred_check_branch
        %3641 = sbr.rel (%p3639) target = $region48
      $region47: #{forward.1} parent=43 // pred_region
        %s3642 = smul.u32 2, %s16
        %p3643 = scmp.lt.s32.totalorder %s3642, 7
        %s3644 = scalar_select %p3643, %s3642, 7
        %s3645 = smul.addr %s3644, 8
        %s3646 = scalar_lea.vmem %s4, %s3645
      $region48: #{forward.1} parent=43 // pred_fallthru
        _
    $region44: #{forward.1} parent=5 // pred_fallthru
      _
  $region6: #{forward.1} parent=0 // loop_footer
    %s14 = sadd.s32 1, %s10
  $region7: #{forward.1} parent=0 // loop_footer_branch
    %9 = sbr.rel target = $region3
  $region8: #{forward.1} parent=0 // loop_exit
    _

</llo_original>
